<compile_context>
chip_gen: v5e
topology: v5e:2x2
jax: 0.10.0
libtpu: 0.0.40
codegen_flags: <defaults>
</compile_context>

<pallas_src>
import functools

import jax
import jax.numpy as jnp
import numpy as np
from jax.experimental import pallas as pl
from jax.experimental.pallas import tpu as pltpu

LN_EPS = 1e-5
BN_EPS = 1e-5
COORD_PAD = 8       # pad 3-d ref-point coords so the matmul K-dim is sublane aligned
PER_LAYER = 19      # number of packed weight arrays per transformer layer


def _layer_norm(x, gamma, beta, eps=LN_EPS):
  mean = jnp.mean(x, axis=-1, keepdims=True)
  xc = x - mean
  var = jnp.mean(xc * xc, axis=-1, keepdims=True)
  return xc * jax.lax.rsqrt(var + eps) * gamma + beta


# -----------------------------------------------------------------------------
# Fused Pallas kernel: 3 transformer layers + final Linear/BN/ReLU
# -----------------------------------------------------------------------------
def _fused_block_kernel(*refs, num_heads, num_layers, num_boxes, num_points):
  out_ref = refs[-1]
  x_ref, rel_ref, bias_ref = refs[0], refs[1], refs[2]
  wrefs = refs[3:-1]

  L = num_boxes * num_points                    # total rows, sequence-major: row = p*N + b
  h = x_ref[...]                                # (L, in_ch)
  rel2 = rel_ref[...]                           # (L, COORD_PAD)
  attn_bias = bias_ref[...]                     # (L, L) 0 / -1e30 block-diagonal mask

  for l in range(num_layers):
    (wqkv, wref, bqr, win_bd, bin3, wao, bao, g1, b1,
     wf1, bf1, wf2, bf2, g2, b2, wo, bo, go, bo2) = [
        r[...] for r in wrefs[l * PER_LAYER:(l + 1) * PER_LAYER]]
    e = wao.shape[0]
    hd = e // num_heads

    # packed q|k|v projection (box feats + relative ref points, biases pre-combined)
    qkv = (jnp.dot(h, wqkv, preferred_element_type=jnp.float32)
           + jnp.dot(rel2, wref, preferred_element_type=jnp.float32) + bqr)      # (L, 3E)
    # attention in_proj as one block-diagonal matmul; q block pre-scaled by 1/sqrt(hd)
    pro = jnp.dot(qkv, win_bd, preferred_element_type=jnp.float32) + bin3        # (L, 3E)
    q = qkv[:, :e]                               # residual uses the pre-in_proj q

    # masked (block-diagonal) attention over all boxes at once; heads unrolled (static)
    attn = jnp.zeros((L, e), jnp.float32)
    for hh in range(num_heads):
      lo = hh * hd
      qh = pro[:, lo:lo + hd]                    # already scaled
      kh = pro[:, e + lo:e + lo + hd]
      vh = pro[:, 2 * e + lo:2 * e + lo + hd]
      sc = jnp.einsum('qd,kd->qk', qh, kh,
                      preferred_element_type=jnp.float32) + attn_bias            # (L, L)
      sc = sc - jnp.max(sc, axis=-1, keepdims=True)
      ex = jnp.exp(sc)
      prob = ex * pl.reciprocal(jnp.sum(ex, axis=-1, keepdims=True), approx=True)
      ctx = jnp.dot(prob, vh, preferred_element_type=jnp.float32)                # (L, hd)
      # out_proj applied per head-slice of its weight and accumulated (== concat + matmul)
      attn = attn + jnp.dot(ctx, wao[lo:lo + hd, :], preferred_element_type=jnp.float32)
    attn = attn + bao

    rf = _layer_norm(attn + q, g1, b1)
    hid = jnp.maximum(jnp.dot(rf, wf1, preferred_element_type=jnp.float32) + bf1, 0.0)
    act = jnp.dot(hid, wf2, preferred_element_type=jnp.float32) + bf2
    rf = _layer_norm(act + rf, g2, b2)
    o = jnp.dot(rf, wo, preferred_element_type=jnp.float32) + bo
    h = jnp.maximum(_layer_norm(o, go, bo2), 0.0)                                # (L, out_ch)

  # final: Linear over the (num_points*out_ch) flatten -> BatchNorm1d (running stats) -> ReLU
  # sequence-major rows make point p's rows contiguous: no relayout needed, just row slices.
  fw, fb, fg, fbeta, fmu, fvar = [r[...] for r in wrefs[num_layers * PER_LAYER:]]
  c_out = h.shape[-1]
  f_out = fw.shape[-1]
  y = jnp.zeros((num_boxes, f_out), jnp.float32)
  for p_idx in range(num_points):
    hp = h[p_idx * num_boxes:(p_idx + 1) * num_boxes, :]                         # (N, out_ch)
    y = y + jnp.dot(hp, fw[p_idx * c_out:(p_idx + 1) * c_out, :],
                    preferred_element_type=jnp.float32)
  y = y + fb
  y = (y - fmu) * jax.lax.rsqrt(fvar + BN_EPS) * fg + fbeta
  out_ref[...] = jnp.maximum(y, 0.0)


# -----------------------------------------------------------------------------
# Weight packing (plain XLA glue, done once per call; mathematically equivalent)
# -----------------------------------------------------------------------------
def _pack_layer(p, num_heads):
  e = p['wao'].shape[0]
  hd = e // num_heads
  scale = 1.0 / float(np.sqrt(hd))
  wqkv = jnp.concatenate([p['wqkv'][0], p['wqkv'][1], p['wqkv'][2]], axis=1)     # (in_ch, 3E)
  wref = jnp.concatenate([p['wref'][0], p['wref'][1], p['wref'][2]], axis=1)     # (3, 3E)
  wref = jnp.pad(wref, ((0, COORD_PAD - wref.shape[0]), (0, 0)))                 # (8, 3E)
  bqr = jnp.concatenate([p['bqkv'][i] + p['bref'][i] for i in range(3)], axis=1)  # (1, 3E)
  z = jnp.zeros((e, e), jnp.float32)
  win_bd = jnp.concatenate([
      jnp.concatenate([p['win'][0] * scale, z, z], axis=1),
      jnp.concatenate([z, p['win'][1], z], axis=1),
      jnp.concatenate([z, z, p['win'][2]], axis=1)], axis=0)                     # (3E, 3E)
  bin3 = jnp.concatenate([p['bin'][0] * scale, p['bin'][1], p['bin'][2]], axis=1)
  return (wqkv, wref, bqr, win_bd, bin3, p['wao'], p['bao'], p['g1'], p['b1'],
          p['wf1'], p['bf1'], p['wf2'], p['bf2'], p['g2'], p['b2'],
          p['wo'], p['bo'], p['go'], p['bo2'])


# -----------------------------------------------------------------------------
# Wrapper: single fused pallas_call
# -----------------------------------------------------------------------------
@functools.partial(jax.jit, static_argnames=('num_heads',))
def self_attn_block_forward(box_feats, ref_points, params, num_heads=2):
  """box_feats: (num_points, N, in_ch); ref_points: (num_points, N, 3) -> (N, final_out_ch)."""
  s, n, c_in = box_feats.shape
  x2 = box_feats.astype(jnp.float32).reshape(s * n, c_in)                 # seq-major rows p*N+b
  rel = (ref_points - ref_points[-1:, :, :]).astype(jnp.float32)          # (S, N, 3)
  rel = jnp.pad(rel, ((0, 0), (0, 0), (0, COORD_PAD - rel.shape[-1])))
  rel2 = rel.reshape(s * n, COORD_PAD)

  # block-diagonal additive mask: points of different boxes never attend to each other
  L = s * n
  r = np.arange(L)
  same_box = (r[:, None] % n) == (r[None, :] % n)
  attn_bias = jnp.asarray(np.where(same_box, 0.0, -1e30), jnp.float32)    # (L, L)

  layer_params = [params['in_tr']] + list(params['tr'])
  packed = []
  for p in layer_params:
    packed += list(_pack_layer(p, num_heads))
  fp = params['final']
  packed += [fp['w'], fp['b'], fp['gamma'], fp['beta'], fp['mean'], fp['var']]

  num_layers = len(layer_params)
  f_out = fp['w'].shape[1]
  kernel = functools.partial(_fused_block_kernel, num_heads=num_heads,
                             num_layers=num_layers, num_boxes=n, num_points=s)
  args = (x2, rel2, attn_bias, *packed)
  return pl.pallas_call(
      kernel,
      out_shape=jax.ShapeDtypeStruct((n, f_out), jnp.float32),
      in_specs=[pl.BlockSpec(memory_space=pltpu.MemorySpace.VMEM)] * len(args),
      out_specs=pl.BlockSpec(memory_space=pltpu.MemorySpace.VMEM),
  )(*args)


# -----------------------------------------------------------------------------
# Deterministic parameter init (weights stored pre-transposed: (fan_in, fan_out))
# -----------------------------------------------------------------------------
def _linear_init(kw, kb, fan_in, fan_out):
  bound = 1.0 / float(np.sqrt(fan_in))
  w = jax.random.uniform(kw, (fan_in, fan_out), jnp.float32, -bound, bound)
  b = jax.random.uniform(kb, (1, fan_out), jnp.float32, -bound, bound)
  return w, b


def _linear3_init(key, fan_in, fan_out):
  kk = jax.random.split(key, 6)
  ws, bs = zip(*[_linear_init(kk[2 * i], kk[2 * i + 1], fan_in, fan_out) for i in range(3)])
  return jnp.stack(ws), jnp.stack(bs)


def init_transformer_params(key, in_ch, emb_ch, out_ch):
  ks = jax.random.split(key, 7)
  wqkv, bqkv = _linear3_init(ks[0], in_ch, emb_ch)     # qkv_proj, chunked
  wref, bref = _linear3_init(ks[1], 3, emb_ch)         # ref_proj, chunked
  win, bin_ = _linear3_init(ks[2], emb_ch, emb_ch)     # attn in_proj (W_q, W_k, W_v)
  wao, bao = _linear_init(*jax.random.split(ks[3]), emb_ch, emb_ch)
  wf1, bf1 = _linear_init(*jax.random.split(ks[4]), emb_ch, emb_ch)
  wf2, bf2 = _linear_init(*jax.random.split(ks[5]), emb_ch, emb_ch)
  wo, bo = _linear_init(*jax.random.split(ks[6]), emb_ch, out_ch)
  ones = lambda c: jnp.ones((1, c), jnp.float32)
  zeros = lambda c: jnp.zeros((1, c), jnp.float32)
  return dict(wqkv=wqkv, bqkv=bqkv, wref=wref, bref=bref, win=win, bin=bin_,
              wao=wao, bao=bao,
              g1=ones(emb_ch), b1=zeros(emb_ch),
              wf1=wf1, bf1=bf1, wf2=wf2, bf2=bf2,
              g2=ones(emb_ch), b2=zeros(emb_ch),
              wo=wo, bo=bo, go=ones(out_ch), bo2=zeros(out_ch))


def init_block_params(key, in_ch, emb_ch, out_ch, num_points, final_out_ch, num_layers):
  keys = jax.random.split(key, num_layers + 1)
  params = {'in_tr': init_transformer_params(keys[0], in_ch, emb_ch, out_ch)}
  params['tr'] = [init_transformer_params(keys[i + 1], out_ch, emb_ch, out_ch)
                  for i in range(num_layers - 1)]
  kw, kb, kg, kbe, km, kv = jax.random.split(keys[num_layers], 6)
  fan_in = num_points * out_ch
  bound = 1.0 / float(np.sqrt(fan_in))
  params['final'] = dict(
      w=jax.random.uniform(kw, (fan_in, final_out_ch), jnp.float32, -bound, bound),
      b=jax.random.uniform(kb, (1, final_out_ch), jnp.float32, -bound, bound),
      gamma=1.0 + 0.1 * jax.random.normal(kg, (1, final_out_ch), jnp.float32),
      beta=0.1 * jax.random.normal(kbe, (1, final_out_ch), jnp.float32),
      mean=0.1 * jax.random.normal(km, (1, final_out_ch), jnp.float32),
      var=jax.random.uniform(kv, (1, final_out_ch), jnp.float32, 0.5, 1.5),
  )
  return params


# -----------------------------------------------------------------------------
# Pure-JAX reference (independent of the kernel-side weight packing)
# -----------------------------------------------------------------------------
def _mm(a, b):
  return jnp.dot(a, b, precision=jax.lax.Precision.HIGHEST)


def _ref_transformer(x, rp, p, num_heads):
  n, s, _ = x.shape
  e = p['wao'].shape[0]
  hd = e // num_heads
  rel = rp - rp[:, -1:, :]
  x2 = x.reshape(n * s, -1)
  rel2 = rel.reshape(n * s, -1)

  def proj(i):
    return _mm(x2, p['wqkv'][i]) + p['bqkv'][i] + _mm(rel2, p['wref'][i]) + p['bref'][i]

  q, k, v = proj(0), proj(1), proj(2)
  qp = _mm(q, p['win'][0]) + p['bin'][0]
  kp = _mm(k, p['win'][1]) + p['bin'][1]
  vp = _mm(v, p['win'][2]) + p['bin'][2]
  q4 = qp.reshape(n, s, num_heads, hd).transpose(0, 2, 1, 3)
  k4 = kp.reshape(n, s, num_heads, hd).transpose(0, 2, 1, 3)
  v4 = vp.reshape(n, s, num_heads, hd).transpose(0, 2, 1, 3)
  scale = 1.0 / float(np.sqrt(hd))
  sc = jnp.matmul(q4 * scale, jnp.swapaxes(k4, -1, -2), precision=jax.lax.Precision.HIGHEST)
  att = jax.nn.softmax(sc, axis=-1)
  ctx = jnp.matmul(att, v4, precision=jax.lax.Precision.HIGHEST)
  ctx = ctx.transpose(0, 2, 1, 3).reshape(n * s, e)
  attn = _mm(ctx, p['wao']) + p['bao']

  rf = _layer_norm(attn + q, p['g1'], p['b1'])
  act = _mm(jnp.maximum(_mm(rf, p['wf1']) + p['bf1'], 0.0), p['wf2']) + p['bf2']
  rf = _layer_norm(act + rf, p['g2'], p['b2'])
  o = jnp.maximum(_layer_norm(_mm(rf, p['wo']) + p['bo'], p['go'], p['bo2']), 0.0)
  return o.reshape(n, s, -1)


def _ref_block(box_feats, ref_points, params, num_heads):
  x = jnp.transpose(box_feats, (1, 0, 2))
  rp = jnp.transpose(ref_points, (1, 0, 2))
  rlt = _ref_transformer(x, rp, params['in_tr'], num_heads)
  for p in params['tr']:
    rlt = _ref_transformer(rlt, rp, p, num_heads)
  n, s, c = rlt.shape
  flat = rlt.reshape(n, s * c)
  fp = params['final']
  y = _mm(flat, fp['w']) + fp['b']
  y = (y - fp['mean']) / jnp.sqrt(fp['var'] + BN_EPS) * fp['gamma'] + fp['beta']
  return jnp.maximum(y, 0.0)


# -----------------------------------------------------------------------------
if __name__ == "__main__":
  key = jax.random.PRNGKey(0)
  num_points, n_boxes = 8, 4
  in_ch, emb_ch, out_ch = 16, 32, 16
  final_out_ch, num_heads, num_layers = 64, 2, 3

  k_feat, k_ref, k_param = jax.random.split(key, 3)
  box_feats = jax.random.normal(k_feat, (num_points, n_boxes, in_ch), jnp.float32)
  ref_points = jax.random.normal(k_ref, (num_points, n_boxes, 3), jnp.float32)
  params = init_block_params(k_param, in_ch, emb_ch, out_ch, num_points,
                             final_out_ch, num_layers)

  out = self_attn_block_forward(box_feats, ref_points, params, num_heads=num_heads)
  out = jax.block_until_ready(out)
  assert out.shape == (n_boxes, final_out_ch), out.shape

  ref = _ref_block(box_feats, ref_points, params, num_heads)
  # tolerance slightly loosened vs. f32 reference: approx EUP reciprocal in the softmax
  np.testing.assert_allclose(np.asarray(out), np.asarray(ref), rtol=1e-2, atol=1e-2)
  print("KERNEL_OK")
</pallas_src>

<mosaic_0001>
module attributes {stable_mosaic.version = 11 : i64} {
  func.func @_fused_block_kernel(%arg0: memref<32x16xf32, #tpu.memory_space<vmem>>, %arg1: memref<32x8xf32, #tpu.memory_space<vmem>>, %arg2: memref<32x32xf32, #tpu.memory_space<vmem>>, %arg3: memref<16x96xf32, #tpu.memory_space<vmem>>, %arg4: memref<8x96xf32, #tpu.memory_space<vmem>>, %arg5: memref<1x96xf32, #tpu.memory_space<vmem>>, %arg6: memref<96x96xf32, #tpu.memory_space<vmem>>, %arg7: memref<1x96xf32, #tpu.memory_space<vmem>>, %arg8: memref<32x32xf32, #tpu.memory_space<vmem>>, %arg9: memref<1x32xf32, #tpu.memory_space<vmem>>, %arg10: memref<1x32xf32, #tpu.memory_space<vmem>>, %arg11: memref<1x32xf32, #tpu.memory_space<vmem>>, %arg12: memref<32x32xf32, #tpu.memory_space<vmem>>, %arg13: memref<1x32xf32, #tpu.memory_space<vmem>>, %arg14: memref<32x32xf32, #tpu.memory_space<vmem>>, %arg15: memref<1x32xf32, #tpu.memory_space<vmem>>, %arg16: memref<1x32xf32, #tpu.memory_space<vmem>>, %arg17: memref<1x32xf32, #tpu.memory_space<vmem>>, %arg18: memref<32x16xf32, #tpu.memory_space<vmem>>, %arg19: memref<1x16xf32, #tpu.memory_space<vmem>>, %arg20: memref<1x16xf32, #tpu.memory_space<vmem>>, %arg21: memref<1x16xf32, #tpu.memory_space<vmem>>, %arg22: memref<16x96xf32, #tpu.memory_space<vmem>>, %arg23: memref<8x96xf32, #tpu.memory_space<vmem>>, %arg24: memref<1x96xf32, #tpu.memory_space<vmem>>, %arg25: memref<96x96xf32, #tpu.memory_space<vmem>>, %arg26: memref<1x96xf32, #tpu.memory_space<vmem>>, %arg27: memref<32x32xf32, #tpu.memory_space<vmem>>, %arg28: memref<1x32xf32, #tpu.memory_space<vmem>>, %arg29: memref<1x32xf32, #tpu.memory_space<vmem>>, %arg30: memref<1x32xf32, #tpu.memory_space<vmem>>, %arg31: memref<32x32xf32, #tpu.memory_space<vmem>>, %arg32: memref<1x32xf32, #tpu.memory_space<vmem>>, %arg33: memref<32x32xf32, #tpu.memory_space<vmem>>, %arg34: memref<1x32xf32, #tpu.memory_space<vmem>>, %arg35: memref<1x32xf32, #tpu.memory_space<vmem>>, %arg36: memref<1x32xf32, #tpu.memory_space<vmem>>, %arg37: memref<32x16xf32, #tpu.memory_space<vmem>>, %arg38: memref<1x16xf32, #tpu.memory_space<vmem>>, %arg39: memref<1x16xf32, #tpu.memory_space<vmem>>, %arg40: memref<1x16xf32, #tpu.memory_space<vmem>>, %arg41: memref<16x96xf32, #tpu.memory_space<vmem>>, %arg42: memref<8x96xf32, #tpu.memory_space<vmem>>, %arg43: memref<1x96xf32, #tpu.memory_space<vmem>>, %arg44: memref<96x96xf32, #tpu.memory_space<vmem>>, %arg45: memref<1x96xf32, #tpu.memory_space<vmem>>, %arg46: memref<32x32xf32, #tpu.memory_space<vmem>>, %arg47: memref<1x32xf32, #tpu.memory_space<vmem>>, %arg48: memref<1x32xf32, #tpu.memory_space<vmem>>, %arg49: memref<1x32xf32, #tpu.memory_space<vmem>>, %arg50: memref<32x32xf32, #tpu.memory_space<vmem>>, %arg51: memref<1x32xf32, #tpu.memory_space<vmem>>, %arg52: memref<32x32xf32, #tpu.memory_space<vmem>>, %arg53: memref<1x32xf32, #tpu.memory_space<vmem>>, %arg54: memref<1x32xf32, #tpu.memory_space<vmem>>, %arg55: memref<1x32xf32, #tpu.memory_space<vmem>>, %arg56: memref<32x16xf32, #tpu.memory_space<vmem>>, %arg57: memref<1x16xf32, #tpu.memory_space<vmem>>, %arg58: memref<1x16xf32, #tpu.memory_space<vmem>>, %arg59: memref<1x16xf32, #tpu.memory_space<vmem>>, %arg60: memref<128x64xf32, #tpu.memory_space<vmem>>, %arg61: memref<1x64xf32, #tpu.memory_space<vmem>>, %arg62: memref<1x64xf32, #tpu.memory_space<vmem>>, %arg63: memref<1x64xf32, #tpu.memory_space<vmem>>, %arg64: memref<1x64xf32, #tpu.memory_space<vmem>>, %arg65: memref<1x64xf32, #tpu.memory_space<vmem>>, %arg66: memref<4x64xf32, #tpu.memory_space<vmem>>) attributes {dimension_semantics = [], scalar_prefetch = 0 : i64, scratch_operands = 0 : i64, tpu.core_type = #tpu.core_type<tc>} {
    %c0 = arith.constant 0 : index
    %c0_0 = arith.constant 0 : index
    %0 = vector.load %arg0[%c0, %c0_0] : memref<32x16xf32, #tpu.memory_space<vmem>>, vector<32x16xf32>
    %c0_1 = arith.constant 0 : index
    %c0_2 = arith.constant 0 : index
    %1 = vector.load %arg1[%c0_1, %c0_2] : memref<32x8xf32, #tpu.memory_space<vmem>>, vector<32x8xf32>
    %c0_3 = arith.constant 0 : index
    %c0_4 = arith.constant 0 : index
    %2 = vector.load %arg2[%c0_3, %c0_4] : memref<32x32xf32, #tpu.memory_space<vmem>>, vector<32x32xf32>
    %c0_5 = arith.constant 0 : index
    %c0_6 = arith.constant 0 : index
    %3 = vector.load %arg3[%c0_5, %c0_6] : memref<16x96xf32, #tpu.memory_space<vmem>>, vector<16x96xf32>
    %c0_7 = arith.constant 0 : index
    %c0_8 = arith.constant 0 : index
    %4 = vector.load %arg4[%c0_7, %c0_8] : memref<8x96xf32, #tpu.memory_space<vmem>>, vector<8x96xf32>
    %c0_9 = arith.constant 0 : index
    %c0_10 = arith.constant 0 : index
    %5 = vector.load %arg5[%c0_9, %c0_10] : memref<1x96xf32, #tpu.memory_space<vmem>>, vector<1x96xf32>
    %c0_11 = arith.constant 0 : index
    %c0_12 = arith.constant 0 : index
    %6 = vector.load %arg6[%c0_11, %c0_12] : memref<96x96xf32, #tpu.memory_space<vmem>>, vector<96x96xf32>
    %c0_13 = arith.constant 0 : index
    %c0_14 = arith.constant 0 : index
    %7 = vector.load %arg7[%c0_13, %c0_14] : memref<1x96xf32, #tpu.memory_space<vmem>>, vector<1x96xf32>
    %c0_15 = arith.constant 0 : index
    %c0_16 = arith.constant 0 : index
    %8 = vector.load %arg8[%c0_15, %c0_16] : memref<32x32xf32, #tpu.memory_space<vmem>>, vector<32x32xf32>
    %c0_17 = arith.constant 0 : index
    %c0_18 = arith.constant 0 : index
    %9 = vector.load %arg9[%c0_17, %c0_18] : memref<1x32xf32, #tpu.memory_space<vmem>>, vector<1x32xf32>
    %c0_19 = arith.constant 0 : index
    %c0_20 = arith.constant 0 : index
    %10 = vector.load %arg10[%c0_19, %c0_20] : memref<1x32xf32, #tpu.memory_space<vmem>>, vector<1x32xf32>
    %c0_21 = arith.constant 0 : index
    %c0_22 = arith.constant 0 : index
    %11 = vector.load %arg11[%c0_21, %c0_22] : memref<1x32xf32, #tpu.memory_space<vmem>>, vector<1x32xf32>
    %c0_23 = arith.constant 0 : index
    %c0_24 = arith.constant 0 : index
    %12 = vector.load %arg12[%c0_23, %c0_24] : memref<32x32xf32, #tpu.memory_space<vmem>>, vector<32x32xf32>
    %c0_25 = arith.constant 0 : index
    %c0_26 = arith.constant 0 : index
    %13 = vector.load %arg13[%c0_25, %c0_26] : memref<1x32xf32, #tpu.memory_space<vmem>>, vector<1x32xf32>
    %c0_27 = arith.constant 0 : index
    %c0_28 = arith.constant 0 : index
    %14 = vector.load %arg14[%c0_27, %c0_28] : memref<32x32xf32, #tpu.memory_space<vmem>>, vector<32x32xf32>
    %c0_29 = arith.constant 0 : index
    %c0_30 = arith.constant 0 : index
    %15 = vector.load %arg15[%c0_29, %c0_30] : memref<1x32xf32, #tpu.memory_space<vmem>>, vector<1x32xf32>
    %c0_31 = arith.constant 0 : index
    %c0_32 = arith.constant 0 : index
    %16 = vector.load %arg16[%c0_31, %c0_32] : memref<1x32xf32, #tpu.memory_space<vmem>>, vector<1x32xf32>
    %c0_33 = arith.constant 0 : index
    %c0_34 = arith.constant 0 : index
    %17 = vector.load %arg17[%c0_33, %c0_34] : memref<1x32xf32, #tpu.memory_space<vmem>>, vector<1x32xf32>
    %c0_35 = arith.constant 0 : index
    %c0_36 = arith.constant 0 : index
    %18 = vector.load %arg18[%c0_35, %c0_36] : memref<32x16xf32, #tpu.memory_space<vmem>>, vector<32x16xf32>
    %c0_37 = arith.constant 0 : index
    %c0_38 = arith.constant 0 : index
    %19 = vector.load %arg19[%c0_37, %c0_38] : memref<1x16xf32, #tpu.memory_space<vmem>>, vector<1x16xf32>
    %c0_39 = arith.constant 0 : index
    %c0_40 = arith.constant 0 : index
    %20 = vector.load %arg20[%c0_39, %c0_40] : memref<1x16xf32, #tpu.memory_space<vmem>>, vector<1x16xf32>
    %c0_41 = arith.constant 0 : index
    %c0_42 = arith.constant 0 : index
    %21 = vector.load %arg21[%c0_41, %c0_42] : memref<1x16xf32, #tpu.memory_space<vmem>>, vector<1x16xf32>
    %cst = arith.constant dense<0.000000e+00> : vector<32x96xf32>
    %22 = tpu.matmul %0, %3, %cst {dimension_numbers = #tpu.dot_dimension_numbers<[1], [0], [0], [1], [0, 0, 1, 1], [], []>} : vector<32x16xf32>, vector<16x96xf32>, vector<32x96xf32> -> vector<32x96xf32>
    %cst_43 = arith.constant dense<0.000000e+00> : vector<32x96xf32>
    %23 = tpu.matmul %1, %4, %cst_43 {dimension_numbers = #tpu.dot_dimension_numbers<[1], [0], [0], [1], [0, 0, 1, 1], [], []>} : vector<32x8xf32>, vector<8x96xf32>, vector<32x96xf32> -> vector<32x96xf32>
    %24 = arith.addf %22, %23 : vector<32x96xf32>
    %25 = vector.broadcast %5 : vector<1x96xf32> to vector<32x96xf32>
    %26 = arith.addf %24, %25 : vector<32x96xf32>
    %cst_44 = arith.constant dense<0.000000e+00> : vector<32x96xf32>
    %27 = tpu.matmul %26, %6, %cst_44 {dimension_numbers = #tpu.dot_dimension_numbers<[1], [0], [0], [1], [0, 0, 1, 1], [], []>} : vector<32x96xf32>, vector<96x96xf32>, vector<32x96xf32> -> vector<32x96xf32>
    %28 = vector.broadcast %7 : vector<1x96xf32> to vector<32x96xf32>
    %29 = arith.addf %27, %28 : vector<32x96xf32>
    %30 = vector.extract_strided_slice %26 {offsets = [0, 0], sizes = [32, 32], strides = [1, 1]} : vector<32x96xf32> to vector<32x32xf32>
    %cst_45 = arith.constant 0.000000e+00 : f32
    %31 = vector.broadcast %cst_45 : f32 to vector<32x32xf32>
    %32 = vector.extract_strided_slice %29 {offsets = [0, 0], sizes = [32, 16], strides = [1, 1]} : vector<32x96xf32> to vector<32x16xf32>
    %33 = vector.extract_strided_slice %29 {offsets = [0, 32], sizes = [32, 16], strides = [1, 1]} : vector<32x96xf32> to vector<32x16xf32>
    %34 = vector.extract_strided_slice %29 {offsets = [0, 64], sizes = [32, 16], strides = [1, 1]} : vector<32x96xf32> to vector<32x16xf32>
    "tpu.trace_start"() <{level = 10 : i32, message = "qd,kd->qk"}> : () -> ()
    %cst_46 = arith.constant dense<0.000000e+00> : vector<32x32xf32>
    %35 = tpu.matmul %32, %33, %cst_46 {dimension_numbers = #tpu.dot_dimension_numbers<[1], [1], [0], [0], [0, 0, 1, 0], [], []>} : vector<32x16xf32>, vector<32x16xf32>, vector<32x32xf32> -> vector<32x32xf32>
    "tpu.trace_stop"() : () -> ()
    %36 = arith.addf %35, %2 : vector<32x32xf32>
    %cst_47 = arith.constant dense<0xFF800000> : vector<32xf32>
    %37 = vector.multi_reduction <maximumf>, %36, %cst_47 [1] : vector<32x32xf32> to vector<32xf32>
    %38 = vector.shape_cast %37 : vector<32xf32> to vector<32x1xf32>
    %39 = vector.broadcast %38 : vector<32x1xf32> to vector<32x32xf32>
    %40 = arith.subf %36, %39 : vector<32x32xf32>
    %41 = math.exp %40 : vector<32x32xf32>
    %cst_48 = arith.constant dense<0.000000e+00> : vector<32xf32>
    %42 = vector.multi_reduction <add>, %41, %cst_48 [1] : vector<32x32xf32> to vector<32xf32>
    %43 = vector.shape_cast %42 : vector<32xf32> to vector<32x1xf32>
    %44 = tpu.reciprocal %43 {approx = true} : vector<32x1xf32> -> vector<32x1xf32>
    %45 = vector.broadcast %44 : vector<32x1xf32> to vector<32x32xf32>
    %46 = arith.mulf %41, %45 : vector<32x32xf32>
    %cst_49 = arith.constant dense<0.000000e+00> : vector<32x16xf32>
    %47 = tpu.matmul %46, %34, %cst_49 {dimension_numbers = #tpu.dot_dimension_numbers<[1], [0], [0], [1], [0, 0, 1, 1], [], []>} : vector<32x32xf32>, vector<32x16xf32>, vector<32x16xf32> -> vector<32x16xf32>
    %48 = vector.extract_strided_slice %8 {offsets = [0, 0], sizes = [16, 32], strides = [1, 1]} : vector<32x32xf32> to vector<16x32xf32>
    %cst_50 = arith.constant dense<0.000000e+00> : vector<32x32xf32>
    %49 = tpu.matmul %47, %48, %cst_50 {dimension_numbers = #tpu.dot_dimension_numbers<[1], [0], [0], [1], [0, 0, 1, 1], [], []>} : vector<32x16xf32>, vector<16x32xf32>, vector<32x32xf32> -> vector<32x32xf32>
    %50 = arith.addf %31, %49 : vector<32x32xf32>
    %51 = vector.extract_strided_slice %29 {offsets = [0, 16], sizes = [32, 16], strides = [1, 1]} : vector<32x96xf32> to vector<32x16xf32>
    %52 = vector.extract_strided_slice %29 {offsets = [0, 48], sizes = [32, 16], strides = [1, 1]} : vector<32x96xf32> to vector<32x16xf32>
    %53 = vector.extract_strided_slice %29 {offsets = [0, 80], sizes = [32, 16], strides = [1, 1]} : vector<32x96xf32> to vector<32x16xf32>
    "tpu.trace_start"() <{level = 10 : i32, message = "qd,kd->qk"}> : () -> ()
    %cst_51 = arith.constant dense<0.000000e+00> : vector<32x32xf32>
    %54 = tpu.matmul %51, %52, %cst_51 {dimension_numbers = #tpu.dot_dimension_numbers<[1], [1], [0], [0], [0, 0, 1, 0], [], []>} : vector<32x16xf32>, vector<32x16xf32>, vector<32x32xf32> -> vector<32x32xf32>
    "tpu.trace_stop"() : () -> ()
    %55 = arith.addf %54, %2 : vector<32x32xf32>
    %cst_52 = arith.constant dense<0xFF800000> : vector<32xf32>
    %56 = vector.multi_reduction <maximumf>, %55, %cst_52 [1] : vector<32x32xf32> to vector<32xf32>
    %57 = vector.shape_cast %56 : vector<32xf32> to vector<32x1xf32>
    %58 = vector.broadcast %57 : vector<32x1xf32> to vector<32x32xf32>
    %59 = arith.subf %55, %58 : vector<32x32xf32>
    %60 = math.exp %59 : vector<32x32xf32>
    %cst_53 = arith.constant dense<0.000000e+00> : vector<32xf32>
    %61 = vector.multi_reduction <add>, %60, %cst_53 [1] : vector<32x32xf32> to vector<32xf32>
    %62 = vector.shape_cast %61 : vector<32xf32> to vector<32x1xf32>
    %63 = tpu.reciprocal %62 {approx = true} : vector<32x1xf32> -> vector<32x1xf32>
    %64 = vector.broadcast %63 : vector<32x1xf32> to vector<32x32xf32>
    %65 = arith.mulf %60, %64 : vector<32x32xf32>
    %cst_54 = arith.constant dense<0.000000e+00> : vector<32x16xf32>
    %66 = tpu.matmul %65, %53, %cst_54 {dimension_numbers = #tpu.dot_dimension_numbers<[1], [0], [0], [1], [0, 0, 1, 1], [], []>} : vector<32x32xf32>, vector<32x16xf32>, vector<32x16xf32> -> vector<32x16xf32>
    %67 = vector.extract_strided_slice %8 {offsets = [16, 0], sizes = [16, 32], strides = [1, 1]} : vector<32x32xf32> to vector<16x32xf32>
    %cst_55 = arith.constant dense<0.000000e+00> : vector<32x32xf32>
    %68 = tpu.matmul %66, %67, %cst_55 {dimension_numbers = #tpu.dot_dimension_numbers<[1], [0], [0], [1], [0, 0, 1, 1], [], []>} : vector<32x16xf32>, vector<16x32xf32>, vector<32x32xf32> -> vector<32x32xf32>
    %69 = arith.addf %50, %68 : vector<32x32xf32>
    %70 = vector.broadcast %9 : vector<1x32xf32> to vector<32x32xf32>
    %71 = arith.addf %69, %70 : vector<32x32xf32>
    %72 = arith.addf %71, %30 : vector<32x32xf32>
    %cst_56 = arith.constant dense<0.000000e+00> : vector<32xf32>
    %73 = vector.multi_reduction <add>, %72, %cst_56 [1] : vector<32x32xf32> to vector<32xf32>
    %74 = vector.shape_cast %73 : vector<32xf32> to vector<32x1xf32>
    %cst_57 = arith.constant 3.200000e+01 : f32
    %75 = vector.broadcast %cst_57 : f32 to vector<32x1xf32>
    %76 = arith.divf %74, %75 : vector<32x1xf32>
    %77 = vector.broadcast %76 : vector<32x1xf32> to vector<32x32xf32>
    %78 = arith.subf %72, %77 : vector<32x32xf32>
    %79 = arith.mulf %78, %78 : vector<32x32xf32>
    %cst_58 = arith.constant dense<0.000000e+00> : vector<32xf32>
    %80 = vector.multi_reduction <add>, %79, %cst_58 [1] : vector<32x32xf32> to vector<32xf32>
    %81 = vector.shape_cast %80 : vector<32xf32> to vector<32x1xf32>
    %cst_59 = arith.constant 3.200000e+01 : f32
    %82 = vector.broadcast %cst_59 : f32 to vector<32x1xf32>
    %83 = arith.divf %81, %82 : vector<32x1xf32>
    %cst_60 = arith.constant 9.99999974E-6 : f32
    %84 = vector.broadcast %cst_60 : f32 to vector<32x1xf32>
    %85 = arith.addf %83, %84 : vector<32x1xf32>
    %86 = math.rsqrt %85 : vector<32x1xf32>
    %87 = vector.broadcast %86 : vector<32x1xf32> to vector<32x32xf32>
    %88 = arith.mulf %78, %87 : vector<32x32xf32>
    %89 = vector.broadcast %10 : vector<1x32xf32> to vector<32x32xf32>
    %90 = arith.mulf %88, %89 : vector<32x32xf32>
    %91 = vector.broadcast %11 : vector<1x32xf32> to vector<32x32xf32>
    %92 = arith.addf %90, %91 : vector<32x32xf32>
    %cst_61 = arith.constant dense<0.000000e+00> : vector<32x32xf32>
    %93 = tpu.matmul %92, %12, %cst_61 {dimension_numbers = #tpu.dot_dimension_numbers<[1], [0], [0], [1], [0, 0, 1, 1], [], []>} : vector<32x32xf32>, vector<32x32xf32>, vector<32x32xf32> -> vector<32x32xf32>
    %94 = vector.broadcast %13 : vector<1x32xf32> to vector<32x32xf32>
    %95 = arith.addf %93, %94 : vector<32x32xf32>
    %cst_62 = arith.constant 0.000000e+00 : f32
    %96 = vector.broadcast %cst_62 : f32 to vector<32x32xf32>
    %97 = arith.maximumf %95, %96 : vector<32x32xf32>
    %cst_63 = arith.constant dense<0.000000e+00> : vector<32x32xf32>
    %98 = tpu.matmul %97, %14, %cst_63 {dimension_numbers = #tpu.dot_dimension_numbers<[1], [0], [0], [1], [0, 0, 1, 1], [], []>} : vector<32x32xf32>, vector<32x32xf32>, vector<32x32xf32> -> vector<32x32xf32>
    %99 = vector.broadcast %15 : vector<1x32xf32> to vector<32x32xf32>
    %100 = arith.addf %98, %99 : vector<32x32xf32>
    %101 = arith.addf %100, %92 : vector<32x32xf32>
    %cst_64 = arith.constant dense<0.000000e+00> : vector<32xf32>
    %102 = vector.multi_reduction <add>, %101, %cst_64 [1] : vector<32x32xf32> to vector<32xf32>
    %103 = vector.shape_cast %102 : vector<32xf32> to vector<32x1xf32>
    %cst_65 = arith.constant 3.200000e+01 : f32
    %104 = vector.broadcast %cst_65 : f32 to vector<32x1xf32>
    %105 = arith.divf %103, %104 : vector<32x1xf32>
    %106 = vector.broadcast %105 : vector<32x1xf32> to vector<32x32xf32>
    %107 = arith.subf %101, %106 : vector<32x32xf32>
    %108 = arith.mulf %107, %107 : vector<32x32xf32>
    %cst_66 = arith.constant dense<0.000000e+00> : vector<32xf32>
    %109 = vector.multi_reduction <add>, %108, %cst_66 [1] : vector<32x32xf32> to vector<32xf32>
    %110 = vector.shape_cast %109 : vector<32xf32> to vector<32x1xf32>
    %cst_67 = arith.constant 3.200000e+01 : f32
    %111 = vector.broadcast %cst_67 : f32 to vector<32x1xf32>
    %112 = arith.divf %110, %111 : vector<32x1xf32>
    %cst_68 = arith.constant 9.99999974E-6 : f32
    %113 = vector.broadcast %cst_68 : f32 to vector<32x1xf32>
    %114 = arith.addf %112, %113 : vector<32x1xf32>
    %115 = math.rsqrt %114 : vector<32x1xf32>
    %116 = vector.broadcast %115 : vector<32x1xf32> to vector<32x32xf32>
    %117 = arith.mulf %107, %116 : vector<32x32xf32>
    %118 = vector.broadcast %16 : vector<1x32xf32> to vector<32x32xf32>
    %119 = arith.mulf %117, %118 : vector<32x32xf32>
    %120 = vector.broadcast %17 : vector<1x32xf32> to vector<32x32xf32>
    %121 = arith.addf %119, %120 : vector<32x32xf32>
    %cst_69 = arith.constant dense<0.000000e+00> : vector<32x16xf32>
    %122 = tpu.matmul %121, %18, %cst_69 {dimension_numbers = #tpu.dot_dimension_numbers<[1], [0], [0], [1], [0, 0, 1, 1], [], []>} : vector<32x32xf32>, vector<32x16xf32>, vector<32x16xf32> -> vector<32x16xf32>
    %123 = vector.broadcast %19 : vector<1x16xf32> to vector<32x16xf32>
    %124 = arith.addf %122, %123 : vector<32x16xf32>
    %cst_70 = arith.constant dense<0.000000e+00> : vector<32xf32>
    %125 = vector.multi_reduction <add>, %124, %cst_70 [1] : vector<32x16xf32> to vector<32xf32>
    %126 = vector.shape_cast %125 : vector<32xf32> to vector<32x1xf32>
    %cst_71 = arith.constant 1.600000e+01 : f32
    %127 = vector.broadcast %cst_71 : f32 to vector<32x1xf32>
    %128 = arith.divf %126, %127 : vector<32x1xf32>
    %129 = vector.broadcast %128 : vector<32x1xf32> to vector<32x16xf32>
    %130 = arith.subf %124, %129 : vector<32x16xf32>
    %131 = arith.mulf %130, %130 : vector<32x16xf32>
    %cst_72 = arith.constant dense<0.000000e+00> : vector<32xf32>
    %132 = vector.multi_reduction <add>, %131, %cst_72 [1] : vector<32x16xf32> to vector<32xf32>
    %133 = vector.shape_cast %132 : vector<32xf32> to vector<32x1xf32>
    %cst_73 = arith.constant 1.600000e+01 : f32
    %134 = vector.broadcast %cst_73 : f32 to vector<32x1xf32>
    %135 = arith.divf %133, %134 : vector<32x1xf32>
    %cst_74 = arith.constant 9.99999974E-6 : f32
    %136 = vector.broadcast %cst_74 : f32 to vector<32x1xf32>
    %137 = arith.addf %135, %136 : vector<32x1xf32>
    %138 = math.rsqrt %137 : vector<32x1xf32>
    %139 = vector.broadcast %138 : vector<32x1xf32> to vector<32x16xf32>
    %140 = arith.mulf %130, %139 : vector<32x16xf32>
    %141 = vector.broadcast %20 : vector<1x16xf32> to vector<32x16xf32>
    %142 = arith.mulf %140, %141 : vector<32x16xf32>
    %143 = vector.broadcast %21 : vector<1x16xf32> to vector<32x16xf32>
    %144 = arith.addf %142, %143 : vector<32x16xf32>
    %cst_75 = arith.constant 0.000000e+00 : f32
    %145 = vector.broadcast %cst_75 : f32 to vector<32x16xf32>
    %146 = arith.maximumf %144, %145 : vector<32x16xf32>
    %c0_76 = arith.constant 0 : index
    %c0_77 = arith.constant 0 : index
    %147 = vector.load %arg22[%c0_76, %c0_77] : memref<16x96xf32, #tpu.memory_space<vmem>>, vector<16x96xf32>
    %c0_78 = arith.constant 0 : index
    %c0_79 = arith.constant 0 : index
    %148 = vector.load %arg23[%c0_78, %c0_79] : memref<8x96xf32, #tpu.memory_space<vmem>>, vector<8x96xf32>
    %c0_80 = arith.constant 0 : index
    %c0_81 = arith.constant 0 : index
    %149 = vector.load %arg24[%c0_80, %c0_81] : memref<1x96xf32, #tpu.memory_space<vmem>>, vector<1x96xf32>
    %c0_82 = arith.constant 0 : index
    %c0_83 = arith.constant 0 : index
    %150 = vector.load %arg25[%c0_82, %c0_83] : memref<96x96xf32, #tpu.memory_space<vmem>>, vector<96x96xf32>
    %c0_84 = arith.constant 0 : index
    %c0_85 = arith.constant 0 : index
    %151 = vector.load %arg26[%c0_84, %c0_85] : memref<1x96xf32, #tpu.memory_space<vmem>>, vector<1x96xf32>
    %c0_86 = arith.constant 0 : index
    %c0_87 = arith.constant 0 : index
    %152 = vector.load %arg27[%c0_86, %c0_87] : memref<32x32xf32, #tpu.memory_space<vmem>>, vector<32x32xf32>
    %c0_88 = arith.constant 0 : index
    %c0_89 = arith.constant 0 : index
    %153 = vector.load %arg28[%c0_88, %c0_89] : memref<1x32xf32, #tpu.memory_space<vmem>>, vector<1x32xf32>
    %c0_90 = arith.constant 0 : index
    %c0_91 = arith.constant 0 : index
    %154 = vector.load %arg29[%c0_90, %c0_91] : memref<1x32xf32, #tpu.memory_space<vmem>>, vector<1x32xf32>
    %c0_92 = arith.constant 0 : index
    %c0_93 = arith.constant 0 : index
    %155 = vector.load %arg30[%c0_92, %c0_93] : memref<1x32xf32, #tpu.memory_space<vmem>>, vector<1x32xf32>
    %c0_94 = arith.constant 0 : index
    %c0_95 = arith.constant 0 : index
    %156 = vector.load %arg31[%c0_94, %c0_95] : memref<32x32xf32, #tpu.memory_space<vmem>>, vector<32x32xf32>
    %c0_96 = arith.constant 0 : index
    %c0_97 = arith.constant 0 : index
    %157 = vector.load %arg32[%c0_96, %c0_97] : memref<1x32xf32, #tpu.memory_space<vmem>>, vector<1x32xf32>
    %c0_98 = arith.constant 0 : index
    %c0_99 = arith.constant 0 : index
    %158 = vector.load %arg33[%c0_98, %c0_99] : memref<32x32xf32, #tpu.memory_space<vmem>>, vector<32x32xf32>
    %c0_100 = arith.constant 0 : index
    %c0_101 = arith.constant 0 : index
    %159 = vector.load %arg34[%c0_100, %c0_101] : memref<1x32xf32, #tpu.memory_space<vmem>>, vector<1x32xf32>
    %c0_102 = arith.constant 0 : index
    %c0_103 = arith.constant 0 : index
    %160 = vector.load %arg35[%c0_102, %c0_103] : memref<1x32xf32, #tpu.memory_space<vmem>>, vector<1x32xf32>
    %c0_104 = arith.constant 0 : index
    %c0_105 = arith.constant 0 : index
    %161 = vector.load %arg36[%c0_104, %c0_105] : memref<1x32xf32, #tpu.memory_space<vmem>>, vector<1x32xf32>
    %c0_106 = arith.constant 0 : index
    %c0_107 = arith.constant 0 : index
    %162 = vector.load %arg37[%c0_106, %c0_107] : memref<32x16xf32, #tpu.memory_space<vmem>>, vector<32x16xf32>
    %c0_108 = arith.constant 0 : index
    %c0_109 = arith.constant 0 : index
    %163 = vector.load %arg38[%c0_108, %c0_109] : memref<1x16xf32, #tpu.memory_space<vmem>>, vector<1x16xf32>
    %c0_110 = arith.constant 0 : index
    %c0_111 = arith.constant 0 : index
    %164 = vector.load %arg39[%c0_110, %c0_111] : memref<1x16xf32, #tpu.memory_space<vmem>>, vector<1x16xf32>
    %c0_112 = arith.constant 0 : index
    %c0_113 = arith.constant 0 : index
    %165 = vector.load %arg40[%c0_112, %c0_113] : memref<1x16xf32, #tpu.memory_space<vmem>>, vector<1x16xf32>
    %cst_114 = arith.constant dense<0.000000e+00> : vector<32x96xf32>
    %166 = tpu.matmul %146, %147, %cst_114 {dimension_numbers = #tpu.dot_dimension_numbers<[1], [0], [0], [1], [0, 0, 1, 1], [], []>} : vector<32x16xf32>, vector<16x96xf32>, vector<32x96xf32> -> vector<32x96xf32>
    %cst_115 = arith.constant dense<0.000000e+00> : vector<32x96xf32>
    %167 = tpu.matmul %1, %148, %cst_115 {dimension_numbers = #tpu.dot_dimension_numbers<[1], [0], [0], [1], [0, 0, 1, 1], [], []>} : vector<32x8xf32>, vector<8x96xf32>, vector<32x96xf32> -> vector<32x96xf32>
    %168 = arith.addf %166, %167 : vector<32x96xf32>
    %169 = vector.broadcast %149 : vector<1x96xf32> to vector<32x96xf32>
    %170 = arith.addf %168, %169 : vector<32x96xf32>
    %cst_116 = arith.constant dense<0.000000e+00> : vector<32x96xf32>
    %171 = tpu.matmul %170, %150, %cst_116 {dimension_numbers = #tpu.dot_dimension_numbers<[1], [0], [0], [1], [0, 0, 1, 1], [], []>} : vector<32x96xf32>, vector<96x96xf32>, vector<32x96xf32> -> vector<32x96xf32>
    %172 = vector.broadcast %151 : vector<1x96xf32> to vector<32x96xf32>
    %173 = arith.addf %171, %172 : vector<32x96xf32>
    %174 = vector.extract_strided_slice %170 {offsets = [0, 0], sizes = [32, 32], strides = [1, 1]} : vector<32x96xf32> to vector<32x32xf32>
    %cst_117 = arith.constant 0.000000e+00 : f32
    %175 = vector.broadcast %cst_117 : f32 to vector<32x32xf32>
    %176 = vector.extract_strided_slice %173 {offsets = [0, 0], sizes = [32, 16], strides = [1, 1]} : vector<32x96xf32> to vector<32x16xf32>
    %177 = vector.extract_strided_slice %173 {offsets = [0, 32], sizes = [32, 16], strides = [1, 1]} : vector<32x96xf32> to vector<32x16xf32>
    %178 = vector.extract_strided_slice %173 {offsets = [0, 64], sizes = [32, 16], strides = [1, 1]} : vector<32x96xf32> to vector<32x16xf32>
    "tpu.trace_start"() <{level = 10 : i32, message = "qd,kd->qk"}> : () -> ()
    %cst_118 = arith.constant dense<0.000000e+00> : vector<32x32xf32>
    %179 = tpu.matmul %176, %177, %cst_118 {dimension_numbers = #tpu.dot_dimension_numbers<[1], [1], [0], [0], [0, 0, 1, 0], [], []>} : vector<32x16xf32>, vector<32x16xf32>, vector<32x32xf32> -> vector<32x32xf32>
    "tpu.trace_stop"() : () -> ()
    %180 = arith.addf %179, %2 : vector<32x32xf32>
    %cst_119 = arith.constant dense<0xFF800000> : vector<32xf32>
    %181 = vector.multi_reduction <maximumf>, %180, %cst_119 [1] : vector<32x32xf32> to vector<32xf32>
    %182 = vector.shape_cast %181 : vector<32xf32> to vector<32x1xf32>
    %183 = vector.broadcast %182 : vector<32x1xf32> to vector<32x32xf32>
    %184 = arith.subf %180, %183 : vector<32x32xf32>
    %185 = math.exp %184 : vector<32x32xf32>
    %cst_120 = arith.constant dense<0.000000e+00> : vector<32xf32>
    %186 = vector.multi_reduction <add>, %185, %cst_120 [1] : vector<32x32xf32> to vector<32xf32>
    %187 = vector.shape_cast %186 : vector<32xf32> to vector<32x1xf32>
    %188 = tpu.reciprocal %187 {approx = true} : vector<32x1xf32> -> vector<32x1xf32>
    %189 = vector.broadcast %188 : vector<32x1xf32> to vector<32x32xf32>
    %190 = arith.mulf %185, %189 : vector<32x32xf32>
    %cst_121 = arith.constant dense<0.000000e+00> : vector<32x16xf32>
    %191 = tpu.matmul %190, %178, %cst_121 {dimension_numbers = #tpu.dot_dimension_numbers<[1], [0], [0], [1], [0, 0, 1, 1], [], []>} : vector<32x32xf32>, vector<32x16xf32>, vector<32x16xf32> -> vector<32x16xf32>
    %192 = vector.extract_strided_slice %152 {offsets = [0, 0], sizes = [16, 32], strides = [1, 1]} : vector<32x32xf32> to vector<16x32xf32>
    %cst_122 = arith.constant dense<0.000000e+00> : vector<32x32xf32>
    %193 = tpu.matmul %191, %192, %cst_122 {dimension_numbers = #tpu.dot_dimension_numbers<[1], [0], [0], [1], [0, 0, 1, 1], [], []>} : vector<32x16xf32>, vector<16x32xf32>, vector<32x32xf32> -> vector<32x32xf32>
    %194 = arith.addf %175, %193 : vector<32x32xf32>
    %195 = vector.extract_strided_slice %173 {offsets = [0, 16], sizes = [32, 16], strides = [1, 1]} : vector<32x96xf32> to vector<32x16xf32>
    %196 = vector.extract_strided_slice %173 {offsets = [0, 48], sizes = [32, 16], strides = [1, 1]} : vector<32x96xf32> to vector<32x16xf32>
    %197 = vector.extract_strided_slice %173 {offsets = [0, 80], sizes = [32, 16], strides = [1, 1]} : vector<32x96xf32> to vector<32x16xf32>
    "tpu.trace_start"() <{level = 10 : i32, message = "qd,kd->qk"}> : () -> ()
    %cst_123 = arith.constant dense<0.000000e+00> : vector<32x32xf32>
    %198 = tpu.matmul %195, %196, %cst_123 {dimension_numbers = #tpu.dot_dimension_numbers<[1], [1], [0], [0], [0, 0, 1, 0], [], []>} : vector<32x16xf32>, vector<32x16xf32>, vector<32x32xf32> -> vector<32x32xf32>
    "tpu.trace_stop"() : () -> ()
    %199 = arith.addf %198, %2 : vector<32x32xf32>
    %cst_124 = arith.constant dense<0xFF800000> : vector<32xf32>
    %200 = vector.multi_reduction <maximumf>, %199, %cst_124 [1] : vector<32x32xf32> to vector<32xf32>
    %201 = vector.shape_cast %200 : vector<32xf32> to vector<32x1xf32>
    %202 = vector.broadcast %201 : vector<32x1xf32> to vector<32x32xf32>
    %203 = arith.subf %199, %202 : vector<32x32xf32>
    %204 = math.exp %203 : vector<32x32xf32>
    %cst_125 = arith.constant dense<0.000000e+00> : vector<32xf32>
    %205 = vector.multi_reduction <add>, %204, %cst_125 [1] : vector<32x32xf32> to vector<32xf32>
    %206 = vector.shape_cast %205 : vector<32xf32> to vector<32x1xf32>
    %207 = tpu.reciprocal %206 {approx = true} : vector<32x1xf32> -> vector<32x1xf32>
    %208 = vector.broadcast %207 : vector<32x1xf32> to vector<32x32xf32>
    %209 = arith.mulf %204, %208 : vector<32x32xf32>
    %cst_126 = arith.constant dense<0.000000e+00> : vector<32x16xf32>
    %210 = tpu.matmul %209, %197, %cst_126 {dimension_numbers = #tpu.dot_dimension_numbers<[1], [0], [0], [1], [0, 0, 1, 1], [], []>} : vector<32x32xf32>, vector<32x16xf32>, vector<32x16xf32> -> vector<32x16xf32>
    %211 = vector.extract_strided_slice %152 {offsets = [16, 0], sizes = [16, 32], strides = [1, 1]} : vector<32x32xf32> to vector<16x32xf32>
    %cst_127 = arith.constant dense<0.000000e+00> : vector<32x32xf32>
    %212 = tpu.matmul %210, %211, %cst_127 {dimension_numbers = #tpu.dot_dimension_numbers<[1], [0], [0], [1], [0, 0, 1, 1], [], []>} : vector<32x16xf32>, vector<16x32xf32>, vector<32x32xf32> -> vector<32x32xf32>
    %213 = arith.addf %194, %212 : vector<32x32xf32>
    %214 = vector.broadcast %153 : vector<1x32xf32> to vector<32x32xf32>
    %215 = arith.addf %213, %214 : vector<32x32xf32>
    %216 = arith.addf %215, %174 : vector<32x32xf32>
    %cst_128 = arith.constant dense<0.000000e+00> : vector<32xf32>
    %217 = vector.multi_reduction <add>, %216, %cst_128 [1] : vector<32x32xf32> to vector<32xf32>
    %218 = vector.shape_cast %217 : vector<32xf32> to vector<32x1xf32>
    %cst_129 = arith.constant 3.200000e+01 : f32
    %219 = vector.broadcast %cst_129 : f32 to vector<32x1xf32>
    %220 = arith.divf %218, %219 : vector<32x1xf32>
    %221 = vector.broadcast %220 : vector<32x1xf32> to vector<32x32xf32>
    %222 = arith.subf %216, %221 : vector<32x32xf32>
    %223 = arith.mulf %222, %222 : vector<32x32xf32>
    %cst_130 = arith.constant dense<0.000000e+00> : vector<32xf32>
    %224 = vector.multi_reduction <add>, %223, %cst_130 [1] : vector<32x32xf32> to vector<32xf32>
    %225 = vector.shape_cast %224 : vector<32xf32> to vector<32x1xf32>
    %cst_131 = arith.constant 3.200000e+01 : f32
    %226 = vector.broadcast %cst_131 : f32 to vector<32x1xf32>
    %227 = arith.divf %225, %226 : vector<32x1xf32>
    %cst_132 = arith.constant 9.99999974E-6 : f32
    %228 = vector.broadcast %cst_132 : f32 to vector<32x1xf32>
    %229 = arith.addf %227, %228 : vector<32x1xf32>
    %230 = math.rsqrt %229 : vector<32x1xf32>
    %231 = vector.broadcast %230 : vector<32x1xf32> to vector<32x32xf32>
    %232 = arith.mulf %222, %231 : vector<32x32xf32>
    %233 = vector.broadcast %154 : vector<1x32xf32> to vector<32x32xf32>
    %234 = arith.mulf %232, %233 : vector<32x32xf32>
    %235 = vector.broadcast %155 : vector<1x32xf32> to vector<32x32xf32>
    %236 = arith.addf %234, %235 : vector<32x32xf32>
    %cst_133 = arith.constant dense<0.000000e+00> : vector<32x32xf32>
    %237 = tpu.matmul %236, %156, %cst_133 {dimension_numbers = #tpu.dot_dimension_numbers<[1], [0], [0], [1], [0, 0, 1, 1], [], []>} : vector<32x32xf32>, vector<32x32xf32>, vector<32x32xf32> -> vector<32x32xf32>
    %238 = vector.broadcast %157 : vector<1x32xf32> to vector<32x32xf32>
    %239 = arith.addf %237, %238 : vector<32x32xf32>
    %cst_134 = arith.constant 0.000000e+00 : f32
    %240 = vector.broadcast %cst_134 : f32 to vector<32x32xf32>
    %241 = arith.maximumf %239, %240 : vector<32x32xf32>
    %cst_135 = arith.constant dense<0.000000e+00> : vector<32x32xf32>
    %242 = tpu.matmul %241, %158, %cst_135 {dimension_numbers = #tpu.dot_dimension_numbers<[1], [0], [0], [1], [0, 0, 1, 1], [], []>} : vector<32x32xf32>, vector<32x32xf32>, vector<32x32xf32> -> vector<32x32xf32>
    %243 = vector.broadcast %159 : vector<1x32xf32> to vector<32x32xf32>
    %244 = arith.addf %242, %243 : vector<32x32xf32>
    %245 = arith.addf %244, %236 : vector<32x32xf32>
    %cst_136 = arith.constant dense<0.000000e+00> : vector<32xf32>
    %246 = vector.multi_reduction <add>, %245, %cst_136 [1] : vector<32x32xf32> to vector<32xf32>
    %247 = vector.shape_cast %246 : vector<32xf32> to vector<32x1xf32>
    %cst_137 = arith.constant 3.200000e+01 : f32
    %248 = vector.broadcast %cst_137 : f32 to vector<32x1xf32>
    %249 = arith.divf %247, %248 : vector<32x1xf32>
    %250 = vector.broadcast %249 : vector<32x1xf32> to vector<32x32xf32>
    %251 = arith.subf %245, %250 : vector<32x32xf32>
    %252 = arith.mulf %251, %251 : vector<32x32xf32>
    %cst_138 = arith.constant dense<0.000000e+00> : vector<32xf32>
    %253 = vector.multi_reduction <add>, %252, %cst_138 [1] : vector<32x32xf32> to vector<32xf32>
    %254 = vector.shape_cast %253 : vector<32xf32> to vector<32x1xf32>
    %cst_139 = arith.constant 3.200000e+01 : f32
    %255 = vector.broadcast %cst_139 : f32 to vector<32x1xf32>
    %256 = arith.divf %254, %255 : vector<32x1xf32>
    %cst_140 = arith.constant 9.99999974E-6 : f32
    %257 = vector.broadcast %cst_140 : f32 to vector<32x1xf32>
    %258 = arith.addf %256, %257 : vector<32x1xf32>
    %259 = math.rsqrt %258 : vector<32x1xf32>
    %260 = vector.broadcast %259 : vector<32x1xf32> to vector<32x32xf32>
    %261 = arith.mulf %251, %260 : vector<32x32xf32>
    %262 = vector.broadcast %160 : vector<1x32xf32> to vector<32x32xf32>
    %263 = arith.mulf %261, %262 : vector<32x32xf32>
    %264 = vector.broadcast %161 : vector<1x32xf32> to vector<32x32xf32>
    %265 = arith.addf %263, %264 : vector<32x32xf32>
    %cst_141 = arith.constant dense<0.000000e+00> : vector<32x16xf32>
    %266 = tpu.matmul %265, %162, %cst_141 {dimension_numbers = #tpu.dot_dimension_numbers<[1], [0], [0], [1], [0, 0, 1, 1], [], []>} : vector<32x32xf32>, vector<32x16xf32>, vector<32x16xf32> -> vector<32x16xf32>
    %267 = vector.broadcast %163 : vector<1x16xf32> to vector<32x16xf32>
    %268 = arith.addf %266, %267 : vector<32x16xf32>
    %cst_142 = arith.constant dense<0.000000e+00> : vector<32xf32>
    %269 = vector.multi_reduction <add>, %268, %cst_142 [1] : vector<32x16xf32> to vector<32xf32>
    %270 = vector.shape_cast %269 : vector<32xf32> to vector<32x1xf32>
    %cst_143 = arith.constant 1.600000e+01 : f32
    %271 = vector.broadcast %cst_143 : f32 to vector<32x1xf32>
    %272 = arith.divf %270, %271 : vector<32x1xf32>
    %273 = vector.broadcast %272 : vector<32x1xf32> to vector<32x16xf32>
    %274 = arith.subf %268, %273 : vector<32x16xf32>
    %275 = arith.mulf %274, %274 : vector<32x16xf32>
    %cst_144 = arith.constant dense<0.000000e+00> : vector<32xf32>
    %276 = vector.multi_reduction <add>, %275, %cst_144 [1] : vector<32x16xf32> to vector<32xf32>
    %277 = vector.shape_cast %276 : vector<32xf32> to vector<32x1xf32>
    %cst_145 = arith.constant 1.600000e+01 : f32
    %278 = vector.broadcast %cst_145 : f32 to vector<32x1xf32>
    %279 = arith.divf %277, %278 : vector<32x1xf32>
    %cst_146 = arith.constant 9.99999974E-6 : f32
    %280 = vector.broadcast %cst_146 : f32 to vector<32x1xf32>
    %281 = arith.addf %279, %280 : vector<32x1xf32>
    %282 = math.rsqrt %281 : vector<32x1xf32>
    %283 = vector.broadcast %282 : vector<32x1xf32> to vector<32x16xf32>
    %284 = arith.mulf %274, %283 : vector<32x16xf32>
    %285 = vector.broadcast %164 : vector<1x16xf32> to vector<32x16xf32>
    %286 = arith.mulf %284, %285 : vector<32x16xf32>
    %287 = vector.broadcast %165 : vector<1x16xf32> to vector<32x16xf32>
    %288 = arith.addf %286, %287 : vector<32x16xf32>
    %cst_147 = arith.constant 0.000000e+00 : f32
    %289 = vector.broadcast %cst_147 : f32 to vector<32x16xf32>
    %290 = arith.maximumf %288, %289 : vector<32x16xf32>
    %c0_148 = arith.constant 0 : index
    %c0_149 = arith.constant 0 : index
    %291 = vector.load %arg41[%c0_148, %c0_149] : memref<16x96xf32, #tpu.memory_space<vmem>>, vector<16x96xf32>
    %c0_150 = arith.constant 0 : index
    %c0_151 = arith.constant 0 : index
    %292 = vector.load %arg42[%c0_150, %c0_151] : memref<8x96xf32, #tpu.memory_space<vmem>>, vector<8x96xf32>
    %c0_152 = arith.constant 0 : index
    %c0_153 = arith.constant 0 : index
    %293 = vector.load %arg43[%c0_152, %c0_153] : memref<1x96xf32, #tpu.memory_space<vmem>>, vector<1x96xf32>
    %c0_154 = arith.constant 0 : index
    %c0_155 = arith.constant 0 : index
    %294 = vector.load %arg44[%c0_154, %c0_155] : memref<96x96xf32, #tpu.memory_space<vmem>>, vector<96x96xf32>
    %c0_156 = arith.constant 0 : index
    %c0_157 = arith.constant 0 : index
    %295 = vector.load %arg45[%c0_156, %c0_157] : memref<1x96xf32, #tpu.memory_space<vmem>>, vector<1x96xf32>
    %c0_158 = arith.constant 0 : index
    %c0_159 = arith.constant 0 : index
    %296 = vector.load %arg46[%c0_158, %c0_159] : memref<32x32xf32, #tpu.memory_space<vmem>>, vector<32x32xf32>
    %c0_160 = arith.constant 0 : index
    %c0_161 = arith.constant 0 : index
    %297 = vector.load %arg47[%c0_160, %c0_161] : memref<1x32xf32, #tpu.memory_space<vmem>>, vector<1x32xf32>
    %c0_162 = arith.constant 0 : index
    %c0_163 = arith.constant 0 : index
    %298 = vector.load %arg48[%c0_162, %c0_163] : memref<1x32xf32, #tpu.memory_space<vmem>>, vector<1x32xf32>
    %c0_164 = arith.constant 0 : index
    %c0_165 = arith.constant 0 : index
    %299 = vector.load %arg49[%c0_164, %c0_165] : memref<1x32xf32, #tpu.memory_space<vmem>>, vector<1x32xf32>
    %c0_166 = arith.constant 0 : index
    %c0_167 = arith.constant 0 : index
    %300 = vector.load %arg50[%c0_166, %c0_167] : memref<32x32xf32, #tpu.memory_space<vmem>>, vector<32x32xf32>
    %c0_168 = arith.constant 0 : index
    %c0_169 = arith.constant 0 : index
    %301 = vector.load %arg51[%c0_168, %c0_169] : memref<1x32xf32, #tpu.memory_space<vmem>>, vector<1x32xf32>
    %c0_170 = arith.constant 0 : index
    %c0_171 = arith.constant 0 : index
    %302 = vector.load %arg52[%c0_170, %c0_171] : memref<32x32xf32, #tpu.memory_space<vmem>>, vector<32x32xf32>
    %c0_172 = arith.constant 0 : index
    %c0_173 = arith.constant 0 : index
    %303 = vector.load %arg53[%c0_172, %c0_173] : memref<1x32xf32, #tpu.memory_space<vmem>>, vector<1x32xf32>
    %c0_174 = arith.constant 0 : index
    %c0_175 = arith.constant 0 : index
    %304 = vector.load %arg54[%c0_174, %c0_175] : memref<1x32xf32, #tpu.memory_space<vmem>>, vector<1x32xf32>
    %c0_176 = arith.constant 0 : index
    %c0_177 = arith.constant 0 : index
    %305 = vector.load %arg55[%c0_176, %c0_177] : memref<1x32xf32, #tpu.memory_space<vmem>>, vector<1x32xf32>
    %c0_178 = arith.constant 0 : index
    %c0_179 = arith.constant 0 : index
    %306 = vector.load %arg56[%c0_178, %c0_179] : memref<32x16xf32, #tpu.memory_space<vmem>>, vector<32x16xf32>
    %c0_180 = arith.constant 0 : index
    %c0_181 = arith.constant 0 : index
    %307 = vector.load %arg57[%c0_180, %c0_181] : memref<1x16xf32, #tpu.memory_space<vmem>>, vector<1x16xf32>
    %c0_182 = arith.constant 0 : index
    %c0_183 = arith.constant 0 : index
    %308 = vector.load %arg58[%c0_182, %c0_183] : memref<1x16xf32, #tpu.memory_space<vmem>>, vector<1x16xf32>
    %c0_184 = arith.constant 0 : index
    %c0_185 = arith.constant 0 : index
    %309 = vector.load %arg59[%c0_184, %c0_185] : memref<1x16xf32, #tpu.memory_space<vmem>>, vector<1x16xf32>
    %cst_186 = arith.constant dense<0.000000e+00> : vector<32x96xf32>
    %310 = tpu.matmul %290, %291, %cst_186 {dimension_numbers = #tpu.dot_dimension_numbers<[1], [0], [0], [1], [0, 0, 1, 1], [], []>} : vector<32x16xf32>, vector<16x96xf32>, vector<32x96xf32> -> vector<32x96xf32>
    %cst_187 = arith.constant dense<0.000000e+00> : vector<32x96xf32>
    %311 = tpu.matmul %1, %292, %cst_187 {dimension_numbers = #tpu.dot_dimension_numbers<[1], [0], [0], [1], [0, 0, 1, 1], [], []>} : vector<32x8xf32>, vector<8x96xf32>, vector<32x96xf32> -> vector<32x96xf32>
    %312 = arith.addf %310, %311 : vector<32x96xf32>
    %313 = vector.broadcast %293 : vector<1x96xf32> to vector<32x96xf32>
    %314 = arith.addf %312, %313 : vector<32x96xf32>
    %cst_188 = arith.constant dense<0.000000e+00> : vector<32x96xf32>
    %315 = tpu.matmul %314, %294, %cst_188 {dimension_numbers = #tpu.dot_dimension_numbers<[1], [0], [0], [1], [0, 0, 1, 1], [], []>} : vector<32x96xf32>, vector<96x96xf32>, vector<32x96xf32> -> vector<32x96xf32>
    %316 = vector.broadcast %295 : vector<1x96xf32> to vector<32x96xf32>
    %317 = arith.addf %315, %316 : vector<32x96xf32>
    %318 = vector.extract_strided_slice %314 {offsets = [0, 0], sizes = [32, 32], strides = [1, 1]} : vector<32x96xf32> to vector<32x32xf32>
    %cst_189 = arith.constant 0.000000e+00 : f32
    %319 = vector.broadcast %cst_189 : f32 to vector<32x32xf32>
    %320 = vector.extract_strided_slice %317 {offsets = [0, 0], sizes = [32, 16], strides = [1, 1]} : vector<32x96xf32> to vector<32x16xf32>
    %321 = vector.extract_strided_slice %317 {offsets = [0, 32], sizes = [32, 16], strides = [1, 1]} : vector<32x96xf32> to vector<32x16xf32>
    %322 = vector.extract_strided_slice %317 {offsets = [0, 64], sizes = [32, 16], strides = [1, 1]} : vector<32x96xf32> to vector<32x16xf32>
    "tpu.trace_start"() <{level = 10 : i32, message = "qd,kd->qk"}> : () -> ()
    %cst_190 = arith.constant dense<0.000000e+00> : vector<32x32xf32>
    %323 = tpu.matmul %320, %321, %cst_190 {dimension_numbers = #tpu.dot_dimension_numbers<[1], [1], [0], [0], [0, 0, 1, 0], [], []>} : vector<32x16xf32>, vector<32x16xf32>, vector<32x32xf32> -> vector<32x32xf32>
    "tpu.trace_stop"() : () -> ()
    %324 = arith.addf %323, %2 : vector<32x32xf32>
    %cst_191 = arith.constant dense<0xFF800000> : vector<32xf32>
    %325 = vector.multi_reduction <maximumf>, %324, %cst_191 [1] : vector<32x32xf32> to vector<32xf32>
    %326 = vector.shape_cast %325 : vector<32xf32> to vector<32x1xf32>
    %327 = vector.broadcast %326 : vector<32x1xf32> to vector<32x32xf32>
    %328 = arith.subf %324, %327 : vector<32x32xf32>
    %329 = math.exp %328 : vector<32x32xf32>
    %cst_192 = arith.constant dense<0.000000e+00> : vector<32xf32>
    %330 = vector.multi_reduction <add>, %329, %cst_192 [1] : vector<32x32xf32> to vector<32xf32>
    %331 = vector.shape_cast %330 : vector<32xf32> to vector<32x1xf32>
    %332 = tpu.reciprocal %331 {approx = true} : vector<32x1xf32> -> vector<32x1xf32>
    %333 = vector.broadcast %332 : vector<32x1xf32> to vector<32x32xf32>
    %334 = arith.mulf %329, %333 : vector<32x32xf32>
    %cst_193 = arith.constant dense<0.000000e+00> : vector<32x16xf32>
    %335 = tpu.matmul %334, %322, %cst_193 {dimension_numbers = #tpu.dot_dimension_numbers<[1], [0], [0], [1], [0, 0, 1, 1], [], []>} : vector<32x32xf32>, vector<32x16xf32>, vector<32x16xf32> -> vector<32x16xf32>
    %336 = vector.extract_strided_slice %296 {offsets = [0, 0], sizes = [16, 32], strides = [1, 1]} : vector<32x32xf32> to vector<16x32xf32>
    %cst_194 = arith.constant dense<0.000000e+00> : vector<32x32xf32>
    %337 = tpu.matmul %335, %336, %cst_194 {dimension_numbers = #tpu.dot_dimension_numbers<[1], [0], [0], [1], [0, 0, 1, 1], [], []>} : vector<32x16xf32>, vector<16x32xf32>, vector<32x32xf32> -> vector<32x32xf32>
    %338 = arith.addf %319, %337 : vector<32x32xf32>
    %339 = vector.extract_strided_slice %317 {offsets = [0, 16], sizes = [32, 16], strides = [1, 1]} : vector<32x96xf32> to vector<32x16xf32>
    %340 = vector.extract_strided_slice %317 {offsets = [0, 48], sizes = [32, 16], strides = [1, 1]} : vector<32x96xf32> to vector<32x16xf32>
    %341 = vector.extract_strided_slice %317 {offsets = [0, 80], sizes = [32, 16], strides = [1, 1]} : vector<32x96xf32> to vector<32x16xf32>
    "tpu.trace_start"() <{level = 10 : i32, message = "qd,kd->qk"}> : () -> ()
    %cst_195 = arith.constant dense<0.000000e+00> : vector<32x32xf32>
    %342 = tpu.matmul %339, %340, %cst_195 {dimension_numbers = #tpu.dot_dimension_numbers<[1], [1], [0], [0], [0, 0, 1, 0], [], []>} : vector<32x16xf32>, vector<32x16xf32>, vector<32x32xf32> -> vector<32x32xf32>
    "tpu.trace_stop"() : () -> ()
    %343 = arith.addf %342, %2 : vector<32x32xf32>
    %cst_196 = arith.constant dense<0xFF800000> : vector<32xf32>
    %344 = vector.multi_reduction <maximumf>, %343, %cst_196 [1] : vector<32x32xf32> to vector<32xf32>
    %345 = vector.shape_cast %344 : vector<32xf32> to vector<32x1xf32>
    %346 = vector.broadcast %345 : vector<32x1xf32> to vector<32x32xf32>
    %347 = arith.subf %343, %346 : vector<32x32xf32>
    %348 = math.exp %347 : vector<32x32xf32>
    %cst_197 = arith.constant dense<0.000000e+00> : vector<32xf32>
    %349 = vector.multi_reduction <add>, %348, %cst_197 [1] : vector<32x32xf32> to vector<32xf32>
    %350 = vector.shape_cast %349 : vector<32xf32> to vector<32x1xf32>
    %351 = tpu.reciprocal %350 {approx = true} : vector<32x1xf32> -> vector<32x1xf32>
    %352 = vector.broadcast %351 : vector<32x1xf32> to vector<32x32xf32>
    %353 = arith.mulf %348, %352 : vector<32x32xf32>
    %cst_198 = arith.constant dense<0.000000e+00> : vector<32x16xf32>
    %354 = tpu.matmul %353, %341, %cst_198 {dimension_numbers = #tpu.dot_dimension_numbers<[1], [0], [0], [1], [0, 0, 1, 1], [], []>} : vector<32x32xf32>, vector<32x16xf32>, vector<32x16xf32> -> vector<32x16xf32>
    %355 = vector.extract_strided_slice %296 {offsets = [16, 0], sizes = [16, 32], strides = [1, 1]} : vector<32x32xf32> to vector<16x32xf32>
    %cst_199 = arith.constant dense<0.000000e+00> : vector<32x32xf32>
    %356 = tpu.matmul %354, %355, %cst_199 {dimension_numbers = #tpu.dot_dimension_numbers<[1], [0], [0], [1], [0, 0, 1, 1], [], []>} : vector<32x16xf32>, vector<16x32xf32>, vector<32x32xf32> -> vector<32x32xf32>
    %357 = arith.addf %338, %356 : vector<32x32xf32>
    %358 = vector.broadcast %297 : vector<1x32xf32> to vector<32x32xf32>
    %359 = arith.addf %357, %358 : vector<32x32xf32>
    %360 = arith.addf %359, %318 : vector<32x32xf32>
    %cst_200 = arith.constant dense<0.000000e+00> : vector<32xf32>
    %361 = vector.multi_reduction <add>, %360, %cst_200 [1] : vector<32x32xf32> to vector<32xf32>
    %362 = vector.shape_cast %361 : vector<32xf32> to vector<32x1xf32>
    %cst_201 = arith.constant 3.200000e+01 : f32
    %363 = vector.broadcast %cst_201 : f32 to vector<32x1xf32>
    %364 = arith.divf %362, %363 : vector<32x1xf32>
    %365 = vector.broadcast %364 : vector<32x1xf32> to vector<32x32xf32>
    %366 = arith.subf %360, %365 : vector<32x32xf32>
    %367 = arith.mulf %366, %366 : vector<32x32xf32>
    %cst_202 = arith.constant dense<0.000000e+00> : vector<32xf32>
    %368 = vector.multi_reduction <add>, %367, %cst_202 [1] : vector<32x32xf32> to vector<32xf32>
    %369 = vector.shape_cast %368 : vector<32xf32> to vector<32x1xf32>
    %cst_203 = arith.constant 3.200000e+01 : f32
    %370 = vector.broadcast %cst_203 : f32 to vector<32x1xf32>
    %371 = arith.divf %369, %370 : vector<32x1xf32>
    %cst_204 = arith.constant 9.99999974E-6 : f32
    %372 = vector.broadcast %cst_204 : f32 to vector<32x1xf32>
    %373 = arith.addf %371, %372 : vector<32x1xf32>
    %374 = math.rsqrt %373 : vector<32x1xf32>
    %375 = vector.broadcast %374 : vector<32x1xf32> to vector<32x32xf32>
    %376 = arith.mulf %366, %375 : vector<32x32xf32>
    %377 = vector.broadcast %298 : vector<1x32xf32> to vector<32x32xf32>
    %378 = arith.mulf %376, %377 : vector<32x32xf32>
    %379 = vector.broadcast %299 : vector<1x32xf32> to vector<32x32xf32>
    %380 = arith.addf %378, %379 : vector<32x32xf32>
    %cst_205 = arith.constant dense<0.000000e+00> : vector<32x32xf32>
    %381 = tpu.matmul %380, %300, %cst_205 {dimension_numbers = #tpu.dot_dimension_numbers<[1], [0], [0], [1], [0, 0, 1, 1], [], []>} : vector<32x32xf32>, vector<32x32xf32>, vector<32x32xf32> -> vector<32x32xf32>
    %382 = vector.broadcast %301 : vector<1x32xf32> to vector<32x32xf32>
    %383 = arith.addf %381, %382 : vector<32x32xf32>
    %cst_206 = arith.constant 0.000000e+00 : f32
    %384 = vector.broadcast %cst_206 : f32 to vector<32x32xf32>
    %385 = arith.maximumf %383, %384 : vector<32x32xf32>
    %cst_207 = arith.constant dense<0.000000e+00> : vector<32x32xf32>
    %386 = tpu.matmul %385, %302, %cst_207 {dimension_numbers = #tpu.dot_dimension_numbers<[1], [0], [0], [1], [0, 0, 1, 1], [], []>} : vector<32x32xf32>, vector<32x32xf32>, vector<32x32xf32> -> vector<32x32xf32>
    %387 = vector.broadcast %303 : vector<1x32xf32> to vector<32x32xf32>
    %388 = arith.addf %386, %387 : vector<32x32xf32>
    %389 = arith.addf %388, %380 : vector<32x32xf32>
    %cst_208 = arith.constant dense<0.000000e+00> : vector<32xf32>
    %390 = vector.multi_reduction <add>, %389, %cst_208 [1] : vector<32x32xf32> to vector<32xf32>
    %391 = vector.shape_cast %390 : vector<32xf32> to vector<32x1xf32>
    %cst_209 = arith.constant 3.200000e+01 : f32
    %392 = vector.broadcast %cst_209 : f32 to vector<32x1xf32>
    %393 = arith.divf %391, %392 : vector<32x1xf32>
    %394 = vector.broadcast %393 : vector<32x1xf32> to vector<32x32xf32>
    %395 = arith.subf %389, %394 : vector<32x32xf32>
    %396 = arith.mulf %395, %395 : vector<32x32xf32>
    %cst_210 = arith.constant dense<0.000000e+00> : vector<32xf32>
    %397 = vector.multi_reduction <add>, %396, %cst_210 [1] : vector<32x32xf32> to vector<32xf32>
    %398 = vector.shape_cast %397 : vector<32xf32> to vector<32x1xf32>
    %cst_211 = arith.constant 3.200000e+01 : f32
    %399 = vector.broadcast %cst_211 : f32 to vector<32x1xf32>
    %400 = arith.divf %398, %399 : vector<32x1xf32>
    %cst_212 = arith.constant 9.99999974E-6 : f32
    %401 = vector.broadcast %cst_212 : f32 to vector<32x1xf32>
    %402 = arith.addf %400, %401 : vector<32x1xf32>
    %403 = math.rsqrt %402 : vector<32x1xf32>
    %404 = vector.broadcast %403 : vector<32x1xf32> to vector<32x32xf32>
    %405 = arith.mulf %395, %404 : vector<32x32xf32>
    %406 = vector.broadcast %304 : vector<1x32xf32> to vector<32x32xf32>
    %407 = arith.mulf %405, %406 : vector<32x32xf32>
    %408 = vector.broadcast %305 : vector<1x32xf32> to vector<32x32xf32>
    %409 = arith.addf %407, %408 : vector<32x32xf32>
    %cst_213 = arith.constant dense<0.000000e+00> : vector<32x16xf32>
    %410 = tpu.matmul %409, %306, %cst_213 {dimension_numbers = #tpu.dot_dimension_numbers<[1], [0], [0], [1], [0, 0, 1, 1], [], []>} : vector<32x32xf32>, vector<32x16xf32>, vector<32x16xf32> -> vector<32x16xf32>
    %411 = vector.broadcast %307 : vector<1x16xf32> to vector<32x16xf32>
    %412 = arith.addf %410, %411 : vector<32x16xf32>
    %cst_214 = arith.constant dense<0.000000e+00> : vector<32xf32>
    %413 = vector.multi_reduction <add>, %412, %cst_214 [1] : vector<32x16xf32> to vector<32xf32>
    %414 = vector.shape_cast %413 : vector<32xf32> to vector<32x1xf32>
    %cst_215 = arith.constant 1.600000e+01 : f32
    %415 = vector.broadcast %cst_215 : f32 to vector<32x1xf32>
    %416 = arith.divf %414, %415 : vector<32x1xf32>
    %417 = vector.broadcast %416 : vector<32x1xf32> to vector<32x16xf32>
    %418 = arith.subf %412, %417 : vector<32x16xf32>
    %419 = arith.mulf %418, %418 : vector<32x16xf32>
    %cst_216 = arith.constant dense<0.000000e+00> : vector<32xf32>
    %420 = vector.multi_reduction <add>, %419, %cst_216 [1] : vector<32x16xf32> to vector<32xf32>
    %421 = vector.shape_cast %420 : vector<32xf32> to vector<32x1xf32>
    %cst_217 = arith.constant 1.600000e+01 : f32
    %422 = vector.broadcast %cst_217 : f32 to vector<32x1xf32>
    %423 = arith.divf %421, %422 : vector<32x1xf32>
    %cst_218 = arith.constant 9.99999974E-6 : f32
    %424 = vector.broadcast %cst_218 : f32 to vector<32x1xf32>
    %425 = arith.addf %423, %424 : vector<32x1xf32>
    %426 = math.rsqrt %425 : vector<32x1xf32>
    %427 = vector.broadcast %426 : vector<32x1xf32> to vector<32x16xf32>
    %428 = arith.mulf %418, %427 : vector<32x16xf32>
    %429 = vector.broadcast %308 : vector<1x16xf32> to vector<32x16xf32>
    %430 = arith.mulf %428, %429 : vector<32x16xf32>
    %431 = vector.broadcast %309 : vector<1x16xf32> to vector<32x16xf32>
    %432 = arith.addf %430, %431 : vector<32x16xf32>
    %cst_219 = arith.constant 0.000000e+00 : f32
    %433 = vector.broadcast %cst_219 : f32 to vector<32x16xf32>
    %434 = arith.maximumf %432, %433 : vector<32x16xf32>
    %c0_220 = arith.constant 0 : index
    %c0_221 = arith.constant 0 : index
    %435 = vector.load %arg60[%c0_220, %c0_221] : memref<128x64xf32, #tpu.memory_space<vmem>>, vector<128x64xf32>
    %c0_222 = arith.constant 0 : index
    %c0_223 = arith.constant 0 : index
    %436 = vector.load %arg61[%c0_222, %c0_223] : memref<1x64xf32, #tpu.memory_space<vmem>>, vector<1x64xf32>
    %c0_224 = arith.constant 0 : index
    %c0_225 = arith.constant 0 : index
    %437 = vector.load %arg62[%c0_224, %c0_225] : memref<1x64xf32, #tpu.memory_space<vmem>>, vector<1x64xf32>
    %c0_226 = arith.constant 0 : index
    %c0_227 = arith.constant 0 : index
    %438 = vector.load %arg63[%c0_226, %c0_227] : memref<1x64xf32, #tpu.memory_space<vmem>>, vector<1x64xf32>
    %c0_228 = arith.constant 0 : index
    %c0_229 = arith.constant 0 : index
    %439 = vector.load %arg64[%c0_228, %c0_229] : memref<1x64xf32, #tpu.memory_space<vmem>>, vector<1x64xf32>
    %c0_230 = arith.constant 0 : index
    %c0_231 = arith.constant 0 : index
    %440 = vector.load %arg65[%c0_230, %c0_231] : memref<1x64xf32, #tpu.memory_space<vmem>>, vector<1x64xf32>
    %cst_232 = arith.constant 0.000000e+00 : f32
    %441 = vector.broadcast %cst_232 : f32 to vector<4x64xf32>
    %442 = vector.extract_strided_slice %434 {offsets = [0, 0], sizes = [4, 16], strides = [1, 1]} : vector<32x16xf32> to vector<4x16xf32>
    %443 = vector.extract_strided_slice %435 {offsets = [0, 0], sizes = [16, 64], strides = [1, 1]} : vector<128x64xf32> to vector<16x64xf32>
    %cst_233 = arith.constant dense<0.000000e+00> : vector<4x64xf32>
    %444 = tpu.matmul %442, %443, %cst_233 {dimension_numbers = #tpu.dot_dimension_numbers<[1], [0], [0], [1], [0, 0, 1, 1], [], []>} : vector<4x16xf32>, vector<16x64xf32>, vector<4x64xf32> -> vector<4x64xf32>
    %445 = arith.addf %441, %444 : vector<4x64xf32>
    %446 = vector.extract_strided_slice %434 {offsets = [4, 0], sizes = [4, 16], strides = [1, 1]} : vector<32x16xf32> to vector<4x16xf32>
    %447 = vector.extract_strided_slice %435 {offsets = [16, 0], sizes = [16, 64], strides = [1, 1]} : vector<128x64xf32> to vector<16x64xf32>
    %cst_234 = arith.constant dense<0.000000e+00> : vector<4x64xf32>
    %448 = tpu.matmul %446, %447, %cst_234 {dimension_numbers = #tpu.dot_dimension_numbers<[1], [0], [0], [1], [0, 0, 1, 1], [], []>} : vector<4x16xf32>, vector<16x64xf32>, vector<4x64xf32> -> vector<4x64xf32>
    %449 = arith.addf %445, %448 : vector<4x64xf32>
    %450 = vector.extract_strided_slice %434 {offsets = [8, 0], sizes = [4, 16], strides = [1, 1]} : vector<32x16xf32> to vector<4x16xf32>
    %451 = vector.extract_strided_slice %435 {offsets = [32, 0], sizes = [16, 64], strides = [1, 1]} : vector<128x64xf32> to vector<16x64xf32>
    %cst_235 = arith.constant dense<0.000000e+00> : vector<4x64xf32>
    %452 = tpu.matmul %450, %451, %cst_235 {dimension_numbers = #tpu.dot_dimension_numbers<[1], [0], [0], [1], [0, 0, 1, 1], [], []>} : vector<4x16xf32>, vector<16x64xf32>, vector<4x64xf32> -> vector<4x64xf32>
    %453 = arith.addf %449, %452 : vector<4x64xf32>
    %454 = vector.extract_strided_slice %434 {offsets = [12, 0], sizes = [4, 16], strides = [1, 1]} : vector<32x16xf32> to vector<4x16xf32>
    %455 = vector.extract_strided_slice %435 {offsets = [48, 0], sizes = [16, 64], strides = [1, 1]} : vector<128x64xf32> to vector<16x64xf32>
    %cst_236 = arith.constant dense<0.000000e+00> : vector<4x64xf32>
    %456 = tpu.matmul %454, %455, %cst_236 {dimension_numbers = #tpu.dot_dimension_numbers<[1], [0], [0], [1], [0, 0, 1, 1], [], []>} : vector<4x16xf32>, vector<16x64xf32>, vector<4x64xf32> -> vector<4x64xf32>
    %457 = arith.addf %453, %456 : vector<4x64xf32>
    %458 = vector.extract_strided_slice %434 {offsets = [16, 0], sizes = [4, 16], strides = [1, 1]} : vector<32x16xf32> to vector<4x16xf32>
    %459 = vector.extract_strided_slice %435 {offsets = [64, 0], sizes = [16, 64], strides = [1, 1]} : vector<128x64xf32> to vector<16x64xf32>
    %cst_237 = arith.constant dense<0.000000e+00> : vector<4x64xf32>
    %460 = tpu.matmul %458, %459, %cst_237 {dimension_numbers = #tpu.dot_dimension_numbers<[1], [0], [0], [1], [0, 0, 1, 1], [], []>} : vector<4x16xf32>, vector<16x64xf32>, vector<4x64xf32> -> vector<4x64xf32>
    %461 = arith.addf %457, %460 : vector<4x64xf32>
    %462 = vector.extract_strided_slice %434 {offsets = [20, 0], sizes = [4, 16], strides = [1, 1]} : vector<32x16xf32> to vector<4x16xf32>
    %463 = vector.extract_strided_slice %435 {offsets = [80, 0], sizes = [16, 64], strides = [1, 1]} : vector<128x64xf32> to vector<16x64xf32>
    %cst_238 = arith.constant dense<0.000000e+00> : vector<4x64xf32>
    %464 = tpu.matmul %462, %463, %cst_238 {dimension_numbers = #tpu.dot_dimension_numbers<[1], [0], [0], [1], [0, 0, 1, 1], [], []>} : vector<4x16xf32>, vector<16x64xf32>, vector<4x64xf32> -> vector<4x64xf32>
    %465 = arith.addf %461, %464 : vector<4x64xf32>
    %466 = vector.extract_strided_slice %434 {offsets = [24, 0], sizes = [4, 16], strides = [1, 1]} : vector<32x16xf32> to vector<4x16xf32>
    %467 = vector.extract_strided_slice %435 {offsets = [96, 0], sizes = [16, 64], strides = [1, 1]} : vector<128x64xf32> to vector<16x64xf32>
    %cst_239 = arith.constant dense<0.000000e+00> : vector<4x64xf32>
    %468 = tpu.matmul %466, %467, %cst_239 {dimension_numbers = #tpu.dot_dimension_numbers<[1], [0], [0], [1], [0, 0, 1, 1], [], []>} : vector<4x16xf32>, vector<16x64xf32>, vector<4x64xf32> -> vector<4x64xf32>
    %469 = arith.addf %465, %468 : vector<4x64xf32>
    %470 = vector.extract_strided_slice %434 {offsets = [28, 0], sizes = [4, 16], strides = [1, 1]} : vector<32x16xf32> to vector<4x16xf32>
    %471 = vector.extract_strided_slice %435 {offsets = [112, 0], sizes = [16, 64], strides = [1, 1]} : vector<128x64xf32> to vector<16x64xf32>
    %cst_240 = arith.constant dense<0.000000e+00> : vector<4x64xf32>
    %472 = tpu.matmul %470, %471, %cst_240 {dimension_numbers = #tpu.dot_dimension_numbers<[1], [0], [0], [1], [0, 0, 1, 1], [], []>} : vector<4x16xf32>, vector<16x64xf32>, vector<4x64xf32> -> vector<4x64xf32>
    %473 = arith.addf %469, %472 : vector<4x64xf32>
    %474 = vector.broadcast %436 : vector<1x64xf32> to vector<4x64xf32>
    %475 = arith.addf %473, %474 : vector<4x64xf32>
    %476 = vector.broadcast %439 : vector<1x64xf32> to vector<4x64xf32>
    %477 = arith.subf %475, %476 : vector<4x64xf32>
    %cst_241 = arith.constant 9.99999974E-6 : f32
    %478 = vector.broadcast %cst_241 : f32 to vector<1x64xf32>
    %479 = arith.addf %440, %478 : vector<1x64xf32>
    %480 = math.rsqrt %479 : vector<1x64xf32>
    %481 = vector.broadcast %480 : vector<1x64xf32> to vector<4x64xf32>
    %482 = arith.mulf %477, %481 : vector<4x64xf32>
    %483 = vector.broadcast %437 : vector<1x64xf32> to vector<4x64xf32>
    %484 = arith.mulf %482, %483 : vector<4x64xf32>
    %485 = vector.broadcast %438 : vector<1x64xf32> to vector<4x64xf32>
    %486 = arith.addf %484, %485 : vector<4x64xf32>
    %cst_242 = arith.constant 0.000000e+00 : f32
    %487 = vector.broadcast %cst_242 : f32 to vector<4x64xf32>
    %488 = arith.maximumf %486, %487 : vector<4x64xf32>
    %c0_243 = arith.constant 0 : index
    %c0_244 = arith.constant 0 : index
    %489 = vector.load %arg66[%c0_243, %c0_244] : memref<4x64xf32, #tpu.memory_space<vmem>>, vector<4x64xf32>
    tpu.vector_store %arg66[%c0_243, %c0_244], %488 {strides = array<i32>} : memref<4x64xf32, #tpu.memory_space<vmem>>, vector<4x64xf32>,
    return
  }
}

</mosaic_0001>

<llo_original>
// kernel: self_attn_block_forward.1
$region0: #{self_attn_block_forward.1}
  #allocation0 [shape = 'u32[]', space=smem, size = 0x4, offset = 0x4, fixed_abs, tag = 'smem constant byte address 0x4 - core index']
  #allocation1 [shape = 'u32[72,128]{1,0:T(1,128)}', space=vmem, size = 0x9000, scoped, tag = 'internal scratch']
  %s0 = inlined_call_operand.smem [shape: u32[67], index: -1, kind: input, shape index: {}]
  %s1 = sld [smem:[%s0]]
  %s2 = scalar_lea.smem %s0, 1
  %s3 = sld [smem:[%s2]]
  %s4 = scalar_lea.smem %s0, 2
  %s5 = sld [smem:[%s4]]
  %s6 = scalar_lea.smem %s0, 3
  %s7 = sld [smem:[%s6]]
  %s8 = scalar_lea.smem %s0, 4
  %s9 = sld [smem:[%s8]]
  %s10 = scalar_lea.smem %s0, 5
  %s11 = sld [smem:[%s10]]
  %s12 = scalar_lea.smem %s0, 6
  %s13 = sld [smem:[%s12]]
  %s14 = scalar_lea.smem %s0, 7
  %s15 = sld [smem:[%s14]]
  %s16 = scalar_lea.smem %s0, 8
  %s17 = sld [smem:[%s16]]
  %s18 = scalar_lea.smem %s0, 9
  %s19 = sld [smem:[%s18]]
  %s20 = scalar_lea.smem %s0, 10
  %s21 = sld [smem:[%s20]]
  %s22 = scalar_lea.smem %s0, 11
  %s23 = sld [smem:[%s22]]
  %s24 = scalar_lea.smem %s0, 12
  %s25 = sld [smem:[%s24]]
  %s26 = scalar_lea.smem %s0, 13
  %s27 = sld [smem:[%s26]]
  %s28 = scalar_lea.smem %s0, 14
  %s29 = sld [smem:[%s28]]
  %s30 = scalar_lea.smem %s0, 15
  %s31 = sld [smem:[%s30]]
  %s32 = scalar_lea.smem %s0, 16
  %s33 = sld [smem:[%s32]]
  %s34 = scalar_lea.smem %s0, 17
  %s35 = sld [smem:[%s34]]
  %s36 = scalar_lea.smem %s0, 18
  %s37 = sld [smem:[%s36]]
  %s38 = scalar_lea.smem %s0, 19
  %s39 = sld [smem:[%s38]]
  %s40 = scalar_lea.smem %s0, 20
  %s41 = sld [smem:[%s40]]
  %s42 = scalar_lea.smem %s0, 21
  %s43 = sld [smem:[%s42]]
  %s44 = scalar_lea.smem %s0, 22
  %s45 = sld [smem:[%s44]]
  %s46 = scalar_lea.smem %s0, 23
  %s47 = sld [smem:[%s46]]
  %s48 = scalar_lea.smem %s0, 24
  %s49 = sld [smem:[%s48]]
  %s50 = scalar_lea.smem %s0, 25
  %s51 = sld [smem:[%s50]]
  %s52 = scalar_lea.smem %s0, 26
  %s53 = sld [smem:[%s52]]
  %s54 = scalar_lea.smem %s0, 27
  %s55 = sld [smem:[%s54]]
  %s56 = scalar_lea.smem %s0, 28
  %s57 = sld [smem:[%s56]]
  %s58 = scalar_lea.smem %s0, 29
  %s59 = sld [smem:[%s58]]
  %s60 = scalar_lea.smem %s0, 30
  %s61 = sld [smem:[%s60]]
  %s62 = scalar_lea.smem %s0, 31
  %s63 = sld [smem:[%s62]]
  %s64 = scalar_lea.smem %s0, 32
  %s65 = sld [smem:[%s64]]
  %s66 = scalar_lea.smem %s0, 33
  %s67 = sld [smem:[%s66]]
  %s68 = scalar_lea.smem %s0, 34
  %s69 = sld [smem:[%s68]]
  %s70 = scalar_lea.smem %s0, 35
  %s71 = sld [smem:[%s70]]
  %s72 = scalar_lea.smem %s0, 36
  %s73 = sld [smem:[%s72]]
  %s74 = scalar_lea.smem %s0, 37
  %s75 = sld [smem:[%s74]]
  %s76 = scalar_lea.smem %s0, 38
  %s77 = sld [smem:[%s76]]
  %s78 = scalar_lea.smem %s0, 39
  %s79 = sld [smem:[%s78]]
  %s80 = scalar_lea.smem %s0, 40
  %s81 = sld [smem:[%s80]]
  %s82 = scalar_lea.smem %s0, 41
  %s83 = sld [smem:[%s82]]
  %s84 = scalar_lea.smem %s0, 42
  %s85 = sld [smem:[%s84]]
  %s86 = scalar_lea.smem %s0, 43
  %s87 = sld [smem:[%s86]]
  %s88 = scalar_lea.smem %s0, 44
  %s89 = sld [smem:[%s88]]
  %s90 = scalar_lea.smem %s0, 45
  %s91 = sld [smem:[%s90]]
  %s92 = scalar_lea.smem %s0, 46
  %s93 = sld [smem:[%s92]]
  %s94 = scalar_lea.smem %s0, 47
  %s95 = sld [smem:[%s94]]
  %s96 = scalar_lea.smem %s0, 48
  %s97 = sld [smem:[%s96]]
  %s98 = scalar_lea.smem %s0, 49
  %s99 = sld [smem:[%s98]]
  %s100 = scalar_lea.smem %s0, 50
  %s101 = sld [smem:[%s100]]
  %s102 = scalar_lea.smem %s0, 51
  %s103 = sld [smem:[%s102]]
  %s104 = scalar_lea.smem %s0, 52
  %s105 = sld [smem:[%s104]]
  %s106 = scalar_lea.smem %s0, 53
  %s107 = sld [smem:[%s106]]
  %s108 = scalar_lea.smem %s0, 54
  %s109 = sld [smem:[%s108]]
  %s110 = scalar_lea.smem %s0, 55
  %s111 = sld [smem:[%s110]]
  %s112 = scalar_lea.smem %s0, 56
  %s113 = sld [smem:[%s112]]
  %s114 = scalar_lea.smem %s0, 57
  %s115 = sld [smem:[%s114]]
  %s116 = scalar_lea.smem %s0, 58
  %s117 = sld [smem:[%s116]]
  %s118 = scalar_lea.smem %s0, 59
  %s119 = sld [smem:[%s118]]
  %s120 = scalar_lea.smem %s0, 60
  %s121 = sld [smem:[%s120]]
  %s122 = scalar_lea.smem %s0, 61
  %s123 = sld [smem:[%s122]]
  %s124 = scalar_lea.smem %s0, 62
  %s125 = sld [smem:[%s124]]
  %s126 = scalar_lea.smem %s0, 63
  %s127 = sld [smem:[%s126]]
  %s128 = scalar_lea.smem %s0, 64
  %s129 = sld [smem:[%s128]]
  %s130 = scalar_lea.smem %s0, 65
  %s131 = sld [smem:[%s130]]
  %s132 = scalar_lea.smem %s0, 66
  %s133 = sld [smem:[%s132]]
  %s134 = sld [smem:[#allocation0]]
  $region318: #{self_attn_block_forward.1} parent=0
    _
  %s136 = ssub.s32 1, %s134
  %s137 = scalar_select 0, %s136, %s134
  $region1: #{self_attn_block_forward.1} parent=0
    #allocation2 [shape = 'u8[512]{0}', space=vmem, size = 0x400, scoped, tag = 'input window, operand 53, single buffered']
    #allocation3 [shape = 's32[1]{0}', space=sflag, size = 0x4, scoped, tag = 'scoped memory for self_attn_block_forward.1']
    #allocation4 [shape = 's32[1]{0}', space=sflag, size = 0x4, scoped, tag = 'scoped memory for self_attn_block_forward.1']
    #allocation5 [shape = 'u8[512]{0}', space=vmem, size = 0x400, scoped, tag = 'input window, operand 54, single buffered']
    #allocation6 [shape = 's32[1]{0}', space=sflag, size = 0x4, scoped, tag = 'scoped memory for self_attn_block_forward.1']
    #allocation7 [shape = 'u8[512]{0}', space=vmem, size = 0x400, scoped, tag = 'input window, operand 55, single buffered']
    #allocation8 [shape = 'u8[512]{0}', space=vmem, size = 0x400, scoped, tag = 'input window, operand 57, single buffered']
    #allocation9 [shape = 's32[1]{0}', space=sflag, size = 0x4, scoped, tag = 'scoped memory for self_attn_block_forward.1']
    #allocation10 [shape = 'u8[512]{0}', space=vmem, size = 0x400, scoped, tag = 'input window, operand 58, single buffered']
    #allocation11 [shape = 'u8[512]{0}', space=vmem, size = 0x400, scoped, tag = 'input window, operand 59, single buffered']
    #allocation12 [shape = 's32[1]{0}', space=sflag, size = 0x4, scoped, tag = 'scoped memory for self_attn_block_forward.1']
    #allocation13 [shape = 'u8[512]{0}', space=vmem, size = 0x400, scoped, tag = 'input window, operand 61, single buffered']
    #allocation14 [shape = 'u8[512]{0}', space=vmem, size = 0x400, scoped, tag = 'input window, operand 62, single buffered']
    #allocation15 [shape = 's32[1]{0}', space=sflag, size = 0x4, scoped, tag = 'scoped memory for self_attn_block_forward.1']
    #allocation16 [shape = 'u8[512]{0}', space=vmem, size = 0x400, scoped, tag = 'input window, operand 63, single buffered']
    #allocation17 [shape = 'u8[512]{0}', space=vmem, size = 0x400, scoped, tag = 'input window, operand 64, single buffered']
    #allocation18 [shape = 's32[1]{0}', space=sflag, size = 0x4, scoped, tag = 'scoped memory for self_attn_block_forward.1']
    #allocation19 [shape = 'u8[512]{0}', space=vmem, size = 0x400, scoped, tag = 'input window, operand 65, single buffered']
    #allocation20 [shape = 'u8[2048]{0}', space=vmem, size = 0x800, scoped, tag = 'output window, operand 0, single buffered']
    %138 = vsyncpa [#allocation3], 0
    %139 = vsyncpa [#allocation6], 0
    %140 = vsyncpa [#allocation9], 0
    %141 = vsyncpa [#allocation12], 0
    %142 = vsyncpa [#allocation15], 0
    %143 = vsyncpa [#allocation18], 0
    %144 = vsyncpa [#allocation4], 0
    // Predicated region
    $region2: #{self_attn_block_forward.1} parent=1 // pred_check
      _
    $region3: #{self_attn_block_forward.1} parent=1 // pred_check_branch
      %146 = sbr.rel (0) target = $region5
    $region4: #{self_attn_block_forward.1} parent=1 // pred_region
      _
    $region5: #{self_attn_block_forward.1} parent=1 // pred_fallthru
      _
    // Predicated region
    $region6: #{self_attn_block_forward.1} parent=1 // pred_check
      _
    $region7: #{self_attn_block_forward.1} parent=1 // pred_check_branch
      %148 = sbr.rel (0) target = $region9
    $region8: #{self_attn_block_forward.1} parent=1 // pred_region
      _
    $region9: #{self_attn_block_forward.1} parent=1 // pred_fallthru
      _
    // Predicated region
    $region10: #{self_attn_block_forward.1} parent=1 // pred_check
      _
    $region11: #{self_attn_block_forward.1} parent=1 // pred_check_branch
      %150 = sbr.rel (0) target = $region13
    $region12: #{self_attn_block_forward.1} parent=1 // pred_region
      _
    $region13: #{self_attn_block_forward.1} parent=1 // pred_fallthru
      _
    // Predicated region
    $region14: #{self_attn_block_forward.1} parent=1 // pred_check
      _
    $region15: #{self_attn_block_forward.1} parent=1 // pred_check_branch
      %152 = sbr.rel (0) target = $region17
    $region16: #{self_attn_block_forward.1} parent=1 // pred_region
      _
    $region17: #{self_attn_block_forward.1} parent=1 // pred_fallthru
      _
    // Predicated region
    $region18: #{self_attn_block_forward.1} parent=1 // pred_check
      _
    $region19: #{self_attn_block_forward.1} parent=1 // pred_check_branch
      %154 = sbr.rel (0) target = $region21
    $region20: #{self_attn_block_forward.1} parent=1 // pred_region
      _
    $region21: #{self_attn_block_forward.1} parent=1 // pred_fallthru
      _
    // Predicated region
    $region22: #{self_attn_block_forward.1} parent=1 // pred_check
      _
    $region23: #{self_attn_block_forward.1} parent=1 // pred_check_branch
      %156 = sbr.rel (0) target = $region25
    $region24: #{self_attn_block_forward.1} parent=1 // pred_region
      _
    $region25: #{self_attn_block_forward.1} parent=1 // pred_fallthru
      _
    // Predicated region
    $region26: #{self_attn_block_forward.1} parent=1 // pred_check
      _
    $region27: #{self_attn_block_forward.1} parent=1 // pred_check_branch
      %158 = sbr.rel (0) target = $region29
    $region28: #{self_attn_block_forward.1} parent=1 // pred_region
      _
    $region29: #{self_attn_block_forward.1} parent=1 // pred_fallthru
      _
    // Predicated region
    $region30: #{self_attn_block_forward.1} parent=1 // pred_check
      _
    $region31: #{self_attn_block_forward.1} parent=1 // pred_check_branch
      %160 = sbr.rel (0) target = $region33
    $region32: #{self_attn_block_forward.1} parent=1 // pred_region
      _
    $region33: #{self_attn_block_forward.1} parent=1 // pred_fallthru
      _
    // Predicated region
    $region34: #{self_attn_block_forward.1} parent=1 // pred_check
      _
    $region35: #{self_attn_block_forward.1} parent=1 // pred_check_branch
      %162 = sbr.rel (0) target = $region37
    $region36: #{self_attn_block_forward.1} parent=1 // pred_region
      _
    $region37: #{self_attn_block_forward.1} parent=1 // pred_fallthru
      _
    // Predicated region
    $region38: #{self_attn_block_forward.1} parent=1 // pred_check
      _
    $region39: #{self_attn_block_forward.1} parent=1 // pred_check_branch
      %164 = sbr.rel (0) target = $region41
    $region40: #{self_attn_block_forward.1} parent=1 // pred_region
      _
    $region41: #{self_attn_block_forward.1} parent=1 // pred_fallthru
      _
    // Predicated region
    $region42: #{self_attn_block_forward.1} parent=1 // pred_check
      _
    $region43: #{self_attn_block_forward.1} parent=1 // pred_check_branch
      %166 = sbr.rel (0) target = $region45
    $region44: #{self_attn_block_forward.1} parent=1 // pred_region
      _
    $region45: #{self_attn_block_forward.1} parent=1 // pred_fallthru
      _
    // Predicated region
    $region46: #{self_attn_block_forward.1} parent=1 // pred_check
      _
    $region47: #{self_attn_block_forward.1} parent=1 // pred_check_branch
      %168 = sbr.rel (0) target = $region49
    $region48: #{self_attn_block_forward.1} parent=1 // pred_region
      _
    $region49: #{self_attn_block_forward.1} parent=1 // pred_fallthru
      _
    // Predicated region
    $region50: #{self_attn_block_forward.1} parent=1 // pred_check
      _
    $region51: #{self_attn_block_forward.1} parent=1 // pred_check_branch
      %170 = sbr.rel (0) target = $region53
    $region52: #{self_attn_block_forward.1} parent=1 // pred_region
      _
    $region53: #{self_attn_block_forward.1} parent=1 // pred_fallthru
      _
    // Predicated region
    $region54: #{self_attn_block_forward.1} parent=1 // pred_check
      _
    $region55: #{self_attn_block_forward.1} parent=1 // pred_check_branch
      %172 = sbr.rel (0) target = $region57
    $region56: #{self_attn_block_forward.1} parent=1 // pred_region
      _
    $region57: #{self_attn_block_forward.1} parent=1 // pred_fallthru
      _
    // Predicated region
    $region58: #{self_attn_block_forward.1} parent=1 // pred_check
      _
    $region59: #{self_attn_block_forward.1} parent=1 // pred_check_branch
      %174 = sbr.rel (0) target = $region61
    $region60: #{self_attn_block_forward.1} parent=1 // pred_region
      _
    $region61: #{self_attn_block_forward.1} parent=1 // pred_fallthru
      _
    // Predicated region
    $region62: #{self_attn_block_forward.1} parent=1 // pred_check
      _
    $region63: #{self_attn_block_forward.1} parent=1 // pred_check_branch
      %176 = sbr.rel (0) target = $region65
    $region64: #{self_attn_block_forward.1} parent=1 // pred_region
      _
    $region65: #{self_attn_block_forward.1} parent=1 // pred_fallthru
      _
    // Predicated region
    $region66: #{self_attn_block_forward.1} parent=1 // pred_check
      _
    $region67: #{self_attn_block_forward.1} parent=1 // pred_check_branch
      %178 = sbr.rel (0) target = $region69
    $region68: #{self_attn_block_forward.1} parent=1 // pred_region
      _
    $region69: #{self_attn_block_forward.1} parent=1 // pred_fallthru
      _
    // Predicated region
    $region70: #{self_attn_block_forward.1} parent=1 // pred_check
      _
    $region71: #{self_attn_block_forward.1} parent=1 // pred_check_branch
      %180 = sbr.rel (0) target = $region73
    $region72: #{self_attn_block_forward.1} parent=1 // pred_region
      _
    $region73: #{self_attn_block_forward.1} parent=1 // pred_fallthru
      _
    // Predicated region
    $region74: #{self_attn_block_forward.1} parent=1 // pred_check
      _
    $region75: #{self_attn_block_forward.1} parent=1 // pred_check_branch
      %182 = sbr.rel (0) target = $region77
    $region76: #{self_attn_block_forward.1} parent=1 // pred_region
      _
    $region77: #{self_attn_block_forward.1} parent=1 // pred_fallthru
      _
    // Predicated region
    $region78: #{self_attn_block_forward.1} parent=1 // pred_check
      _
    $region79: #{self_attn_block_forward.1} parent=1 // pred_check_branch
      %184 = sbr.rel (0) target = $region81
    $region80: #{self_attn_block_forward.1} parent=1 // pred_region
      _
    $region81: #{self_attn_block_forward.1} parent=1 // pred_fallthru
      _
    // Predicated region
    $region82: #{self_attn_block_forward.1} parent=1 // pred_check
      _
    $region83: #{self_attn_block_forward.1} parent=1 // pred_check_branch
      %186 = sbr.rel (0) target = $region85
    $region84: #{self_attn_block_forward.1} parent=1 // pred_region
      _
    $region85: #{self_attn_block_forward.1} parent=1 // pred_fallthru
      _
    // Predicated region
    $region86: #{self_attn_block_forward.1} parent=1 // pred_check
      _
    $region87: #{self_attn_block_forward.1} parent=1 // pred_check_branch
      %188 = sbr.rel (0) target = $region89
    $region88: #{self_attn_block_forward.1} parent=1 // pred_region
      _
    $region89: #{self_attn_block_forward.1} parent=1 // pred_fallthru
      _
    // Predicated region
    $region90: #{self_attn_block_forward.1} parent=1 // pred_check
      _
    $region91: #{self_attn_block_forward.1} parent=1 // pred_check_branch
      %190 = sbr.rel (0) target = $region93
    $region92: #{self_attn_block_forward.1} parent=1 // pred_region
      _
    $region93: #{self_attn_block_forward.1} parent=1 // pred_fallthru
      _
    // Predicated region
    $region94: #{self_attn_block_forward.1} parent=1 // pred_check
      _
    $region95: #{self_attn_block_forward.1} parent=1 // pred_check_branch
      %192 = sbr.rel (0) target = $region97
    $region96: #{self_attn_block_forward.1} parent=1 // pred_region
      _
    $region97: #{self_attn_block_forward.1} parent=1 // pred_fallthru
      _
    // Predicated region
    $region98: #{self_attn_block_forward.1} parent=1 // pred_check
      _
    $region99: #{self_attn_block_forward.1} parent=1 // pred_check_branch
      %194 = sbr.rel (0) target = $region101
    $region100: #{self_attn_block_forward.1} parent=1 // pred_region
      _
    $region101: #{self_attn_block_forward.1} parent=1 // pred_fallthru
      _
    // Predicated region
    $region102: #{self_attn_block_forward.1} parent=1 // pred_check
      _
    $region103: #{self_attn_block_forward.1} parent=1 // pred_check_branch
      %196 = sbr.rel (0) target = $region105
    $region104: #{self_attn_block_forward.1} parent=1 // pred_region
      _
    $region105: #{self_attn_block_forward.1} parent=1 // pred_fallthru
      _
    // Predicated region
    $region106: #{self_attn_block_forward.1} parent=1 // pred_check
      _
    $region107: #{self_attn_block_forward.1} parent=1 // pred_check_branch
      %198 = sbr.rel (0) target = $region109
    $region108: #{self_attn_block_forward.1} parent=1 // pred_region
      _
    $region109: #{self_attn_block_forward.1} parent=1 // pred_fallthru
      _
    // Predicated region
    $region110: #{self_attn_block_forward.1} parent=1 // pred_check
      _
    $region111: #{self_attn_block_forward.1} parent=1 // pred_check_branch
      %200 = sbr.rel (0) target = $region113
    $region112: #{self_attn_block_forward.1} parent=1 // pred_region
      _
    $region113: #{self_attn_block_forward.1} parent=1 // pred_fallthru
      _
    // Predicated region
    $region114: #{self_attn_block_forward.1} parent=1 // pred_check
      _
    $region115: #{self_attn_block_forward.1} parent=1 // pred_check_branch
      %202 = sbr.rel (0) target = $region117
    $region116: #{self_attn_block_forward.1} parent=1 // pred_region
      _
    $region117: #{self_attn_block_forward.1} parent=1 // pred_fallthru
      _
    // Predicated region
    $region118: #{self_attn_block_forward.1} parent=1 // pred_check
      _
    $region119: #{self_attn_block_forward.1} parent=1 // pred_check_branch
      %204 = sbr.rel (0) target = $region121
    $region120: #{self_attn_block_forward.1} parent=1 // pred_region
      _
    $region121: #{self_attn_block_forward.1} parent=1 // pred_fallthru
      _
    // Predicated region
    $region122: #{self_attn_block_forward.1} parent=1 // pred_check
      _
    $region123: #{self_attn_block_forward.1} parent=1 // pred_check_branch
      %206 = sbr.rel (0) target = $region125
    $region124: #{self_attn_block_forward.1} parent=1 // pred_region
      _
    $region125: #{self_attn_block_forward.1} parent=1 // pred_fallthru
      _
    // Predicated region
    $region126: #{self_attn_block_forward.1} parent=1 // pred_check
      _
    $region127: #{self_attn_block_forward.1} parent=1 // pred_check_branch
      %208 = sbr.rel (0) target = $region129
    $region128: #{self_attn_block_forward.1} parent=1 // pred_region
      _
    $region129: #{self_attn_block_forward.1} parent=1 // pred_fallthru
      _
    // Predicated region
    $region130: #{self_attn_block_forward.1} parent=1 // pred_check
      _
    $region131: #{self_attn_block_forward.1} parent=1 // pred_check_branch
      %210 = sbr.rel (0) target = $region133
    $region132: #{self_attn_block_forward.1} parent=1 // pred_region
      _
    $region133: #{self_attn_block_forward.1} parent=1 // pred_fallthru
      _
    // Predicated region
    $region134: #{self_attn_block_forward.1} parent=1 // pred_check
      _
    $region135: #{self_attn_block_forward.1} parent=1 // pred_check_branch
      %212 = sbr.rel (0) target = $region137
    $region136: #{self_attn_block_forward.1} parent=1 // pred_region
      _
    $region137: #{self_attn_block_forward.1} parent=1 // pred_fallthru
      _
    // Predicated region
    $region138: #{self_attn_block_forward.1} parent=1 // pred_check
      _
    $region139: #{self_attn_block_forward.1} parent=1 // pred_check_branch
      %214 = sbr.rel (0) target = $region141
    $region140: #{self_attn_block_forward.1} parent=1 // pred_region
      _
    $region141: #{self_attn_block_forward.1} parent=1 // pred_fallthru
      _
    // Predicated region
    $region142: #{self_attn_block_forward.1} parent=1 // pred_check
      _
    $region143: #{self_attn_block_forward.1} parent=1 // pred_check_branch
      %216 = sbr.rel (0) target = $region145
    $region144: #{self_attn_block_forward.1} parent=1 // pred_region
      _
    $region145: #{self_attn_block_forward.1} parent=1 // pred_fallthru
      _
    // Predicated region
    $region146: #{self_attn_block_forward.1} parent=1 // pred_check
      _
    $region147: #{self_attn_block_forward.1} parent=1 // pred_check_branch
      %218 = sbr.rel (0) target = $region149
    $region148: #{self_attn_block_forward.1} parent=1 // pred_region
      _
    $region149: #{self_attn_block_forward.1} parent=1 // pred_fallthru
      _
    // Predicated region
    $region150: #{self_attn_block_forward.1} parent=1 // pred_check
      _
    $region151: #{self_attn_block_forward.1} parent=1 // pred_check_branch
      %220 = sbr.rel (0) target = $region153
    $region152: #{self_attn_block_forward.1} parent=1 // pred_region
      _
    $region153: #{self_attn_block_forward.1} parent=1 // pred_fallthru
      _
    // Predicated region
    $region154: #{self_attn_block_forward.1} parent=1 // pred_check
      _
    $region155: #{self_attn_block_forward.1} parent=1 // pred_check_branch
      %222 = sbr.rel (0) target = $region157
    $region156: #{self_attn_block_forward.1} parent=1 // pred_region
      _
    $region157: #{self_attn_block_forward.1} parent=1 // pred_fallthru
      _
    // Predicated region
    $region158: #{self_attn_block_forward.1} parent=1 // pred_check
      _
    $region159: #{self_attn_block_forward.1} parent=1 // pred_check_branch
      %224 = sbr.rel (0) target = $region161
    $region160: #{self_attn_block_forward.1} parent=1 // pred_region
      _
    $region161: #{self_attn_block_forward.1} parent=1 // pred_fallthru
      _
    // Predicated region
    $region162: #{self_attn_block_forward.1} parent=1 // pred_check
      _
    $region163: #{self_attn_block_forward.1} parent=1 // pred_check_branch
      %226 = sbr.rel (0) target = $region165
    $region164: #{self_attn_block_forward.1} parent=1 // pred_region
      _
    $region165: #{self_attn_block_forward.1} parent=1 // pred_fallthru
      _
    // Predicated region
    $region166: #{self_attn_block_forward.1} parent=1 // pred_check
      _
    $region167: #{self_attn_block_forward.1} parent=1 // pred_check_branch
      %228 = sbr.rel (0) target = $region169
    $region168: #{self_attn_block_forward.1} parent=1 // pred_region
      _
    $region169: #{self_attn_block_forward.1} parent=1 // pred_fallthru
      _
    // Predicated region
    $region170: #{self_attn_block_forward.1} parent=1 // pred_check
      _
    $region171: #{self_attn_block_forward.1} parent=1 // pred_check_branch
      %230 = sbr.rel (0) target = $region173
    $region172: #{self_attn_block_forward.1} parent=1 // pred_region
      _
    $region173: #{self_attn_block_forward.1} parent=1 // pred_fallthru
      _
    // Predicated region
    $region174: #{self_attn_block_forward.1} parent=1 // pred_check
      _
    $region175: #{self_attn_block_forward.1} parent=1 // pred_check_branch
      %232 = sbr.rel (0) target = $region177
    $region176: #{self_attn_block_forward.1} parent=1 // pred_region
      _
    $region177: #{self_attn_block_forward.1} parent=1 // pred_fallthru
      _
    // Predicated region
    $region178: #{self_attn_block_forward.1} parent=1 // pred_check
      _
    $region179: #{self_attn_block_forward.1} parent=1 // pred_check_branch
      %234 = sbr.rel (0) target = $region181
    $region180: #{self_attn_block_forward.1} parent=1 // pred_region
      _
    $region181: #{self_attn_block_forward.1} parent=1 // pred_fallthru
      _
    // Predicated region
    $region182: #{self_attn_block_forward.1} parent=1 // pred_check
      _
    $region183: #{self_attn_block_forward.1} parent=1 // pred_check_branch
      %236 = sbr.rel (0) target = $region185
    $region184: #{self_attn_block_forward.1} parent=1 // pred_region
      _
    $region185: #{self_attn_block_forward.1} parent=1 // pred_fallthru
      _
    // Predicated region
    $region186: #{self_attn_block_forward.1} parent=1 // pred_check
      _
    $region187: #{self_attn_block_forward.1} parent=1 // pred_check_branch
      %238 = sbr.rel (0) target = $region189
    $region188: #{self_attn_block_forward.1} parent=1 // pred_region
      _
    $region189: #{self_attn_block_forward.1} parent=1 // pred_fallthru
      _
    // Predicated region
    $region190: #{self_attn_block_forward.1} parent=1 // pred_check
      _
    $region191: #{self_attn_block_forward.1} parent=1 // pred_check_branch
      %240 = sbr.rel (0) target = $region193
    $region192: #{self_attn_block_forward.1} parent=1 // pred_region
      _
    $region193: #{self_attn_block_forward.1} parent=1 // pred_fallthru
      _
    // Predicated region
    $region194: #{self_attn_block_forward.1} parent=1 // pred_check
      _
    $region195: #{self_attn_block_forward.1} parent=1 // pred_check_branch
      %242 = sbr.rel (0) target = $region197
    $region196: #{self_attn_block_forward.1} parent=1 // pred_region
      _
    $region197: #{self_attn_block_forward.1} parent=1 // pred_fallthru
      _
    // Predicated region
    $region198: #{self_attn_block_forward.1} parent=1 // pred_check
      _
    $region199: #{self_attn_block_forward.1} parent=1 // pred_check_branch
      %244 = sbr.rel (0) target = $region201
    $region200: #{self_attn_block_forward.1} parent=1 // pred_region
      _
    $region201: #{self_attn_block_forward.1} parent=1 // pred_fallthru
      _
    // Predicated region
    $region202: #{self_attn_block_forward.1} parent=1 // pred_check
      _
    $region203: #{self_attn_block_forward.1} parent=1 // pred_check_branch
      %246 = sbr.rel (0) target = $region205
    $region204: #{self_attn_block_forward.1} parent=1 // pred_region
      _
    $region205: #{self_attn_block_forward.1} parent=1 // pred_fallthru
      _
    // Predicated region
    $region206: #{self_attn_block_forward.1} parent=1 // pred_check
      _
    $region207: #{self_attn_block_forward.1} parent=1 // pred_check_branch
      %248 = sbr.rel (0) target = $region209
    $region208: #{self_attn_block_forward.1} parent=1 // pred_region
      _
    $region209: #{self_attn_block_forward.1} parent=1 // pred_fallthru
      _
    // Predicated region
    $region210: #{self_attn_block_forward.1} parent=1 // pred_check
      _
    $region211: #{self_attn_block_forward.1} parent=1 // pred_check_branch
      %250 = sbr.rel (0) target = $region213
    $region212: #{self_attn_block_forward.1} parent=1 // pred_region
      _
    $region213: #{self_attn_block_forward.1} parent=1 // pred_fallthru
      _
    // Predicated region
    $region214: #{self_attn_block_forward.1} parent=1 // pred_check
      _
    $region215: #{self_attn_block_forward.1} parent=1 // pred_check_branch
      %252 = sbr.rel (0) target = $region217
    $region216: #{self_attn_block_forward.1} parent=1 // pred_region
      %254 = vsyncadd [#allocation3], 0
      %s256 = sshll.u32 %s107, 4
      %s257 = int_to_ptr.hbm [resolvable:$true] %s256
      %s258 = sshll.u32 [#allocation2], 4
      %s259 = int_to_ptr.vmem [resolvable:$true] %s258
      %261 = dma.hbm_to_vmem [thread:$0]  %s257, 16, %s259, [#allocation3]
    $region217: #{self_attn_block_forward.1} parent=1 // pred_fallthru
      _
    // Predicated region
    $region218: #{self_attn_block_forward.1} parent=1 // pred_check
      _
    $region219: #{self_attn_block_forward.1} parent=1 // pred_check_branch
      %263 = sbr.rel (0) target = $region221
    $region220: #{self_attn_block_forward.1} parent=1 // pred_region
      %265 = vsyncadd [#allocation6], 0
      %s267 = sshll.u32 %s109, 4
      %s268 = int_to_ptr.hbm [resolvable:$true] %s267
      %s269 = sshll.u32 [#allocation5], 4
      %s270 = int_to_ptr.vmem [resolvable:$true] %s269
      %272 = dma.hbm_to_vmem [thread:$0]  %s268, 16, %s270, [#allocation6]
    $region221: #{self_attn_block_forward.1} parent=1 // pred_fallthru
      _
    // Predicated region
    $region222: #{self_attn_block_forward.1} parent=1 // pred_check
      _
    $region223: #{self_attn_block_forward.1} parent=1 // pred_check_branch
      %274 = sbr.rel (0) target = $region225
    $region224: #{self_attn_block_forward.1} parent=1 // pred_region
      %276 = vsyncadd [#allocation6], 0
      %s278 = sshll.u32 %s111, 4
      %s279 = int_to_ptr.hbm [resolvable:$true] %s278
      %s280 = sshll.u32 [#allocation7], 4
      %s281 = int_to_ptr.vmem [resolvable:$true] %s280
      %283 = dma.hbm_to_vmem [thread:$0]  %s279, 16, %s281, [#allocation6]
    $region225: #{self_attn_block_forward.1} parent=1 // pred_fallthru
      _
    // Predicated region
    $region226: #{self_attn_block_forward.1} parent=1 // pred_check
      _
    $region227: #{self_attn_block_forward.1} parent=1 // pred_check_branch
      %285 = sbr.rel (0) target = $region229
    $region228: #{self_attn_block_forward.1} parent=1 // pred_region
      _
    $region229: #{self_attn_block_forward.1} parent=1 // pred_fallthru
      _
    // Predicated region
    $region230: #{self_attn_block_forward.1} parent=1 // pred_check
      _
    $region231: #{self_attn_block_forward.1} parent=1 // pred_check_branch
      %287 = sbr.rel (0) target = $region233
    $region232: #{self_attn_block_forward.1} parent=1 // pred_region
      %289 = vsyncadd [#allocation9], 0
      %s291 = sshll.u32 %s115, 4
      %s292 = int_to_ptr.hbm [resolvable:$true] %s291
      %s293 = sshll.u32 [#allocation8], 4
      %s294 = int_to_ptr.vmem [resolvable:$true] %s293
      %296 = dma.hbm_to_vmem [thread:$0]  %s292, 16, %s294, [#allocation9]
    $region233: #{self_attn_block_forward.1} parent=1 // pred_fallthru
      _
    // Predicated region
    $region234: #{self_attn_block_forward.1} parent=1 // pred_check
      _
    $region235: #{self_attn_block_forward.1} parent=1 // pred_check_branch
      %298 = sbr.rel (0) target = $region237
    $region236: #{self_attn_block_forward.1} parent=1 // pred_region
      %300 = vsyncadd [#allocation9], 0
      %s302 = sshll.u32 %s117, 4
      %s303 = int_to_ptr.hbm [resolvable:$true] %s302
      %s304 = sshll.u32 [#allocation10], 4
      %s305 = int_to_ptr.vmem [resolvable:$true] %s304
      %307 = dma.hbm_to_vmem [thread:$0]  %s303, 16, %s305, [#allocation9]
    $region237: #{self_attn_block_forward.1} parent=1 // pred_fallthru
      _
    // Predicated region
    $region238: #{self_attn_block_forward.1} parent=1 // pred_check
      _
    $region239: #{self_attn_block_forward.1} parent=1 // pred_check_branch
      %309 = sbr.rel (0) target = $region241
    $region240: #{self_attn_block_forward.1} parent=1 // pred_region
      %311 = vsyncadd [#allocation12], 0
      %s313 = sshll.u32 %s119, 4
      %s314 = int_to_ptr.hbm [resolvable:$true] %s313
      %s315 = sshll.u32 [#allocation11], 4
      %s316 = int_to_ptr.vmem [resolvable:$true] %s315
      %318 = dma.hbm_to_vmem [thread:$0]  %s314, 16, %s316, [#allocation12]
    $region241: #{self_attn_block_forward.1} parent=1 // pred_fallthru
      _
    // Predicated region
    $region242: #{self_attn_block_forward.1} parent=1 // pred_check
      _
    $region243: #{self_attn_block_forward.1} parent=1 // pred_check_branch
      %320 = sbr.rel (0) target = $region245
    $region244: #{self_attn_block_forward.1} parent=1 // pred_region
      _
    $region245: #{self_attn_block_forward.1} parent=1 // pred_fallthru
      _
    // Predicated region
    $region246: #{self_attn_block_forward.1} parent=1 // pred_check
      _
    $region247: #{self_attn_block_forward.1} parent=1 // pred_check_branch
      %322 = sbr.rel (0) target = $region249
    $region248: #{self_attn_block_forward.1} parent=1 // pred_region
      %324 = vsyncadd [#allocation12], 0
      %s326 = sshll.u32 %s123, 4
      %s327 = int_to_ptr.hbm [resolvable:$true] %s326
      %s328 = sshll.u32 [#allocation13], 4
      %s329 = int_to_ptr.vmem [resolvable:$true] %s328
      %331 = dma.hbm_to_vmem [thread:$0]  %s327, 16, %s329, [#allocation12]
    $region249: #{self_attn_block_forward.1} parent=1 // pred_fallthru
      _
    // Predicated region
    $region250: #{self_attn_block_forward.1} parent=1 // pred_check
      _
    $region251: #{self_attn_block_forward.1} parent=1 // pred_check_branch
      %333 = sbr.rel (0) target = $region253
    $region252: #{self_attn_block_forward.1} parent=1 // pred_region
      %335 = vsyncadd [#allocation15], 0
      %s337 = sshll.u32 %s125, 4
      %s338 = int_to_ptr.hbm [resolvable:$true] %s337
      %s339 = sshll.u32 [#allocation14], 4
      %s340 = int_to_ptr.vmem [resolvable:$true] %s339
      %342 = dma.hbm_to_vmem [thread:$0]  %s338, 16, %s340, [#allocation15]
    $region253: #{self_attn_block_forward.1} parent=1 // pred_fallthru
      _
    // Predicated region
    $region254: #{self_attn_block_forward.1} parent=1 // pred_check
      _
    $region255: #{self_attn_block_forward.1} parent=1 // pred_check_branch
      %344 = sbr.rel (0) target = $region257
    $region256: #{self_attn_block_forward.1} parent=1 // pred_region
      %346 = vsyncadd [#allocation15], 0
      %s348 = sshll.u32 %s127, 4
      %s349 = int_to_ptr.hbm [resolvable:$true] %s348
      %s350 = sshll.u32 [#allocation16], 4
      %s351 = int_to_ptr.vmem [resolvable:$true] %s350
      %353 = dma.hbm_to_vmem [thread:$0]  %s349, 16, %s351, [#allocation15]
    $region257: #{self_attn_block_forward.1} parent=1 // pred_fallthru
      _
    // Predicated region
    $region258: #{self_attn_block_forward.1} parent=1 // pred_check
      _
    $region259: #{self_attn_block_forward.1} parent=1 // pred_check_branch
      %355 = sbr.rel (0) target = $region261
    $region260: #{self_attn_block_forward.1} parent=1 // pred_region
      %357 = vsyncadd [#allocation18], 0
      %s359 = sshll.u32 %s129, 4
      %s360 = int_to_ptr.hbm [resolvable:$true] %s359
      %s361 = sshll.u32 [#allocation17], 4
      %s362 = int_to_ptr.vmem [resolvable:$true] %s361
      %364 = dma.hbm_to_vmem [thread:$0]  %s360, 16, %s362, [#allocation18]
    $region261: #{self_attn_block_forward.1} parent=1 // pred_fallthru
      _
    // Predicated region
    $region262: #{self_attn_block_forward.1} parent=1 // pred_check
      _
    $region263: #{self_attn_block_forward.1} parent=1 // pred_check_branch
      %366 = sbr.rel (0) target = $region265
    $region264: #{self_attn_block_forward.1} parent=1 // pred_region
      %368 = vsyncadd [#allocation18], 0
      %s370 = sshll.u32 %s131, 4
      %s371 = int_to_ptr.hbm [resolvable:$true] %s370
      %s372 = sshll.u32 [#allocation19], 4
      %s373 = int_to_ptr.vmem [resolvable:$true] %s372
      %375 = dma.hbm_to_vmem [thread:$0]  %s371, 16, %s373, [#allocation18]
    $region265: #{self_attn_block_forward.1} parent=1 // pred_fallthru
      _
    // Predicated region
    $region266: #{self_attn_block_forward.1} parent=1 // pred_check
      _
    $region267: #{self_attn_block_forward.1} parent=1 // pred_check_branch
      %377 = sbr.rel (0) target = $region269
    $region268: #{self_attn_block_forward.1} parent=1 // pred_region
      %379 = dma.done [#allocation3], 16
    $region269: #{self_attn_block_forward.1} parent=1 // pred_fallthru
      _
    // Predicated region
    $region270: #{self_attn_block_forward.1} parent=1 // pred_check
      _
    $region271: #{self_attn_block_forward.1} parent=1 // pred_check_branch
      %381 = sbr.rel (0) target = $region273
    $region272: #{self_attn_block_forward.1} parent=1 // pred_region
      %383 = dma.done [#allocation6], 16
    $region273: #{self_attn_block_forward.1} parent=1 // pred_fallthru
      _
    // Predicated region
    $region274: #{self_attn_block_forward.1} parent=1 // pred_check
      _
    $region275: #{self_attn_block_forward.1} parent=1 // pred_check_branch
      %385 = sbr.rel (0) target = $region277
    $region276: #{self_attn_block_forward.1} parent=1 // pred_region
      %387 = dma.done [#allocation6], 16
    $region277: #{self_attn_block_forward.1} parent=1 // pred_fallthru
      _
    // Predicated region
    $region278: #{self_attn_block_forward.1} parent=1 // pred_check
      _
    $region279: #{self_attn_block_forward.1} parent=1 // pred_check_branch
      %389 = sbr.rel (0) target = $region281
    $region280: #{self_attn_block_forward.1} parent=1 // pred_region
      %391 = dma.done [#allocation9], 16
    $region281: #{self_attn_block_forward.1} parent=1 // pred_fallthru
      _
    // Predicated region
    $region282: #{self_attn_block_forward.1} parent=1 // pred_check
      _
    $region283: #{self_attn_block_forward.1} parent=1 // pred_check_branch
      %393 = sbr.rel (0) target = $region285
    $region284: #{self_attn_block_forward.1} parent=1 // pred_region
      %395 = dma.done [#allocation9], 16
    $region285: #{self_attn_block_forward.1} parent=1 // pred_fallthru
      _
    // Predicated region
    $region286: #{self_attn_block_forward.1} parent=1 // pred_check
      _
    $region287: #{self_attn_block_forward.1} parent=1 // pred_check_branch
      %397 = sbr.rel (0) target = $region289
    $region288: #{self_attn_block_forward.1} parent=1 // pred_region
      %399 = dma.done [#allocation12], 16
    $region289: #{self_attn_block_forward.1} parent=1 // pred_fallthru
      _
    // Predicated region
    $region290: #{self_attn_block_forward.1} parent=1 // pred_check
      _
    $region291: #{self_attn_block_forward.1} parent=1 // pred_check_branch
      %401 = sbr.rel (0) target = $region293
    $region292: #{self_attn_block_forward.1} parent=1 // pred_region
      %403 = dma.done [#allocation12], 16
    $region293: #{self_attn_block_forward.1} parent=1 // pred_fallthru
      _
    // Predicated region
    $region294: #{self_attn_block_forward.1} parent=1 // pred_check
      _
    $region295: #{self_attn_block_forward.1} parent=1 // pred_check_branch
      %405 = sbr.rel (0) target = $region297
    $region296: #{self_attn_block_forward.1} parent=1 // pred_region
      %407 = dma.done [#allocation15], 16
    $region297: #{self_attn_block_forward.1} parent=1 // pred_fallthru
      _
    // Predicated region
    $region298: #{self_attn_block_forward.1} parent=1 // pred_check
      _
    $region299: #{self_attn_block_forward.1} parent=1 // pred_check_branch
      %409 = sbr.rel (0) target = $region301
    $region300: #{self_attn_block_forward.1} parent=1 // pred_region
      %411 = dma.done [#allocation15], 16
    $region301: #{self_attn_block_forward.1} parent=1 // pred_fallthru
      _
    // Predicated region
    $region302: #{self_attn_block_forward.1} parent=1 // pred_check
      _
    $region303: #{self_attn_block_forward.1} parent=1 // pred_check_branch
      %413 = sbr.rel (0) target = $region305
    $region304: #{self_attn_block_forward.1} parent=1 // pred_region
      %415 = dma.done [#allocation18], 16
    $region305: #{self_attn_block_forward.1} parent=1 // pred_fallthru
      _
    // Predicated region
    $region306: #{self_attn_block_forward.1} parent=1 // pred_check
      _
    $region307: #{self_attn_block_forward.1} parent=1 // pred_check_branch
      %417 = sbr.rel (0) target = $region309
    $region308: #{self_attn_block_forward.1} parent=1 // pred_region
      %419 = dma.done [#allocation18], 16
    $region309: #{self_attn_block_forward.1} parent=1 // pred_fallthru
      _
    %v420 = vld [vmem:[%s1] sm:$0xff]
    %v421 = vld [vmem:[%s1 + $0x8] sm:$0xff]
    %v422 = vld [vmem:[%s1 + $0x10] sm:$0xff]
    %v423 = vld [vmem:[%s1 + $0x18] sm:$0xff]
    %v424 = vld [vmem:[%s3] sm:$0xff]
    %v425 = vld [vmem:[%s3 + $0x8] sm:$0xff]
    %v426 = vld [vmem:[%s3 + $0x10] sm:$0xff]
    %v427 = vld [vmem:[%s3 + $0x18] sm:$0xff]
    %v428 = vld [vmem:[%s5] sm:$0xff]
    %v429 = vld [vmem:[%s5 + $0x8] sm:$0xff]
    %v430 = vld [vmem:[%s5 + $0x10] sm:$0xff]
    %v431 = vld [vmem:[%s5 + $0x18] sm:$0xff]
    %v432 = vld [vmem:[%s7] sm:$0xff]
    %v433 = vld [vmem:[%s7 + $0x8] sm:$0xff]
    %v434 = vld [vmem:[%s9] sm:$0xff]
    %v435 = vld [vmem:[%s11] sm:$0x1]
    %v436 = vld [vmem:[%s13] sm:$0xff]
    %v437 = vld [vmem:[%s13 + $0x8] sm:$0xff]
    %v438 = vld [vmem:[%s13 + $0x10] sm:$0xff]
    %v439 = vld [vmem:[%s13 + $0x18] sm:$0xff]
    %v440 = vld [vmem:[%s13 + $0x20] sm:$0xff]
    %v441 = vld [vmem:[%s13 + $0x28] sm:$0xff]
    %v442 = vld [vmem:[%s13 + $0x30] sm:$0xff]
    %v443 = vld [vmem:[%s13 + $0x38] sm:$0xff]
    %v444 = vld [vmem:[%s13 + $0x40] sm:$0xff]
    %v445 = vld [vmem:[%s13 + $0x48] sm:$0xff]
    %v446 = vld [vmem:[%s13 + $0x50] sm:$0xff]
    %v447 = vld [vmem:[%s13 + $0x58] sm:$0xff]
    %v448 = vld [vmem:[%s15] sm:$0x1]
    %v449 = vld [vmem:[%s17] sm:$0xff]
    %v450 = vld [vmem:[%s17 + $0x8] sm:$0xff]
    %v451 = vld [vmem:[%s17 + $0x10] sm:$0xff]
    %v452 = vld [vmem:[%s17 + $0x18] sm:$0xff]
    %v453 = vld [vmem:[%s19] sm:$0x1]
    %v454 = vld [vmem:[%s21] sm:$0x1]
    %v455 = vld [vmem:[%s23] sm:$0x1]
    %v456 = vld [vmem:[%s25] sm:$0xff]
    %v457 = vld [vmem:[%s25 + $0x8] sm:$0xff]
    %v458 = vld [vmem:[%s25 + $0x10] sm:$0xff]
    %v459 = vld [vmem:[%s25 + $0x18] sm:$0xff]
    %v460 = vld [vmem:[%s27] sm:$0x1]
    %v461 = vld [vmem:[%s29] sm:$0xff]
    %v462 = vld [vmem:[%s29 + $0x8] sm:$0xff]
    %v463 = vld [vmem:[%s29 + $0x10] sm:$0xff]
    %v464 = vld [vmem:[%s29 + $0x18] sm:$0xff]
    %v465 = vld [vmem:[%s31] sm:$0x1]
    %v466 = vld [vmem:[%s33] sm:$0x1]
    %v467 = vld [vmem:[%s35] sm:$0x1]
    %v468 = vld [vmem:[%s37] sm:$0xff]
    %v469 = vld [vmem:[%s37 + $0x8] sm:$0xff]
    %v470 = vld [vmem:[%s37 + $0x10] sm:$0xff]
    %v471 = vld [vmem:[%s37 + $0x18] sm:$0xff]
    %v472 = vld [vmem:[%s39] sm:$0x1]
    %v473 = vld [vmem:[%s41] sm:$0x1]
    %v474 = vld [vmem:[%s43] sm:$0x1]
    %vm475 = vcmask 64512
    %v477 = vsel %vm475, %v424, 0
    %v480 = vsel %vm475, %v425, 0
    %v483 = vsel %vm475, %v426, 0
    %v486 = vsel %vm475, %v427, 0
    %488 = vmatpush.msra.mxu0 0.0
    %489 = vmatpush.msra.mxu0 0.0
    %490 = vmatpush.msra.mxu0 0.0
    %491 = vmatpush.msra.mxu0 0.0
    %492 = vmatpush.msra.mxu0 0.0
    %493 = vmatpush.msra.mxu0 0.0
    %494 = vmatpush.msra.mxu0 0.0
    %495 = vmatpush.msra.mxu0 0.0
    %496 = vmatpush.msra.mxu0 0.0
    %497 = vmatpush.msra.mxu0 0.0
    %498 = vmatpush.msra.mxu0 0.0
    %499 = vmatpush.msra.mxu0 0.0
    %500 = vmatpush.msra.mxu0 0.0
    %501 = vmatpush.msra.mxu0 0.0
    %502 = vmatpush.msra.mxu0 0.0
    %503 = vmatpush.msra.mxu0 %v434
    %504 = vmatmul.f32.gmra.mxu0 %v477
    %v505 = vpop.f32.mrf.mxu0
    %v506 = vadd.f32 0.0, %v505
    %507 = vmatmul.f32.gmra.mxu0 %v480
    %v508 = vpop.f32.mrf.mxu0
    %v509 = vadd.f32 0.0, %v508
    %510 = vmatmul.f32.gmra.mxu0 %v483
    %v511 = vpop.f32.mrf.mxu0
    %v512 = vadd.f32 0.0, %v511
    %513 = vmatmul.f32.gmra.mxu0 %v486
    %v514 = vpop.f32.mrf.mxu0
    %v515 = vadd.f32 0.0, %v514
    %516 = vdwg.mxu0
    %vm517 = vcmask 130048
    %v519 = vsel %vm517, %v420, 0
    %v522 = vsel %vm517, %v421, 0
    %v525 = vsel %vm517, %v422, 0
    %v528 = vsel %vm517, %v423, 0
    %530 = vmatpush.msra.mxu0 0.0
    %531 = vmatpush.msra.mxu0 0.0
    %532 = vmatpush.msra.mxu0 0.0
    %533 = vmatpush.msra.mxu0 0.0
    %534 = vmatpush.msra.mxu0 0.0
    %535 = vmatpush.msra.mxu0 0.0
    %536 = vmatpush.msra.mxu0 0.0
    %537 = vmatpush.msra.mxu0 0.0
    %538 = vmatpush.msra.mxu0 0.0
    %539 = vmatpush.msra.mxu0 0.0
    %540 = vmatpush.msra.mxu0 0.0
    %541 = vmatpush.msra.mxu0 0.0
    %542 = vmatpush.msra.mxu0 0.0
    %543 = vmatpush.msra.mxu0 0.0
    %544 = vmatpush.msra.mxu0 %v433
    %545 = vmatpush.msra.mxu0 %v432
    %546 = vmatmul.f32.gmra.mxu0 %v519
    %v547 = vpop.f32.mrf.mxu0
    %v548 = vadd.f32 %v506, %v547
    %549 = vmatmul.f32.gmra.mxu0 %v522
    %v550 = vpop.f32.mrf.mxu0
    %v551 = vadd.f32 %v509, %v550
    %552 = vmatmul.f32.gmra.mxu0 %v525
    %v553 = vpop.f32.mrf.mxu0
    %v554 = vadd.f32 %v512, %v553
    %555 = vmatmul.f32.gmra.mxu0 %v528
    %v556 = vpop.f32.mrf.mxu0
    %v557 = vadd.f32 %v515, %v556
    %558 = vdwg.mxu0
    %v560 = vperm.slane %v435, 0
    %v562 = vadd.f32 %v548, %v560
    %v563 = vadd.f32 %v551, %v560
    %v564 = vadd.f32 %v554, %v560
    %v565 = vadd.f32 %v557, %v560
    %v567 = vperm.slane %v448, 0
    %vm569 = vcmask 785408
    %v571 = vsel %vm569, %v562, 0
    %v574 = vsel %vm569, %v563, 0
    %v577 = vsel %vm569, %v564, 0
    %v580 = vsel %vm569, %v565, 0
    %582 = vmatpush.msra.mxu0 0.0
    %583 = vmatpush.msra.mxu0 0.0
    %584 = vmatpush.msra.mxu0 0.0
    %585 = vmatpush.msra.mxu0 0.0
    %586 = vmatpush.msra.mxu0 %v447
    %587 = vmatpush.msra.mxu0 %v446
    %588 = vmatpush.msra.mxu0 %v445
    %589 = vmatpush.msra.mxu0 %v444
    %590 = vmatpush.msra.mxu0 %v443
    %591 = vmatpush.msra.mxu0 %v442
    %592 = vmatpush.msra.mxu0 %v441
    %593 = vmatpush.msra.mxu0 %v440
    %594 = vmatpush.msra.mxu0 %v439
    %595 = vmatpush.msra.mxu0 %v438
    %596 = vmatpush.msra.mxu0 %v437
    %597 = vmatpush.msra.mxu0 %v436
    %598 = vmatmul.f32.gmra.mxu0 %v571
    %v599 = vpop.f32.mrf.mxu0
    %v600 = vadd.f32 %v567, %v599
    %601 = vmatmul.f32.gmra.mxu0 %v574
    %v602 = vpop.f32.mrf.mxu0
    %v603 = vadd.f32 %v567, %v602
    %604 = vmatmul.f32.gmra.mxu0 %v577
    %v605 = vpop.f32.mrf.mxu0
    %v606 = vadd.f32 %v567, %v605
    %607 = vmatmul.f32.gmra.mxu0 %v580
    %v608 = vpop.f32.mrf.mxu0
    %v609 = vadd.f32 %v567, %v608
    %610 = vdwg.mxu0
    %615 = vrot.lane.b32.xlu0 %v600, 96
    %v616 = vpop.permute.xlu0 %615
    %617 = vrot.lane.b32.xlu0 %v603, 96
    %v618 = vpop.permute.xlu0 %617
    %619 = vrot.lane.b32.xlu0 %v606, 96
    %v620 = vpop.permute.xlu0 %619
    %621 = vrot.lane.b32.xlu0 %v609, 96
    %v622 = vpop.permute.xlu0 %621
    %v623 = vsel %vm517, %v600, 0
    %v625 = vsel %vm517, %v603, 0
    %v627 = vsel %vm517, %v606, 0
    %v629 = vsel %vm517, %v609, 0
    %v631 = vsel %vm517, %v616, 0
    %v633 = vsel %vm517, %v618, 0
    %v635 = vsel %vm517, %v620, 0
    %v637 = vsel %vm517, %v622, 0
    %639 = vmatpush.xpose.msra.mxu0 0.0
    %640 = vmatpush.xpose.msra.mxu0 0.0
    %641 = vmatpush.xpose.msra.mxu0 0.0
    %642 = vmatpush.xpose.msra.mxu0 0.0
    %643 = vmatpush.xpose.msra.mxu0 0.0
    %644 = vmatpush.xpose.msra.mxu0 0.0
    %645 = vmatpush.xpose.msra.mxu0 0.0
    %646 = vmatpush.xpose.msra.mxu0 0.0
    %647 = vmatpush.xpose.msra.mxu0 0.0
    %648 = vmatpush.xpose.msra.mxu0 0.0
    %649 = vmatpush.xpose.msra.mxu0 0.0
    %650 = vmatpush.xpose.msra.mxu0 0.0
    %651 = vmatpush.xpose.msra.mxu0 %v637
    %652 = vmatpush.xpose.msra.mxu0 %v635
    %653 = vmatpush.xpose.msra.mxu0 %v633
    %654 = vmatpush.xpose.msra.mxu0 %v631
    %655 = vmatmul.f32.gmra.mxu0 %v623
    %v656 = vpop.f32.mrf.mxu0
    %v657 = vadd.f32 %v428, %v656
    %658 = vmatmul.f32.gmra.mxu0 %v625
    %v659 = vpop.f32.mrf.mxu0
    %v660 = vadd.f32 %v429, %v659
    %661 = vmatmul.f32.gmra.mxu0 %v627
    %v662 = vpop.f32.mrf.mxu0
    %v663 = vadd.f32 %v430, %v662
    %664 = vmatmul.f32.gmra.mxu0 %v629
    %v665 = vpop.f32.mrf.mxu0
    %v666 = vadd.f32 %v431, %v665
    %667 = vdwg.mxu0
    %vm668 = vcmask 261120
    %v669 = vsel %vm668, %v657, -inf
    %670 = vmax.xlane.f32.xlu0 %v669
    %v671 = vpop.xlane.xlu0 %670
    %v672 = vsel %vm668, %v660, -inf
    %673 = vmax.xlane.f32.xlu0 %v672
    %v674 = vpop.xlane.xlu0 %673
    %v675 = vsel %vm668, %v663, -inf
    %676 = vmax.xlane.f32.xlu0 %v675
    %v677 = vpop.xlane.xlu0 %676
    %v678 = vsel %vm668, %v666, -inf
    %679 = vmax.xlane.f32.xlu0 %v678
    %v680 = vpop.xlane.xlu0 %679
    %v681 = vsub.f32 %v657, %v671
    %v682 = vsub.f32 %v660, %v674
    %v683 = vsub.f32 %v663, %v677
    %v684 = vsub.f32 %v666, %v680
    %v685 = vmul.f32 %v681, 1.442695
    %v686 = vpow.pop %v685
    %v687 = vmul.f32 %v682, 1.442695
    %v688 = vpow.pop %v687
    %v689 = vmul.f32 %v683, 1.442695
    %v690 = vpow.pop %v689
    %v691 = vmul.f32 %v684, 1.442695
    %v692 = vpow.pop %v691
    %v693 = vsel %vm668, %v686, 0.0
    %694 = vadd.xlane.f32.xlu0 %v693
    %v695 = vpop.xlane.xlu0 %694
    %v696 = vsel %vm668, %v688, 0.0
    %697 = vadd.xlane.f32.xlu0 %v696
    %v698 = vpop.xlane.xlu0 %697
    %v699 = vsel %vm668, %v690, 0.0
    %700 = vadd.xlane.f32.xlu0 %v699
    %v701 = vpop.xlane.xlu0 %700
    %v702 = vsel %vm668, %v692, 0.0
    %703 = vadd.xlane.f32.xlu0 %v702
    %v704 = vpop.xlane.xlu0 %703
    %v705 = vrcp.pop %v695
    %v706 = vrcp.pop %v698
    %v707 = vrcp.pop %v701
    %v708 = vrcp.pop %v704
    %v709 = vmul.f32 %v686, %v705
    %v710 = vmul.f32 %v688, %v706
    %v711 = vmul.f32 %v690, %v707
    %v712 = vmul.f32 %v692, %v708
    %713 = vrot.lane.b32.xlu0 %v600, 64
    %v714 = vpop.permute.xlu0 %713
    %715 = vrot.lane.b32.xlu0 %v603, 64
    %v716 = vpop.permute.xlu0 %715
    %717 = vrot.lane.b32.xlu0 %v606, 64
    %v718 = vpop.permute.xlu0 %717
    %719 = vrot.lane.b32.xlu0 %v609, 64
    %v720 = vpop.permute.xlu0 %719
    %v726 = vsel %vm668, %v709, 0
    %v729 = vsel %vm668, %v710, 0
    %v732 = vsel %vm668, %v711, 0
    %v735 = vsel %vm668, %v712, 0
    %737 = vmatpush.msra.mxu0 0.0
    %738 = vmatpush.msra.mxu0 0.0
    %739 = vmatpush.msra.mxu0 0.0
    %740 = vmatpush.msra.mxu0 0.0
    %741 = vmatpush.msra.mxu0 0.0
    %742 = vmatpush.msra.mxu0 0.0
    %743 = vmatpush.msra.mxu0 0.0
    %744 = vmatpush.msra.mxu0 0.0
    %745 = vmatpush.msra.mxu0 0.0
    %746 = vmatpush.msra.mxu0 0.0
    %747 = vmatpush.msra.mxu0 0.0
    %748 = vmatpush.msra.mxu0 0.0
    %749 = vmatpush.msra.mxu0 %v720
    %750 = vmatpush.msra.mxu0 %v718
    %751 = vmatpush.msra.mxu0 %v716
    %752 = vmatpush.msra.mxu0 %v714
    %753 = vmatmul.f32.gmra.mxu0 %v726
    %v754 = vpop.f32.mrf.mxu0
    %v755 = vadd.f32 0.0, %v754
    %756 = vmatmul.f32.gmra.mxu0 %v729
    %v757 = vpop.f32.mrf.mxu0
    %v758 = vadd.f32 0.0, %v757
    %759 = vmatmul.f32.gmra.mxu0 %v732
    %v760 = vpop.f32.mrf.mxu0
    %v761 = vadd.f32 0.0, %v760
    %762 = vmatmul.f32.gmra.mxu0 %v735
    %v763 = vpop.f32.mrf.mxu0
    %v764 = vadd.f32 0.0, %v763
    %765 = vdwg.mxu0
    %766 = vrot.lane.b32.xlu0 %v600, 112
    %v767 = vpop.permute.xlu0 %766
    %768 = vrot.lane.b32.xlu0 %v603, 112
    %v769 = vpop.permute.xlu0 %768
    %770 = vrot.lane.b32.xlu0 %v606, 112
    %v771 = vpop.permute.xlu0 %770
    %772 = vrot.lane.b32.xlu0 %v609, 112
    %v773 = vpop.permute.xlu0 %772
    %774 = vrot.lane.b32.xlu0 %v600, 80
    %v775 = vpop.permute.xlu0 %774
    %776 = vrot.lane.b32.xlu0 %v603, 80
    %v777 = vpop.permute.xlu0 %776
    %778 = vrot.lane.b32.xlu0 %v606, 80
    %v779 = vpop.permute.xlu0 %778
    %780 = vrot.lane.b32.xlu0 %v609, 80
    %v781 = vpop.permute.xlu0 %780
    %v782 = vsel %vm517, %v767, 0
    %v784 = vsel %vm517, %v769, 0
    %v786 = vsel %vm517, %v771, 0
    %v788 = vsel %vm517, %v773, 0
    %v790 = vsel %vm517, %v775, 0
    %v792 = vsel %vm517, %v777, 0
    %v794 = vsel %vm517, %v779, 0
    %v796 = vsel %vm517, %v781, 0
    %798 = vmatpush.xpose.msra.mxu0 0.0
    %799 = vmatpush.xpose.msra.mxu0 0.0
    %800 = vmatpush.xpose.msra.mxu0 0.0
    %801 = vmatpush.xpose.msra.mxu0 0.0
    %802 = vmatpush.xpose.msra.mxu0 0.0
    %803 = vmatpush.xpose.msra.mxu0 0.0
    %804 = vmatpush.xpose.msra.mxu0 0.0
    %805 = vmatpush.xpose.msra.mxu0 0.0
    %806 = vmatpush.xpose.msra.mxu0 0.0
    %807 = vmatpush.xpose.msra.mxu0 0.0
    %808 = vmatpush.xpose.msra.mxu0 0.0
    %809 = vmatpush.xpose.msra.mxu0 0.0
    %810 = vmatpush.xpose.msra.mxu0 %v796
    %811 = vmatpush.xpose.msra.mxu0 %v794
    %812 = vmatpush.xpose.msra.mxu0 %v792
    %813 = vmatpush.xpose.msra.mxu0 %v790
    %814 = vmatmul.f32.gmra.mxu0 %v782
    %v815 = vpop.f32.mrf.mxu0
    %v816 = vadd.f32 %v428, %v815
    %817 = vmatmul.f32.gmra.mxu0 %v784
    %v818 = vpop.f32.mrf.mxu0
    %v819 = vadd.f32 %v429, %v818
    %820 = vmatmul.f32.gmra.mxu0 %v786
    %v821 = vpop.f32.mrf.mxu0
    %v822 = vadd.f32 %v430, %v821
    %823 = vmatmul.f32.gmra.mxu0 %v788
    %v824 = vpop.f32.mrf.mxu0
    %v825 = vadd.f32 %v431, %v824
    %826 = vdwg.mxu0
    %v827 = vsel %vm668, %v816, -inf
    %828 = vmax.xlane.f32.xlu0 %v827
    %v829 = vpop.xlane.xlu0 %828
    %v830 = vsel %vm668, %v819, -inf
    %831 = vmax.xlane.f32.xlu0 %v830
    %v832 = vpop.xlane.xlu0 %831
    %v833 = vsel %vm668, %v822, -inf
    %834 = vmax.xlane.f32.xlu0 %v833
    %v835 = vpop.xlane.xlu0 %834
    %v836 = vsel %vm668, %v825, -inf
    %837 = vmax.xlane.f32.xlu0 %v836
    %v838 = vpop.xlane.xlu0 %837
    %v839 = vsub.f32 %v816, %v829
    %v840 = vsub.f32 %v819, %v832
    %v841 = vsub.f32 %v822, %v835
    %v842 = vsub.f32 %v825, %v838
    %v843 = vmul.f32 %v839, 1.442695
    %v844 = vpow.pop %v843
    %v845 = vmul.f32 %v840, 1.442695
    %v846 = vpow.pop %v845
    %v847 = vmul.f32 %v841, 1.442695
    %v848 = vpow.pop %v847
    %v849 = vmul.f32 %v842, 1.442695
    %v850 = vpow.pop %v849
    %v851 = vsel %vm668, %v844, 0.0
    %852 = vadd.xlane.f32.xlu0 %v851
    %v853 = vpop.xlane.xlu0 %852
    %v854 = vsel %vm668, %v846, 0.0
    %855 = vadd.xlane.f32.xlu0 %v854
    %v856 = vpop.xlane.xlu0 %855
    %v857 = vsel %vm668, %v848, 0.0
    %858 = vadd.xlane.f32.xlu0 %v857
    %v859 = vpop.xlane.xlu0 %858
    %v860 = vsel %vm668, %v850, 0.0
    %861 = vadd.xlane.f32.xlu0 %v860
    %v862 = vpop.xlane.xlu0 %861
    %v863 = vrcp.pop %v853
    %v864 = vrcp.pop %v856
    %v865 = vrcp.pop %v859
    %v866 = vrcp.pop %v862
    %v867 = vmul.f32 %v844, %v863
    %v868 = vmul.f32 %v846, %v864
    %v869 = vmul.f32 %v848, %v865
    %v870 = vmul.f32 %v850, %v866
    %871 = vrot.lane.b32.xlu0 %v600, 48
    %v872 = vpop.permute.xlu0 %871
    %873 = vrot.lane.b32.xlu0 %v603, 48
    %v874 = vpop.permute.xlu0 %873
    %875 = vrot.lane.b32.xlu0 %v606, 48
    %v876 = vpop.permute.xlu0 %875
    %877 = vrot.lane.b32.xlu0 %v609, 48
    %v878 = vpop.permute.xlu0 %877
    %v884 = vsel %vm668, %v867, 0
    %v887 = vsel %vm668, %v868, 0
    %v890 = vsel %vm668, %v869, 0
    %v893 = vsel %vm668, %v870, 0
    %895 = vmatpush.msra.mxu0 0.0
    %896 = vmatpush.msra.mxu0 0.0
    %897 = vmatpush.msra.mxu0 0.0
    %898 = vmatpush.msra.mxu0 0.0
    %899 = vmatpush.msra.mxu0 0.0
    %900 = vmatpush.msra.mxu0 0.0
    %901 = vmatpush.msra.mxu0 0.0
    %902 = vmatpush.msra.mxu0 0.0
    %903 = vmatpush.msra.mxu0 0.0
    %904 = vmatpush.msra.mxu0 0.0
    %905 = vmatpush.msra.mxu0 0.0
    %906 = vmatpush.msra.mxu0 0.0
    %907 = vmatpush.msra.mxu0 %v878
    %908 = vmatpush.msra.mxu0 %v876
    %909 = vmatpush.msra.mxu0 %v874
    %910 = vmatpush.msra.mxu0 %v872
    %911 = vmatmul.f32.gmra.mxu0 %v884
    %v912 = vpop.f32.mrf.mxu0
    %v913 = vadd.f32 0.0, %v912
    %914 = vmatmul.f32.gmra.mxu0 %v887
    %v915 = vpop.f32.mrf.mxu0
    %v916 = vadd.f32 0.0, %v915
    %917 = vmatmul.f32.gmra.mxu0 %v890
    %v918 = vpop.f32.mrf.mxu0
    %v919 = vadd.f32 0.0, %v918
    %920 = vmatmul.f32.gmra.mxu0 %v893
    %v921 = vpop.f32.mrf.mxu0
    %v922 = vadd.f32 0.0, %v921
    %923 = vdwg.mxu0
    %v925 = vsel %vm517, %v913, 0
    %v928 = vsel %vm517, %v916, 0
    %v931 = vsel %vm517, %v919, 0
    %v934 = vsel %vm517, %v922, 0
    %936 = vmatpush.msra.mxu0 0.0
    %937 = vmatpush.msra.mxu0 0.0
    %938 = vmatpush.msra.mxu0 0.0
    %939 = vmatpush.msra.mxu0 0.0
    %940 = vmatpush.msra.mxu0 0.0
    %941 = vmatpush.msra.mxu0 0.0
    %942 = vmatpush.msra.mxu0 0.0
    %943 = vmatpush.msra.mxu0 0.0
    %944 = vmatpush.msra.mxu0 0.0
    %945 = vmatpush.msra.mxu0 0.0
    %946 = vmatpush.msra.mxu0 0.0
    %947 = vmatpush.msra.mxu0 0.0
    %948 = vmatpush.msra.mxu0 0.0
    %949 = vmatpush.msra.mxu0 0.0
    %950 = vmatpush.msra.mxu0 %v452
    %951 = vmatpush.msra.mxu0 %v451
    %952 = vmatmul.f32.gmra.mxu0 %v925
    %v953 = vpop.f32.mrf.mxu0
    %v954 = vadd.f32 0.0, %v953
    %955 = vmatmul.f32.gmra.mxu0 %v928
    %v956 = vpop.f32.mrf.mxu0
    %v957 = vadd.f32 0.0, %v956
    %958 = vmatmul.f32.gmra.mxu0 %v931
    %v959 = vpop.f32.mrf.mxu0
    %v960 = vadd.f32 0.0, %v959
    %961 = vmatmul.f32.gmra.mxu0 %v934
    %v962 = vpop.f32.mrf.mxu0
    %v963 = vadd.f32 0.0, %v962
    %964 = vdwg.mxu0
    %v966 = vsel %vm517, %v755, 0
    %v969 = vsel %vm517, %v758, 0
    %v972 = vsel %vm517, %v761, 0
    %v975 = vsel %vm517, %v764, 0
    %977 = vmatpush.msra.mxu0 0.0
    %978 = vmatpush.msra.mxu0 0.0
    %979 = vmatpush.msra.mxu0 0.0
    %980 = vmatpush.msra.mxu0 0.0
    %981 = vmatpush.msra.mxu0 0.0
    %982 = vmatpush.msra.mxu0 0.0
    %983 = vmatpush.msra.mxu0 0.0
    %984 = vmatpush.msra.mxu0 0.0
    %985 = vmatpush.msra.mxu0 0.0
    %986 = vmatpush.msra.mxu0 0.0
    %987 = vmatpush.msra.mxu0 0.0
    %988 = vmatpush.msra.mxu0 0.0
    %989 = vmatpush.msra.mxu0 0.0
    %990 = vmatpush.msra.mxu0 0.0
    %991 = vmatpush.msra.mxu0 %v450
    %992 = vmatpush.msra.mxu0 %v449
    %993 = vmatmul.f32.gmra.mxu0 %v966
    %v994 = vpop.f32.mrf.mxu0
    %v995 = vadd.f32 %v954, %v994
    %996 = vmatmul.f32.gmra.mxu0 %v969
    %v997 = vpop.f32.mrf.mxu0
    %v998 = vadd.f32 %v957, %v997
    %999 = vmatmul.f32.gmra.mxu0 %v972
    %v1000 = vpop.f32.mrf.mxu0
    %v1001 = vadd.f32 %v960, %v1000
    %1002 = vmatmul.f32.gmra.mxu0 %v975
    %v1003 = vpop.f32.mrf.mxu0
    %v1004 = vadd.f32 %v963, %v1003
    %1005 = vdwg.mxu0
    %v1007 = vperm.slane %v453, 0
    %v1009 = vadd.f32 %v995, %v1007
    %v1010 = vadd.f32 %v998, %v1007
    %v1011 = vadd.f32 %v1001, %v1007
    %v1012 = vadd.f32 %v1004, %v1007
    %v1013 = vadd.f32 %v1009, %v562
    %v1014 = vadd.f32 %v1010, %v563
    %v1015 = vadd.f32 %v1011, %v564
    %v1016 = vadd.f32 %v1012, %v565
    %v1017 = vsel %vm668, %v1013, 0.0
    %1018 = vadd.xlane.f32.xlu0 %v1017
    %v1019 = vpop.xlane.xlu0 %1018
    %v1020 = vsel %vm668, %v1014, 0.0
    %1021 = vadd.xlane.f32.xlu0 %v1020
    %v1022 = vpop.xlane.xlu0 %1021
    %v1023 = vsel %vm668, %v1015, 0.0
    %1024 = vadd.xlane.f32.xlu0 %v1023
    %v1025 = vpop.xlane.xlu0 %1024
    %v1026 = vsel %vm668, %v1016, 0.0
    %1027 = vadd.xlane.f32.xlu0 %v1026
    %v1028 = vpop.xlane.xlu0 %1027
    %v1029 = vrcp.pop 32.0
    %v1030 = vmul.f32 32.0, %v1029
    %v1031 = vsub.f32 1.0, %v1030
    %v1032 = vmul.f32 %v1029, %v1031
    %v1033 = vadd.f32 %v1029, %v1032
    %vm1034 = vweird.f32 %v1029
    %v1035 = vsel %vm1034, %v1029, %v1033
    %v1036 = vmul.f32 %v1019, %v1035
    %v1037 = vmul.f32 %v1022, %v1035
    %v1038 = vmul.f32 %v1025, %v1035
    %v1039 = vmul.f32 %v1028, %v1035
    %v1040 = vsub.f32 %v1013, %v1036
    %v1041 = vsub.f32 %v1014, %v1037
    %v1042 = vsub.f32 %v1015, %v1038
    %v1043 = vsub.f32 %v1016, %v1039
    %v1044 = vmul.f32 %v1040, %v1040
    %v1045 = vmul.f32 %v1041, %v1041
    %v1046 = vmul.f32 %v1042, %v1042
    %v1047 = vmul.f32 %v1043, %v1043
    %v1048 = vsel %vm668, %v1044, 0.0
    %1049 = vadd.xlane.f32.xlu0 %v1048
    %v1050 = vpop.xlane.xlu0 %1049
    %v1051 = vsel %vm668, %v1045, 0.0
    %1052 = vadd.xlane.f32.xlu0 %v1051
    %v1053 = vpop.xlane.xlu0 %1052
    %v1054 = vsel %vm668, %v1046, 0.0
    %1055 = vadd.xlane.f32.xlu0 %v1054
    %v1056 = vpop.xlane.xlu0 %1055
    %v1057 = vsel %vm668, %v1047, 0.0
    %1058 = vadd.xlane.f32.xlu0 %v1057
    %v1059 = vpop.xlane.xlu0 %1058
    %v1060 = vmul.f32 %v1050, %v1035
    %v1061 = vmul.f32 %v1053, %v1035
    %v1062 = vmul.f32 %v1056, %v1035
    %v1063 = vmul.f32 %v1059, %v1035
    %v1064 = vadd.f32 %v1060, 1e-05
    %v1065 = vadd.f32 %v1061, 1e-05
    %v1066 = vadd.f32 %v1062, 1e-05
    %v1067 = vadd.f32 %v1063, 1e-05
    %v1068 = vrsqrt.pop %v1064
    %v1069 = vmul.f32 %v1068, %v1064
    %v1070 = vmul.f32 %v1069, %v1068
    %v1071 = vmul.f32 0.5, %v1070
    %v1072 = vsub.f32 1.5, %v1071
    %v1073 = vmul.f32 %v1068, %v1072
    %vm1074 = vweird.f32 %v1064
    %vm1075 = vweird.f32 %v1068
    %vm1076 = vmor %vm1074, %vm1075
    %v1077 = vsel %vm1076, %v1068, %v1073
    %v1078 = vrsqrt.pop %v1065
    %v1079 = vmul.f32 %v1078, %v1065
    %v1080 = vmul.f32 %v1079, %v1078
    %v1081 = vmul.f32 0.5, %v1080
    %v1082 = vsub.f32 1.5, %v1081
    %v1083 = vmul.f32 %v1078, %v1082
    %vm1084 = vweird.f32 %v1065
    %vm1085 = vweird.f32 %v1078
    %vm1086 = vmor %vm1084, %vm1085
    %v1087 = vsel %vm1086, %v1078, %v1083
    %v1088 = vrsqrt.pop %v1066
    %v1089 = vmul.f32 %v1088, %v1066
    %v1090 = vmul.f32 %v1089, %v1088
    %v1091 = vmul.f32 0.5, %v1090
    %v1092 = vsub.f32 1.5, %v1091
    %v1093 = vmul.f32 %v1088, %v1092
    %vm1094 = vweird.f32 %v1066
    %vm1095 = vweird.f32 %v1088
    %vm1096 = vmor %vm1094, %vm1095
    %v1097 = vsel %vm1096, %v1088, %v1093
    %v1098 = vrsqrt.pop %v1067
    %v1099 = vmul.f32 %v1098, %v1067
    %v1100 = vmul.f32 %v1099, %v1098
    %v1101 = vmul.f32 0.5, %v1100
    %v1102 = vsub.f32 1.5, %v1101
    %v1103 = vmul.f32 %v1098, %v1102
    %vm1104 = vweird.f32 %v1067
    %vm1105 = vweird.f32 %v1098
    %vm1106 = vmor %vm1104, %vm1105
    %v1107 = vsel %vm1106, %v1098, %v1103
    %v1108 = vmul.f32 %v1040, %v1077
    %v1109 = vmul.f32 %v1041, %v1087
    %v1110 = vmul.f32 %v1042, %v1097
    %v1111 = vmul.f32 %v1043, %v1107
    %v1113 = vperm.slane %v454, 0
    %v1115 = vmul.f32 %v1108, %v1113
    %v1116 = vmul.f32 %v1109, %v1113
    %v1117 = vmul.f32 %v1110, %v1113
    %v1118 = vmul.f32 %v1111, %v1113
    %v1120 = vperm.slane %v455, 0
    %v1122 = vadd.f32 %v1115, %v1120
    %v1123 = vadd.f32 %v1116, %v1120
    %v1124 = vadd.f32 %v1117, %v1120
    %v1125 = vadd.f32 %v1118, %v1120
    %v1127 = vperm.slane %v460, 0
    %v1130 = vsel %vm668, %v1122, 0
    %v1133 = vsel %vm668, %v1123, 0
    %v1136 = vsel %vm668, %v1124, 0
    %v1139 = vsel %vm668, %v1125, 0
    %1141 = vmatpush.msra.mxu0 0.0
    %1142 = vmatpush.msra.mxu0 0.0
    %1143 = vmatpush.msra.mxu0 0.0
    %1144 = vmatpush.msra.mxu0 0.0
    %1145 = vmatpush.msra.mxu0 0.0
    %1146 = vmatpush.msra.mxu0 0.0
    %1147 = vmatpush.msra.mxu0 0.0
    %1148 = vmatpush.msra.mxu0 0.0
    %1149 = vmatpush.msra.mxu0 0.0
    %1150 = vmatpush.msra.mxu0 0.0
    %1151 = vmatpush.msra.mxu0 0.0
    %1152 = vmatpush.msra.mxu0 0.0
    %1153 = vmatpush.msra.mxu0 %v459
    %1154 = vmatpush.msra.mxu0 %v458
    %1155 = vmatpush.msra.mxu0 %v457
    %1156 = vmatpush.msra.mxu0 %v456
    %1157 = vmatmul.f32.gmra.mxu0 %v1130
    %v1158 = vpop.f32.mrf.mxu0
    %v1159 = vadd.f32 %v1127, %v1158
    %1160 = vmatmul.f32.gmra.mxu0 %v1133
    %v1161 = vpop.f32.mrf.mxu0
    %v1162 = vadd.f32 %v1127, %v1161
    %1163 = vmatmul.f32.gmra.mxu0 %v1136
    %v1164 = vpop.f32.mrf.mxu0
    %v1165 = vadd.f32 %v1127, %v1164
    %1166 = vmatmul.f32.gmra.mxu0 %v1139
    %v1167 = vpop.f32.mrf.mxu0
    %v1168 = vadd.f32 %v1127, %v1167
    %1169 = vdwg.mxu0
    %v1170 = vmax.f32 %v1159, 0.0
    %v1171 = vmax.f32 %v1162, 0.0
    %v1172 = vmax.f32 %v1165, 0.0
    %v1173 = vmax.f32 %v1168, 0.0
    %v1175 = vperm.slane %v465, 0
    %v1178 = vsel %vm668, %v1170, 0
    %v1181 = vsel %vm668, %v1171, 0
    %v1184 = vsel %vm668, %v1172, 0
    %v1187 = vsel %vm668, %v1173, 0
    %1189 = vmatpush.msra.mxu0 0.0
    %1190 = vmatpush.msra.mxu0 0.0
    %1191 = vmatpush.msra.mxu0 0.0
    %1192 = vmatpush.msra.mxu0 0.0
    %1193 = vmatpush.msra.mxu0 0.0
    %1194 = vmatpush.msra.mxu0 0.0
    %1195 = vmatpush.msra.mxu0 0.0
    %1196 = vmatpush.msra.mxu0 0.0
    %1197 = vmatpush.msra.mxu0 0.0
    %1198 = vmatpush.msra.mxu0 0.0
    %1199 = vmatpush.msra.mxu0 0.0
    %1200 = vmatpush.msra.mxu0 0.0
    %1201 = vmatpush.msra.mxu0 %v464
    %1202 = vmatpush.msra.mxu0 %v463
    %1203 = vmatpush.msra.mxu0 %v462
    %1204 = vmatpush.msra.mxu0 %v461
    %1205 = vmatmul.f32.gmra.mxu0 %v1178
    %v1206 = vpop.f32.mrf.mxu0
    %v1207 = vadd.f32 %v1175, %v1206
    %1208 = vmatmul.f32.gmra.mxu0 %v1181
    %v1209 = vpop.f32.mrf.mxu0
    %v1210 = vadd.f32 %v1175, %v1209
    %1211 = vmatmul.f32.gmra.mxu0 %v1184
    %v1212 = vpop.f32.mrf.mxu0
    %v1213 = vadd.f32 %v1175, %v1212
    %1214 = vmatmul.f32.gmra.mxu0 %v1187
    %v1215 = vpop.f32.mrf.mxu0
    %v1216 = vadd.f32 %v1175, %v1215
    %1217 = vdwg.mxu0
    %v1218 = vadd.f32 %v1207, %v1122
    %v1219 = vadd.f32 %v1210, %v1123
    %v1220 = vadd.f32 %v1213, %v1124
    %v1221 = vadd.f32 %v1216, %v1125
    %v1222 = vsel %vm668, %v1218, 0.0
    %1223 = vadd.xlane.f32.xlu0 %v1222
    %v1224 = vpop.xlane.xlu0 %1223
    %v1225 = vsel %vm668, %v1219, 0.0
    %1226 = vadd.xlane.f32.xlu0 %v1225
    %v1227 = vpop.xlane.xlu0 %1226
    %v1228 = vsel %vm668, %v1220, 0.0
    %1229 = vadd.xlane.f32.xlu0 %v1228
    %v1230 = vpop.xlane.xlu0 %1229
    %v1231 = vsel %vm668, %v1221, 0.0
    %1232 = vadd.xlane.f32.xlu0 %v1231
    %v1233 = vpop.xlane.xlu0 %1232
    %v1234 = vmul.f32 %v1224, %v1035
    %v1235 = vmul.f32 %v1227, %v1035
    %v1236 = vmul.f32 %v1230, %v1035
    %v1237 = vmul.f32 %v1233, %v1035
    %v1238 = vsub.f32 %v1218, %v1234
    %v1239 = vsub.f32 %v1219, %v1235
    %v1240 = vsub.f32 %v1220, %v1236
    %v1241 = vsub.f32 %v1221, %v1237
    %v1242 = vmul.f32 %v1238, %v1238
    %v1243 = vmul.f32 %v1239, %v1239
    %v1244 = vmul.f32 %v1240, %v1240
    %v1245 = vmul.f32 %v1241, %v1241
    %v1246 = vsel %vm668, %v1242, 0.0
    %1247 = vadd.xlane.f32.xlu0 %v1246
    %v1248 = vpop.xlane.xlu0 %1247
    %v1249 = vsel %vm668, %v1243, 0.0
    %1250 = vadd.xlane.f32.xlu0 %v1249
    %v1251 = vpop.xlane.xlu0 %1250
    %v1252 = vsel %vm668, %v1244, 0.0
    %1253 = vadd.xlane.f32.xlu0 %v1252
    %v1254 = vpop.xlane.xlu0 %1253
    %v1255 = vsel %vm668, %v1245, 0.0
    %1256 = vadd.xlane.f32.xlu0 %v1255
    %v1257 = vpop.xlane.xlu0 %1256
    %v1258 = vmul.f32 %v1248, %v1035
    %v1259 = vmul.f32 %v1251, %v1035
    %v1260 = vmul.f32 %v1254, %v1035
    %v1261 = vmul.f32 %v1257, %v1035
    %v1262 = vadd.f32 %v1258, 1e-05
    %v1263 = vadd.f32 %v1259, 1e-05
    %v1264 = vadd.f32 %v1260, 1e-05
    %v1265 = vadd.f32 %v1261, 1e-05
    %v1266 = vrsqrt.pop %v1262
    %v1267 = vmul.f32 %v1266, %v1262
    %v1268 = vmul.f32 %v1267, %v1266
    %v1269 = vmul.f32 0.5, %v1268
    %v1270 = vsub.f32 1.5, %v1269
    %v1271 = vmul.f32 %v1266, %v1270
    %vm1272 = vweird.f32 %v1262
    %vm1273 = vweird.f32 %v1266
    %vm1274 = vmor %vm1272, %vm1273
    %v1275 = vsel %vm1274, %v1266, %v1271
    %v1276 = vrsqrt.pop %v1263
    %v1277 = vmul.f32 %v1276, %v1263
    %v1278 = vmul.f32 %v1277, %v1276
    %v1279 = vmul.f32 0.5, %v1278
    %v1280 = vsub.f32 1.5, %v1279
    %v1281 = vmul.f32 %v1276, %v1280
    %vm1282 = vweird.f32 %v1263
    %vm1283 = vweird.f32 %v1276
    %vm1284 = vmor %vm1282, %vm1283
    %v1285 = vsel %vm1284, %v1276, %v1281
    %v1286 = vrsqrt.pop %v1264
    %v1287 = vmul.f32 %v1286, %v1264
    %v1288 = vmul.f32 %v1287, %v1286
    %v1289 = vmul.f32 0.5, %v1288
    %v1290 = vsub.f32 1.5, %v1289
    %v1291 = vmul.f32 %v1286, %v1290
    %vm1292 = vweird.f32 %v1264
    %vm1293 = vweird.f32 %v1286
    %vm1294 = vmor %vm1292, %vm1293
    %v1295 = vsel %vm1294, %v1286, %v1291
    %v1296 = vrsqrt.pop %v1265
    %v1297 = vmul.f32 %v1296, %v1265
    %v1298 = vmul.f32 %v1297, %v1296
    %v1299 = vmul.f32 0.5, %v1298
    %v1300 = vsub.f32 1.5, %v1299
    %v1301 = vmul.f32 %v1296, %v1300
    %vm1302 = vweird.f32 %v1265
    %vm1303 = vweird.f32 %v1296
    %vm1304 = vmor %vm1302, %vm1303
    %v1305 = vsel %vm1304, %v1296, %v1301
    %v1306 = vmul.f32 %v1238, %v1275
    %v1307 = vmul.f32 %v1239, %v1285
    %v1308 = vmul.f32 %v1240, %v1295
    %v1309 = vmul.f32 %v1241, %v1305
    %v1311 = vperm.slane %v466, 0
    %v1313 = vmul.f32 %v1306, %v1311
    %v1314 = vmul.f32 %v1307, %v1311
    %v1315 = vmul.f32 %v1308, %v1311
    %v1316 = vmul.f32 %v1309, %v1311
    %v1318 = vperm.slane %v467, 0
    %v1320 = vadd.f32 %v1313, %v1318
    %v1321 = vadd.f32 %v1314, %v1318
    %v1322 = vadd.f32 %v1315, %v1318
    %v1323 = vadd.f32 %v1316, %v1318
    %v1325 = vperm.slane %v472, 0
    %v1328 = vsel %vm668, %v1320, 0
    %v1331 = vsel %vm668, %v1321, 0
    %v1334 = vsel %vm668, %v1322, 0
    %v1337 = vsel %vm668, %v1323, 0
    %1339 = vmatpush.msra.mxu0 0.0
    %1340 = vmatpush.msra.mxu0 0.0
    %1341 = vmatpush.msra.mxu0 0.0
    %1342 = vmatpush.msra.mxu0 0.0
    %1343 = vmatpush.msra.mxu0 0.0
    %1344 = vmatpush.msra.mxu0 0.0
    %1345 = vmatpush.msra.mxu0 0.0
    %1346 = vmatpush.msra.mxu0 0.0
    %1347 = vmatpush.msra.mxu0 0.0
    %1348 = vmatpush.msra.mxu0 0.0
    %1349 = vmatpush.msra.mxu0 0.0
    %1350 = vmatpush.msra.mxu0 0.0
    %1351 = vmatpush.msra.mxu0 %v471
    %1352 = vmatpush.msra.mxu0 %v470
    %1353 = vmatpush.msra.mxu0 %v469
    %1354 = vmatpush.msra.mxu0 %v468
    %1355 = vmatmul.f32.gmra.mxu0 %v1328
    %v1356 = vpop.f32.mrf.mxu0
    %v1357 = vadd.f32 %v1325, %v1356
    %1358 = vmatmul.f32.gmra.mxu0 %v1331
    %v1359 = vpop.f32.mrf.mxu0
    %v1360 = vadd.f32 %v1325, %v1359
    %1361 = vmatmul.f32.gmra.mxu0 %v1334
    %v1362 = vpop.f32.mrf.mxu0
    %v1363 = vadd.f32 %v1325, %v1362
    %1364 = vmatmul.f32.gmra.mxu0 %v1337
    %v1365 = vpop.f32.mrf.mxu0
    %v1366 = vadd.f32 %v1325, %v1365
    %1367 = vdwg.mxu0
    %v1368 = vsel %vm517, %v1357, 0.0
    %1369 = vadd.xlane.f32.xlu0 %v1368
    %v1370 = vpop.xlane.xlu0 %1369
    %v1371 = vsel %vm517, %v1360, 0.0
    %1372 = vadd.xlane.f32.xlu0 %v1371
    %v1373 = vpop.xlane.xlu0 %1372
    %v1374 = vsel %vm517, %v1363, 0.0
    %1375 = vadd.xlane.f32.xlu0 %v1374
    %v1376 = vpop.xlane.xlu0 %1375
    %v1377 = vsel %vm517, %v1366, 0.0
    %1378 = vadd.xlane.f32.xlu0 %v1377
    %v1379 = vpop.xlane.xlu0 %1378
    %v1380 = vrcp.pop 16.0
    %v1381 = vmul.f32 16.0, %v1380
    %v1382 = vsub.f32 1.0, %v1381
    %v1383 = vmul.f32 %v1380, %v1382
    %v1384 = vadd.f32 %v1380, %v1383
    %vm1385 = vweird.f32 %v1380
    %v1386 = vsel %vm1385, %v1380, %v1384
    %v1387 = vmul.f32 %v1370, %v1386
    %v1388 = vmul.f32 %v1373, %v1386
    %v1389 = vmul.f32 %v1376, %v1386
    %v1390 = vmul.f32 %v1379, %v1386
    %v1391 = vsub.f32 %v1357, %v1387
    %v1392 = vsub.f32 %v1360, %v1388
    %v1393 = vsub.f32 %v1363, %v1389
    %v1394 = vsub.f32 %v1366, %v1390
    %v1395 = vmul.f32 %v1391, %v1391
    %v1396 = vmul.f32 %v1392, %v1392
    %v1397 = vmul.f32 %v1393, %v1393
    %v1398 = vmul.f32 %v1394, %v1394
    %v1399 = vsel %vm517, %v1395, 0.0
    %1400 = vadd.xlane.f32.xlu0 %v1399
    %v1401 = vpop.xlane.xlu0 %1400
    %v1402 = vsel %vm517, %v1396, 0.0
    %1403 = vadd.xlane.f32.xlu0 %v1402
    %v1404 = vpop.xlane.xlu0 %1403
    %v1405 = vsel %vm517, %v1397, 0.0
    %1406 = vadd.xlane.f32.xlu0 %v1405
    %v1407 = vpop.xlane.xlu0 %1406
    %v1408 = vsel %vm517, %v1398, 0.0
    %1409 = vadd.xlane.f32.xlu0 %v1408
    %v1410 = vpop.xlane.xlu0 %1409
    %v1411 = vmul.f32 %v1401, %v1386
    %v1412 = vmul.f32 %v1404, %v1386
    %v1413 = vmul.f32 %v1407, %v1386
    %v1414 = vmul.f32 %v1410, %v1386
    %v1415 = vadd.f32 %v1411, 1e-05
    %v1416 = vadd.f32 %v1412, 1e-05
    %v1417 = vadd.f32 %v1413, 1e-05
    %v1418 = vadd.f32 %v1414, 1e-05
    %v1419 = vrsqrt.pop %v1415
    %v1420 = vmul.f32 %v1419, %v1415
    %v1421 = vmul.f32 %v1420, %v1419
    %v1422 = vmul.f32 0.5, %v1421
    %v1423 = vsub.f32 1.5, %v1422
    %v1424 = vmul.f32 %v1419, %v1423
    %vm1425 = vweird.f32 %v1415
    %vm1426 = vweird.f32 %v1419
    %vm1427 = vmor %vm1425, %vm1426
    %v1428 = vsel %vm1427, %v1419, %v1424
    %v1429 = vrsqrt.pop %v1416
    %v1430 = vmul.f32 %v1429, %v1416
    %v1431 = vmul.f32 %v1430, %v1429
    %v1432 = vmul.f32 0.5, %v1431
    %v1433 = vsub.f32 1.5, %v1432
    %v1434 = vmul.f32 %v1429, %v1433
    %vm1435 = vweird.f32 %v1416
    %vm1436 = vweird.f32 %v1429
    %vm1437 = vmor %vm1435, %vm1436
    %v1438 = vsel %vm1437, %v1429, %v1434
    %v1439 = vrsqrt.pop %v1417
    %v1440 = vmul.f32 %v1439, %v1417
    %v1441 = vmul.f32 %v1440, %v1439
    %v1442 = vmul.f32 0.5, %v1441
    %v1443 = vsub.f32 1.5, %v1442
    %v1444 = vmul.f32 %v1439, %v1443
    %vm1445 = vweird.f32 %v1417
    %vm1446 = vweird.f32 %v1439
    %vm1447 = vmor %vm1445, %vm1446
    %v1448 = vsel %vm1447, %v1439, %v1444
    %v1449 = vrsqrt.pop %v1418
    %v1450 = vmul.f32 %v1449, %v1418
    %v1451 = vmul.f32 %v1450, %v1449
    %v1452 = vmul.f32 0.5, %v1451
    %v1453 = vsub.f32 1.5, %v1452
    %v1454 = vmul.f32 %v1449, %v1453
    %vm1455 = vweird.f32 %v1418
    %vm1456 = vweird.f32 %v1449
    %vm1457 = vmor %vm1455, %vm1456
    %v1458 = vsel %vm1457, %v1449, %v1454
    %v1459 = vmul.f32 %v1391, %v1428
    %v1460 = vmul.f32 %v1392, %v1438
    %v1461 = vmul.f32 %v1393, %v1448
    %v1462 = vmul.f32 %v1394, %v1458
    %v1464 = vperm.slane %v473, 0
    %v1466 = vmul.f32 %v1459, %v1464
    %v1467 = vmul.f32 %v1460, %v1464
    %v1468 = vmul.f32 %v1461, %v1464
    %v1469 = vmul.f32 %v1462, %v1464
    %v1471 = vperm.slane %v474, 0
    %v1473 = vadd.f32 %v1466, %v1471
    %v1474 = vadd.f32 %v1467, %v1471
    %v1475 = vadd.f32 %v1468, %v1471
    %v1476 = vadd.f32 %v1469, %v1471
    %v1477 = vmax.f32 %v1473, 0.0
    %v1478 = vmax.f32 %v1474, 0.0
    %v1479 = vmax.f32 %v1475, 0.0
    %v1480 = vmax.f32 %v1476, 0.0
    %v1481 = vld [vmem:[%s45] sm:$0xff]
    %v1482 = vld [vmem:[%s45 + $0x8] sm:$0xff]
    %v1483 = vld [vmem:[%s47] sm:$0xff]
    %v1484 = vld [vmem:[%s49] sm:$0x1]
    %v1485 = vld [vmem:[%s51] sm:$0xff]
    %v1486 = vld [vmem:[%s51 + $0x8] sm:$0xff]
    %v1487 = vld [vmem:[%s51 + $0x10] sm:$0xff]
    %v1488 = vld [vmem:[%s51 + $0x18] sm:$0xff]
    %v1489 = vld [vmem:[%s51 + $0x20] sm:$0xff]
    %v1490 = vld [vmem:[%s51 + $0x28] sm:$0xff]
    %v1491 = vld [vmem:[%s51 + $0x30] sm:$0xff]
    %v1492 = vld [vmem:[%s51 + $0x38] sm:$0xff]
    %v1493 = vld [vmem:[%s51 + $0x40] sm:$0xff]
    %v1494 = vld [vmem:[%s51 + $0x48] sm:$0xff]
    %v1495 = vld [vmem:[%s51 + $0x50] sm:$0xff]
    %v1496 = vld [vmem:[%s51 + $0x58] sm:$0xff]
    %v1497 = vld [vmem:[%s53] sm:$0x1]
    %v1498 = vld [vmem:[%s55] sm:$0xff]
    %v1499 = vld [vmem:[%s55 + $0x8] sm:$0xff]
    %v1500 = vld [vmem:[%s55 + $0x10] sm:$0xff]
    %v1501 = vld [vmem:[%s55 + $0x18] sm:$0xff]
    %v1502 = vld [vmem:[%s57] sm:$0x1]
    %v1503 = vld [vmem:[%s59] sm:$0x1]
    %v1504 = vld [vmem:[%s61] sm:$0x1]
    %v1505 = vld [vmem:[%s63] sm:$0xff]
    %v1506 = vld [vmem:[%s63 + $0x8] sm:$0xff]
    %v1507 = vld [vmem:[%s63 + $0x10] sm:$0xff]
    %v1508 = vld [vmem:[%s63 + $0x18] sm:$0xff]
    %v1509 = vld [vmem:[%s65] sm:$0x1]
    %v1510 = vld [vmem:[%s67] sm:$0xff]
    %v1511 = vld [vmem:[%s67 + $0x8] sm:$0xff]
    %v1512 = vld [vmem:[%s67 + $0x10] sm:$0xff]
    %v1513 = vld [vmem:[%s67 + $0x18] sm:$0xff]
    %v1514 = vld [vmem:[%s69] sm:$0x1]
    %v1515 = vld [vmem:[%s71] sm:$0x1]
    %v1516 = vld [vmem:[%s73] sm:$0x1]
    %v1517 = vld [vmem:[%s75] sm:$0xff]
    %v1518 = vld [vmem:[%s75 + $0x8] sm:$0xff]
    %v1519 = vld [vmem:[%s75 + $0x10] sm:$0xff]
    %v1520 = vld [vmem:[%s75 + $0x18] sm:$0xff]
    %v1521 = vld [vmem:[%s77] sm:$0x1]
    %v1522 = vld [vmem:[%s79] sm:$0x1]
    %v1523 = vld [vmem:[%s81] sm:$0x1]
    %1524 = vmatpush.msra.mxu0 0.0
    %1525 = vmatpush.msra.mxu0 0.0
    %1526 = vmatpush.msra.mxu0 0.0
    %1527 = vmatpush.msra.mxu0 0.0
    %1528 = vmatpush.msra.mxu0 0.0
    %1529 = vmatpush.msra.mxu0 0.0
    %1530 = vmatpush.msra.mxu0 0.0
    %1531 = vmatpush.msra.mxu0 0.0
    %1532 = vmatpush.msra.mxu0 0.0
    %1533 = vmatpush.msra.mxu0 0.0
    %1534 = vmatpush.msra.mxu0 0.0
    %1535 = vmatpush.msra.mxu0 0.0
    %1536 = vmatpush.msra.mxu0 0.0
    %1537 = vmatpush.msra.mxu0 0.0
    %1538 = vmatpush.msra.mxu0 0.0
    %1539 = vmatpush.msra.mxu0 %v1483
    %1540 = vmatmul.f32.gmra.mxu0 %v477
    %v1541 = vpop.f32.mrf.mxu0
    %v1542 = vadd.f32 0.0, %v1541
    %1543 = vmatmul.f32.gmra.mxu0 %v480
    %v1544 = vpop.f32.mrf.mxu0
    %v1545 = vadd.f32 0.0, %v1544
    %1546 = vmatmul.f32.gmra.mxu0 %v483
    %v1547 = vpop.f32.mrf.mxu0
    %v1548 = vadd.f32 0.0, %v1547
    %1549 = vmatmul.f32.gmra.mxu0 %v486
    %v1550 = vpop.f32.mrf.mxu0
    %v1551 = vadd.f32 0.0, %v1550
    %1552 = vdwg.mxu0
    %v1554 = vsel %vm517, %v1477, 0
    %v1557 = vsel %vm517, %v1478, 0
    %v1560 = vsel %vm517, %v1479, 0
    %v1563 = vsel %vm517, %v1480, 0
    %1565 = vmatpush.msra.mxu0 0.0
    %1566 = vmatpush.msra.mxu0 0.0
    %1567 = vmatpush.msra.mxu0 0.0
    %1568 = vmatpush.msra.mxu0 0.0
    %1569 = vmatpush.msra.mxu0 0.0
    %1570 = vmatpush.msra.mxu0 0.0
    %1571 = vmatpush.msra.mxu0 0.0
    %1572 = vmatpush.msra.mxu0 0.0
    %1573 = vmatpush.msra.mxu0 0.0
    %1574 = vmatpush.msra.mxu0 0.0
    %1575 = vmatpush.msra.mxu0 0.0
    %1576 = vmatpush.msra.mxu0 0.0
    %1577 = vmatpush.msra.mxu0 0.0
    %1578 = vmatpush.msra.mxu0 0.0
    %1579 = vmatpush.msra.mxu0 %v1482
    %1580 = vmatpush.msra.mxu0 %v1481
    %1581 = vmatmul.f32.gmra.mxu0 %v1554
    %v1582 = vpop.f32.mrf.mxu0
    %v1583 = vadd.f32 %v1542, %v1582
    %1584 = vmatmul.f32.gmra.mxu0 %v1557
    %v1585 = vpop.f32.mrf.mxu0
    %v1586 = vadd.f32 %v1545, %v1585
    %1587 = vmatmul.f32.gmra.mxu0 %v1560
    %v1588 = vpop.f32.mrf.mxu0
    %v1589 = vadd.f32 %v1548, %v1588
    %1590 = vmatmul.f32.gmra.mxu0 %v1563
    %v1591 = vpop.f32.mrf.mxu0
    %v1592 = vadd.f32 %v1551, %v1591
    %1593 = vdwg.mxu0
    %v1595 = vperm.slane %v1484, 0
    %v1597 = vadd.f32 %v1583, %v1595
    %v1598 = vadd.f32 %v1586, %v1595
    %v1599 = vadd.f32 %v1589, %v1595
    %v1600 = vadd.f32 %v1592, %v1595
    %v1602 = vperm.slane %v1497, 0
    %v1605 = vsel %vm569, %v1597, 0
    %v1608 = vsel %vm569, %v1598, 0
    %v1611 = vsel %vm569, %v1599, 0
    %v1614 = vsel %vm569, %v1600, 0
    %1616 = vmatpush.msra.mxu0 0.0
    %1617 = vmatpush.msra.mxu0 0.0
    %1618 = vmatpush.msra.mxu0 0.0
    %1619 = vmatpush.msra.mxu0 0.0
    %1620 = vmatpush.msra.mxu0 %v1496
    %1621 = vmatpush.msra.mxu0 %v1495
    %1622 = vmatpush.msra.mxu0 %v1494
    %1623 = vmatpush.msra.mxu0 %v1493
    %1624 = vmatpush.msra.mxu0 %v1492
    %1625 = vmatpush.msra.mxu0 %v1491
    %1626 = vmatpush.msra.mxu0 %v1490
    %1627 = vmatpush.msra.mxu0 %v1489
    %1628 = vmatpush.msra.mxu0 %v1488
    %1629 = vmatpush.msra.mxu0 %v1487
    %1630 = vmatpush.msra.mxu0 %v1486
    %1631 = vmatpush.msra.mxu0 %v1485
    %1632 = vmatmul.f32.gmra.mxu0 %v1605
    %v1633 = vpop.f32.mrf.mxu0
    %v1634 = vadd.f32 %v1602, %v1633
    %1635 = vmatmul.f32.gmra.mxu0 %v1608
    %v1636 = vpop.f32.mrf.mxu0
    %v1637 = vadd.f32 %v1602, %v1636
    %1638 = vmatmul.f32.gmra.mxu0 %v1611
    %v1639 = vpop.f32.mrf.mxu0
    %v1640 = vadd.f32 %v1602, %v1639
    %1641 = vmatmul.f32.gmra.mxu0 %v1614
    %v1642 = vpop.f32.mrf.mxu0
    %v1643 = vadd.f32 %v1602, %v1642
    %1644 = vdwg.mxu0
    %1649 = vrot.lane.b32.xlu0 %v1634, 96
    %v1650 = vpop.permute.xlu0 %1649
    %1651 = vrot.lane.b32.xlu0 %v1637, 96
    %v1652 = vpop.permute.xlu0 %1651
    %1653 = vrot.lane.b32.xlu0 %v1640, 96
    %v1654 = vpop.permute.xlu0 %1653
    %1655 = vrot.lane.b32.xlu0 %v1643, 96
    %v1656 = vpop.permute.xlu0 %1655
    %v1657 = vsel %vm517, %v1634, 0
    %v1659 = vsel %vm517, %v1637, 0
    %v1661 = vsel %vm517, %v1640, 0
    %v1663 = vsel %vm517, %v1643, 0
    %v1665 = vsel %vm517, %v1650, 0
    %v1667 = vsel %vm517, %v1652, 0
    %v1669 = vsel %vm517, %v1654, 0
    %v1671 = vsel %vm517, %v1656, 0
    %1673 = vmatpush.xpose.msra.mxu0 0.0
    %1674 = vmatpush.xpose.msra.mxu0 0.0
    %1675 = vmatpush.xpose.msra.mxu0 0.0
    %1676 = vmatpush.xpose.msra.mxu0 0.0
    %1677 = vmatpush.xpose.msra.mxu0 0.0
    %1678 = vmatpush.xpose.msra.mxu0 0.0
    %1679 = vmatpush.xpose.msra.mxu0 0.0
    %1680 = vmatpush.xpose.msra.mxu0 0.0
    %1681 = vmatpush.xpose.msra.mxu0 0.0
    %1682 = vmatpush.xpose.msra.mxu0 0.0
    %1683 = vmatpush.xpose.msra.mxu0 0.0
    %1684 = vmatpush.xpose.msra.mxu0 0.0
    %1685 = vmatpush.xpose.msra.mxu0 %v1671
    %1686 = vmatpush.xpose.msra.mxu0 %v1669
    %1687 = vmatpush.xpose.msra.mxu0 %v1667
    %1688 = vmatpush.xpose.msra.mxu0 %v1665
    %1689 = vmatmul.f32.gmra.mxu0 %v1657
    %v1690 = vpop.f32.mrf.mxu0
    %v1691 = vadd.f32 %v428, %v1690
    %1692 = vmatmul.f32.gmra.mxu0 %v1659
    %v1693 = vpop.f32.mrf.mxu0
    %v1694 = vadd.f32 %v429, %v1693
    %1695 = vmatmul.f32.gmra.mxu0 %v1661
    %v1696 = vpop.f32.mrf.mxu0
    %v1697 = vadd.f32 %v430, %v1696
    %1698 = vmatmul.f32.gmra.mxu0 %v1663
    %v1699 = vpop.f32.mrf.mxu0
    %v1700 = vadd.f32 %v431, %v1699
    %1701 = vdwg.mxu0
    %v1702 = vsel %vm668, %v1691, -inf
    %1703 = vmax.xlane.f32.xlu0 %v1702
    %v1704 = vpop.xlane.xlu0 %1703
    %v1705 = vsel %vm668, %v1694, -inf
    %1706 = vmax.xlane.f32.xlu0 %v1705
    %v1707 = vpop.xlane.xlu0 %1706
    %v1708 = vsel %vm668, %v1697, -inf
    %1709 = vmax.xlane.f32.xlu0 %v1708
    %v1710 = vpop.xlane.xlu0 %1709
    %v1711 = vsel %vm668, %v1700, -inf
    %1712 = vmax.xlane.f32.xlu0 %v1711
    %v1713 = vpop.xlane.xlu0 %1712
    %v1714 = vsub.f32 %v1691, %v1704
    %v1715 = vsub.f32 %v1694, %v1707
    %v1716 = vsub.f32 %v1697, %v1710
    %v1717 = vsub.f32 %v1700, %v1713
    %v1718 = vmul.f32 %v1714, 1.442695
    %v1719 = vpow.pop %v1718
    %v1720 = vmul.f32 %v1715, 1.442695
    %v1721 = vpow.pop %v1720
    %v1722 = vmul.f32 %v1716, 1.442695
    %v1723 = vpow.pop %v1722
    %v1724 = vmul.f32 %v1717, 1.442695
    %v1725 = vpow.pop %v1724
    %v1726 = vsel %vm668, %v1719, 0.0
    %1727 = vadd.xlane.f32.xlu0 %v1726
    %v1728 = vpop.xlane.xlu0 %1727
    %v1729 = vsel %vm668, %v1721, 0.0
    %1730 = vadd.xlane.f32.xlu0 %v1729
    %v1731 = vpop.xlane.xlu0 %1730
    %v1732 = vsel %vm668, %v1723, 0.0
    %1733 = vadd.xlane.f32.xlu0 %v1732
    %v1734 = vpop.xlane.xlu0 %1733
    %v1735 = vsel %vm668, %v1725, 0.0
    %1736 = vadd.xlane.f32.xlu0 %v1735
    %v1737 = vpop.xlane.xlu0 %1736
    %v1738 = vrcp.pop %v1728
    %v1739 = vrcp.pop %v1731
    %v1740 = vrcp.pop %v1734
    %v1741 = vrcp.pop %v1737
    %v1742 = vmul.f32 %v1719, %v1738
    %v1743 = vmul.f32 %v1721, %v1739
    %v1744 = vmul.f32 %v1723, %v1740
    %v1745 = vmul.f32 %v1725, %v1741
    %1746 = vrot.lane.b32.xlu0 %v1634, 64
    %v1747 = vpop.permute.xlu0 %1746
    %1748 = vrot.lane.b32.xlu0 %v1637, 64
    %v1749 = vpop.permute.xlu0 %1748
    %1750 = vrot.lane.b32.xlu0 %v1640, 64
    %v1751 = vpop.permute.xlu0 %1750
    %1752 = vrot.lane.b32.xlu0 %v1643, 64
    %v1753 = vpop.permute.xlu0 %1752
    %v1759 = vsel %vm668, %v1742, 0
    %v1762 = vsel %vm668, %v1743, 0
    %v1765 = vsel %vm668, %v1744, 0
    %v1768 = vsel %vm668, %v1745, 0
    %1770 = vmatpush.msra.mxu0 0.0
    %1771 = vmatpush.msra.mxu0 0.0
    %1772 = vmatpush.msra.mxu0 0.0
    %1773 = vmatpush.msra.mxu0 0.0
    %1774 = vmatpush.msra.mxu0 0.0
    %1775 = vmatpush.msra.mxu0 0.0
    %1776 = vmatpush.msra.mxu0 0.0
    %1777 = vmatpush.msra.mxu0 0.0
    %1778 = vmatpush.msra.mxu0 0.0
    %1779 = vmatpush.msra.mxu0 0.0
    %1780 = vmatpush.msra.mxu0 0.0
    %1781 = vmatpush.msra.mxu0 0.0
    %1782 = vmatpush.msra.mxu0 %v1753
    %1783 = vmatpush.msra.mxu0 %v1751
    %1784 = vmatpush.msra.mxu0 %v1749
    %1785 = vmatpush.msra.mxu0 %v1747
    %1786 = vmatmul.f32.gmra.mxu0 %v1759
    %v1787 = vpop.f32.mrf.mxu0
    %v1788 = vadd.f32 0.0, %v1787
    %1789 = vmatmul.f32.gmra.mxu0 %v1762
    %v1790 = vpop.f32.mrf.mxu0
    %v1791 = vadd.f32 0.0, %v1790
    %1792 = vmatmul.f32.gmra.mxu0 %v1765
    %v1793 = vpop.f32.mrf.mxu0
    %v1794 = vadd.f32 0.0, %v1793
    %1795 = vmatmul.f32.gmra.mxu0 %v1768
    %v1796 = vpop.f32.mrf.mxu0
    %v1797 = vadd.f32 0.0, %v1796
    %1798 = vdwg.mxu0
    %1799 = vrot.lane.b32.xlu0 %v1634, 112
    %v1800 = vpop.permute.xlu0 %1799
    %1801 = vrot.lane.b32.xlu0 %v1637, 112
    %v1802 = vpop.permute.xlu0 %1801
    %1803 = vrot.lane.b32.xlu0 %v1640, 112
    %v1804 = vpop.permute.xlu0 %1803
    %1805 = vrot.lane.b32.xlu0 %v1643, 112
    %v1806 = vpop.permute.xlu0 %1805
    %1807 = vrot.lane.b32.xlu0 %v1634, 80
    %v1808 = vpop.permute.xlu0 %1807
    %1809 = vrot.lane.b32.xlu0 %v1637, 80
    %v1810 = vpop.permute.xlu0 %1809
    %1811 = vrot.lane.b32.xlu0 %v1640, 80
    %v1812 = vpop.permute.xlu0 %1811
    %1813 = vrot.lane.b32.xlu0 %v1643, 80
    %v1814 = vpop.permute.xlu0 %1813
    %v1815 = vsel %vm517, %v1800, 0
    %v1817 = vsel %vm517, %v1802, 0
    %v1819 = vsel %vm517, %v1804, 0
    %v1821 = vsel %vm517, %v1806, 0
    %v1823 = vsel %vm517, %v1808, 0
    %v1825 = vsel %vm517, %v1810, 0
    %v1827 = vsel %vm517, %v1812, 0
    %v1829 = vsel %vm517, %v1814, 0
    %1831 = vmatpush.xpose.msra.mxu0 0.0
    %1832 = vmatpush.xpose.msra.mxu0 0.0
    %1833 = vmatpush.xpose.msra.mxu0 0.0
    %1834 = vmatpush.xpose.msra.mxu0 0.0
    %1835 = vmatpush.xpose.msra.mxu0 0.0
    %1836 = vmatpush.xpose.msra.mxu0 0.0
    %1837 = vmatpush.xpose.msra.mxu0 0.0
    %1838 = vmatpush.xpose.msra.mxu0 0.0
    %1839 = vmatpush.xpose.msra.mxu0 0.0
    %1840 = vmatpush.xpose.msra.mxu0 0.0
    %1841 = vmatpush.xpose.msra.mxu0 0.0
    %1842 = vmatpush.xpose.msra.mxu0 0.0
    %1843 = vmatpush.xpose.msra.mxu0 %v1829
    %1844 = vmatpush.xpose.msra.mxu0 %v1827
    %1845 = vmatpush.xpose.msra.mxu0 %v1825
    %1846 = vmatpush.xpose.msra.mxu0 %v1823
    %1847 = vmatmul.f32.gmra.mxu0 %v1815
    %v1848 = vpop.f32.mrf.mxu0
    %v1849 = vadd.f32 %v428, %v1848
    %1850 = vmatmul.f32.gmra.mxu0 %v1817
    %v1851 = vpop.f32.mrf.mxu0
    %v1852 = vadd.f32 %v429, %v1851
    %1853 = vmatmul.f32.gmra.mxu0 %v1819
    %v1854 = vpop.f32.mrf.mxu0
    %v1855 = vadd.f32 %v430, %v1854
    %1856 = vmatmul.f32.gmra.mxu0 %v1821
    %v1857 = vpop.f32.mrf.mxu0
    %v1858 = vadd.f32 %v431, %v1857
    %1859 = vdwg.mxu0
    %v1860 = vsel %vm668, %v1849, -inf
    %1861 = vmax.xlane.f32.xlu0 %v1860
    %v1862 = vpop.xlane.xlu0 %1861
    %v1863 = vsel %vm668, %v1852, -inf
    %1864 = vmax.xlane.f32.xlu0 %v1863
    %v1865 = vpop.xlane.xlu0 %1864
    %v1866 = vsel %vm668, %v1855, -inf
    %1867 = vmax.xlane.f32.xlu0 %v1866
    %v1868 = vpop.xlane.xlu0 %1867
    %v1869 = vsel %vm668, %v1858, -inf
    %1870 = vmax.xlane.f32.xlu0 %v1869
    %v1871 = vpop.xlane.xlu0 %1870
    %v1872 = vsub.f32 %v1849, %v1862
    %v1873 = vsub.f32 %v1852, %v1865
    %v1874 = vsub.f32 %v1855, %v1868
    %v1875 = vsub.f32 %v1858, %v1871
    %v1876 = vmul.f32 %v1872, 1.442695
    %v1877 = vpow.pop %v1876
    %v1878 = vmul.f32 %v1873, 1.442695
    %v1879 = vpow.pop %v1878
    %v1880 = vmul.f32 %v1874, 1.442695
    %v1881 = vpow.pop %v1880
    %v1882 = vmul.f32 %v1875, 1.442695
    %v1883 = vpow.pop %v1882
    %v1884 = vsel %vm668, %v1877, 0.0
    %1885 = vadd.xlane.f32.xlu0 %v1884
    %v1886 = vpop.xlane.xlu0 %1885
    %v1887 = vsel %vm668, %v1879, 0.0
    %1888 = vadd.xlane.f32.xlu0 %v1887
    %v1889 = vpop.xlane.xlu0 %1888
    %v1890 = vsel %vm668, %v1881, 0.0
    %1891 = vadd.xlane.f32.xlu0 %v1890
    %v1892 = vpop.xlane.xlu0 %1891
    %v1893 = vsel %vm668, %v1883, 0.0
    %1894 = vadd.xlane.f32.xlu0 %v1893
    %v1895 = vpop.xlane.xlu0 %1894
    %v1896 = vrcp.pop %v1886
    %v1897 = vrcp.pop %v1889
    %v1898 = vrcp.pop %v1892
    %v1899 = vrcp.pop %v1895
    %v1900 = vmul.f32 %v1877, %v1896
    %v1901 = vmul.f32 %v1879, %v1897
    %v1902 = vmul.f32 %v1881, %v1898
    %v1903 = vmul.f32 %v1883, %v1899
    %1904 = vrot.lane.b32.xlu0 %v1634, 48
    %v1905 = vpop.permute.xlu0 %1904
    %1906 = vrot.lane.b32.xlu0 %v1637, 48
    %v1907 = vpop.permute.xlu0 %1906
    %1908 = vrot.lane.b32.xlu0 %v1640, 48
    %v1909 = vpop.permute.xlu0 %1908
    %1910 = vrot.lane.b32.xlu0 %v1643, 48
    %v1911 = vpop.permute.xlu0 %1910
    %v1917 = vsel %vm668, %v1900, 0
    %v1920 = vsel %vm668, %v1901, 0
    %v1923 = vsel %vm668, %v1902, 0
    %v1926 = vsel %vm668, %v1903, 0
    %1928 = vmatpush.msra.mxu0 0.0
    %1929 = vmatpush.msra.mxu0 0.0
    %1930 = vmatpush.msra.mxu0 0.0
    %1931 = vmatpush.msra.mxu0 0.0
    %1932 = vmatpush.msra.mxu0 0.0
    %1933 = vmatpush.msra.mxu0 0.0
    %1934 = vmatpush.msra.mxu0 0.0
    %1935 = vmatpush.msra.mxu0 0.0
    %1936 = vmatpush.msra.mxu0 0.0
    %1937 = vmatpush.msra.mxu0 0.0
    %1938 = vmatpush.msra.mxu0 0.0
    %1939 = vmatpush.msra.mxu0 0.0
    %1940 = vmatpush.msra.mxu0 %v1911
    %1941 = vmatpush.msra.mxu0 %v1909
    %1942 = vmatpush.msra.mxu0 %v1907
    %1943 = vmatpush.msra.mxu0 %v1905
    %1944 = vmatmul.f32.gmra.mxu0 %v1917
    %v1945 = vpop.f32.mrf.mxu0
    %v1946 = vadd.f32 0.0, %v1945
    %1947 = vmatmul.f32.gmra.mxu0 %v1920
    %v1948 = vpop.f32.mrf.mxu0
    %v1949 = vadd.f32 0.0, %v1948
    %1950 = vmatmul.f32.gmra.mxu0 %v1923
    %v1951 = vpop.f32.mrf.mxu0
    %v1952 = vadd.f32 0.0, %v1951
    %1953 = vmatmul.f32.gmra.mxu0 %v1926
    %v1954 = vpop.f32.mrf.mxu0
    %v1955 = vadd.f32 0.0, %v1954
    %1956 = vdwg.mxu0
    %v1958 = vsel %vm517, %v1946, 0
    %v1961 = vsel %vm517, %v1949, 0
    %v1964 = vsel %vm517, %v1952, 0
    %v1967 = vsel %vm517, %v1955, 0
    %1969 = vmatpush.msra.mxu0 0.0
    %1970 = vmatpush.msra.mxu0 0.0
    %1971 = vmatpush.msra.mxu0 0.0
    %1972 = vmatpush.msra.mxu0 0.0
    %1973 = vmatpush.msra.mxu0 0.0
    %1974 = vmatpush.msra.mxu0 0.0
    %1975 = vmatpush.msra.mxu0 0.0
    %1976 = vmatpush.msra.mxu0 0.0
    %1977 = vmatpush.msra.mxu0 0.0
    %1978 = vmatpush.msra.mxu0 0.0
    %1979 = vmatpush.msra.mxu0 0.0
    %1980 = vmatpush.msra.mxu0 0.0
    %1981 = vmatpush.msra.mxu0 0.0
    %1982 = vmatpush.msra.mxu0 0.0
    %1983 = vmatpush.msra.mxu0 %v1501
    %1984 = vmatpush.msra.mxu0 %v1500
    %1985 = vmatmul.f32.gmra.mxu0 %v1958
    %v1986 = vpop.f32.mrf.mxu0
    %v1987 = vadd.f32 0.0, %v1986
    %1988 = vmatmul.f32.gmra.mxu0 %v1961
    %v1989 = vpop.f32.mrf.mxu0
    %v1990 = vadd.f32 0.0, %v1989
    %1991 = vmatmul.f32.gmra.mxu0 %v1964
    %v1992 = vpop.f32.mrf.mxu0
    %v1993 = vadd.f32 0.0, %v1992
    %1994 = vmatmul.f32.gmra.mxu0 %v1967
    %v1995 = vpop.f32.mrf.mxu0
    %v1996 = vadd.f32 0.0, %v1995
    %1997 = vdwg.mxu0
    %v1999 = vsel %vm517, %v1788, 0
    %v2002 = vsel %vm517, %v1791, 0
    %v2005 = vsel %vm517, %v1794, 0
    %v2008 = vsel %vm517, %v1797, 0
    %2010 = vmatpush.msra.mxu0 0.0
    %2011 = vmatpush.msra.mxu0 0.0
    %2012 = vmatpush.msra.mxu0 0.0
    %2013 = vmatpush.msra.mxu0 0.0
    %2014 = vmatpush.msra.mxu0 0.0
    %2015 = vmatpush.msra.mxu0 0.0
    %2016 = vmatpush.msra.mxu0 0.0
    %2017 = vmatpush.msra.mxu0 0.0
    %2018 = vmatpush.msra.mxu0 0.0
    %2019 = vmatpush.msra.mxu0 0.0
    %2020 = vmatpush.msra.mxu0 0.0
    %2021 = vmatpush.msra.mxu0 0.0
    %2022 = vmatpush.msra.mxu0 0.0
    %2023 = vmatpush.msra.mxu0 0.0
    %2024 = vmatpush.msra.mxu0 %v1499
    %2025 = vmatpush.msra.mxu0 %v1498
    %2026 = vmatmul.f32.gmra.mxu0 %v1999
    %v2027 = vpop.f32.mrf.mxu0
    %v2028 = vadd.f32 %v1987, %v2027
    %2029 = vmatmul.f32.gmra.mxu0 %v2002
    %v2030 = vpop.f32.mrf.mxu0
    %v2031 = vadd.f32 %v1990, %v2030
    %2032 = vmatmul.f32.gmra.mxu0 %v2005
    %v2033 = vpop.f32.mrf.mxu0
    %v2034 = vadd.f32 %v1993, %v2033
    %2035 = vmatmul.f32.gmra.mxu0 %v2008
    %v2036 = vpop.f32.mrf.mxu0
    %v2037 = vadd.f32 %v1996, %v2036
    %2038 = vdwg.mxu0
    %v2040 = vperm.slane %v1502, 0
    %v2042 = vadd.f32 %v2028, %v2040
    %v2043 = vadd.f32 %v2031, %v2040
    %v2044 = vadd.f32 %v2034, %v2040
    %v2045 = vadd.f32 %v2037, %v2040
    %v2046 = vadd.f32 %v2042, %v1597
    %v2047 = vadd.f32 %v2043, %v1598
    %v2048 = vadd.f32 %v2044, %v1599
    %v2049 = vadd.f32 %v2045, %v1600
    %v2050 = vsel %vm668, %v2046, 0.0
    %2051 = vadd.xlane.f32.xlu0 %v2050
    %v2052 = vpop.xlane.xlu0 %2051
    %v2053 = vsel %vm668, %v2047, 0.0
    %2054 = vadd.xlane.f32.xlu0 %v2053
    %v2055 = vpop.xlane.xlu0 %2054
    %v2056 = vsel %vm668, %v2048, 0.0
    %2057 = vadd.xlane.f32.xlu0 %v2056
    %v2058 = vpop.xlane.xlu0 %2057
    %v2059 = vsel %vm668, %v2049, 0.0
    %2060 = vadd.xlane.f32.xlu0 %v2059
    %v2061 = vpop.xlane.xlu0 %2060
    %v2062 = vmul.f32 %v2052, %v1035
    %v2063 = vmul.f32 %v2055, %v1035
    %v2064 = vmul.f32 %v2058, %v1035
    %v2065 = vmul.f32 %v2061, %v1035
    %v2066 = vsub.f32 %v2046, %v2062
    %v2067 = vsub.f32 %v2047, %v2063
    %v2068 = vsub.f32 %v2048, %v2064
    %v2069 = vsub.f32 %v2049, %v2065
    %v2070 = vmul.f32 %v2066, %v2066
    %v2071 = vmul.f32 %v2067, %v2067
    %v2072 = vmul.f32 %v2068, %v2068
    %v2073 = vmul.f32 %v2069, %v2069
    %v2074 = vsel %vm668, %v2070, 0.0
    %2075 = vadd.xlane.f32.xlu0 %v2074
    %v2076 = vpop.xlane.xlu0 %2075
    %v2077 = vsel %vm668, %v2071, 0.0
    %2078 = vadd.xlane.f32.xlu0 %v2077
    %v2079 = vpop.xlane.xlu0 %2078
    %v2080 = vsel %vm668, %v2072, 0.0
    %2081 = vadd.xlane.f32.xlu0 %v2080
    %v2082 = vpop.xlane.xlu0 %2081
    %v2083 = vsel %vm668, %v2073, 0.0
    %2084 = vadd.xlane.f32.xlu0 %v2083
    %v2085 = vpop.xlane.xlu0 %2084
    %v2086 = vmul.f32 %v2076, %v1035
    %v2087 = vmul.f32 %v2079, %v1035
    %v2088 = vmul.f32 %v2082, %v1035
    %v2089 = vmul.f32 %v2085, %v1035
    %v2090 = vadd.f32 %v2086, 1e-05
    %v2091 = vadd.f32 %v2087, 1e-05
    %v2092 = vadd.f32 %v2088, 1e-05
    %v2093 = vadd.f32 %v2089, 1e-05
    %v2094 = vrsqrt.pop %v2090
    %v2095 = vmul.f32 %v2094, %v2090
    %v2096 = vmul.f32 %v2095, %v2094
    %v2097 = vmul.f32 0.5, %v2096
    %v2098 = vsub.f32 1.5, %v2097
    %v2099 = vmul.f32 %v2094, %v2098
    %vm2100 = vweird.f32 %v2090
    %vm2101 = vweird.f32 %v2094
    %vm2102 = vmor %vm2100, %vm2101
    %v2103 = vsel %vm2102, %v2094, %v2099
    %v2104 = vrsqrt.pop %v2091
    %v2105 = vmul.f32 %v2104, %v2091
    %v2106 = vmul.f32 %v2105, %v2104
    %v2107 = vmul.f32 0.5, %v2106
    %v2108 = vsub.f32 1.5, %v2107
    %v2109 = vmul.f32 %v2104, %v2108
    %vm2110 = vweird.f32 %v2091
    %vm2111 = vweird.f32 %v2104
    %vm2112 = vmor %vm2110, %vm2111
    %v2113 = vsel %vm2112, %v2104, %v2109
    %v2114 = vrsqrt.pop %v2092
    %v2115 = vmul.f32 %v2114, %v2092
    %v2116 = vmul.f32 %v2115, %v2114
    %v2117 = vmul.f32 0.5, %v2116
    %v2118 = vsub.f32 1.5, %v2117
    %v2119 = vmul.f32 %v2114, %v2118
    %vm2120 = vweird.f32 %v2092
    %vm2121 = vweird.f32 %v2114
    %vm2122 = vmor %vm2120, %vm2121
    %v2123 = vsel %vm2122, %v2114, %v2119
    %v2124 = vrsqrt.pop %v2093
    %v2125 = vmul.f32 %v2124, %v2093
    %v2126 = vmul.f32 %v2125, %v2124
    %v2127 = vmul.f32 0.5, %v2126
    %v2128 = vsub.f32 1.5, %v2127
    %v2129 = vmul.f32 %v2124, %v2128
    %vm2130 = vweird.f32 %v2093
    %vm2131 = vweird.f32 %v2124
    %vm2132 = vmor %vm2130, %vm2131
    %v2133 = vsel %vm2132, %v2124, %v2129
    %v2134 = vmul.f32 %v2066, %v2103
    %v2135 = vmul.f32 %v2067, %v2113
    %v2136 = vmul.f32 %v2068, %v2123
    %v2137 = vmul.f32 %v2069, %v2133
    %v2139 = vperm.slane %v1503, 0
    %v2141 = vmul.f32 %v2134, %v2139
    %v2142 = vmul.f32 %v2135, %v2139
    %v2143 = vmul.f32 %v2136, %v2139
    %v2144 = vmul.f32 %v2137, %v2139
    %v2146 = vperm.slane %v1504, 0
    %v2148 = vadd.f32 %v2141, %v2146
    %v2149 = vadd.f32 %v2142, %v2146
    %v2150 = vadd.f32 %v2143, %v2146
    %v2151 = vadd.f32 %v2144, %v2146
    %v2153 = vperm.slane %v1509, 0
    %v2156 = vsel %vm668, %v2148, 0
    %v2159 = vsel %vm668, %v2149, 0
    %v2162 = vsel %vm668, %v2150, 0
    %v2165 = vsel %vm668, %v2151, 0
    %2167 = vmatpush.msra.mxu0 0.0
    %2168 = vmatpush.msra.mxu0 0.0
    %2169 = vmatpush.msra.mxu0 0.0
    %2170 = vmatpush.msra.mxu0 0.0
    %2171 = vmatpush.msra.mxu0 0.0
    %2172 = vmatpush.msra.mxu0 0.0
    %2173 = vmatpush.msra.mxu0 0.0
    %2174 = vmatpush.msra.mxu0 0.0
    %2175 = vmatpush.msra.mxu0 0.0
    %2176 = vmatpush.msra.mxu0 0.0
    %2177 = vmatpush.msra.mxu0 0.0
    %2178 = vmatpush.msra.mxu0 0.0
    %2179 = vmatpush.msra.mxu0 %v1508
    %2180 = vmatpush.msra.mxu0 %v1507
    %2181 = vmatpush.msra.mxu0 %v1506
    %2182 = vmatpush.msra.mxu0 %v1505
    %2183 = vmatmul.f32.gmra.mxu0 %v2156
    %v2184 = vpop.f32.mrf.mxu0
    %v2185 = vadd.f32 %v2153, %v2184
    %2186 = vmatmul.f32.gmra.mxu0 %v2159
    %v2187 = vpop.f32.mrf.mxu0
    %v2188 = vadd.f32 %v2153, %v2187
    %2189 = vmatmul.f32.gmra.mxu0 %v2162
    %v2190 = vpop.f32.mrf.mxu0
    %v2191 = vadd.f32 %v2153, %v2190
    %2192 = vmatmul.f32.gmra.mxu0 %v2165
    %v2193 = vpop.f32.mrf.mxu0
    %v2194 = vadd.f32 %v2153, %v2193
    %2195 = vdwg.mxu0
    %v2196 = vmax.f32 %v2185, 0.0
    %v2197 = vmax.f32 %v2188, 0.0
    %v2198 = vmax.f32 %v2191, 0.0
    %v2199 = vmax.f32 %v2194, 0.0
    %v2201 = vperm.slane %v1514, 0
    %v2204 = vsel %vm668, %v2196, 0
    %v2207 = vsel %vm668, %v2197, 0
    %v2210 = vsel %vm668, %v2198, 0
    %v2213 = vsel %vm668, %v2199, 0
    %2215 = vmatpush.msra.mxu0 0.0
    %2216 = vmatpush.msra.mxu0 0.0
    %2217 = vmatpush.msra.mxu0 0.0
    %2218 = vmatpush.msra.mxu0 0.0
    %2219 = vmatpush.msra.mxu0 0.0
    %2220 = vmatpush.msra.mxu0 0.0
    %2221 = vmatpush.msra.mxu0 0.0
    %2222 = vmatpush.msra.mxu0 0.0
    %2223 = vmatpush.msra.mxu0 0.0
    %2224 = vmatpush.msra.mxu0 0.0
    %2225 = vmatpush.msra.mxu0 0.0
    %2226 = vmatpush.msra.mxu0 0.0
    %2227 = vmatpush.msra.mxu0 %v1513
    %2228 = vmatpush.msra.mxu0 %v1512
    %2229 = vmatpush.msra.mxu0 %v1511
    %2230 = vmatpush.msra.mxu0 %v1510
    %2231 = vmatmul.f32.gmra.mxu0 %v2204
    %v2232 = vpop.f32.mrf.mxu0
    %v2233 = vadd.f32 %v2201, %v2232
    %2234 = vmatmul.f32.gmra.mxu0 %v2207
    %v2235 = vpop.f32.mrf.mxu0
    %v2236 = vadd.f32 %v2201, %v2235
    %2237 = vmatmul.f32.gmra.mxu0 %v2210
    %v2238 = vpop.f32.mrf.mxu0
    %v2239 = vadd.f32 %v2201, %v2238
    %2240 = vmatmul.f32.gmra.mxu0 %v2213
    %v2241 = vpop.f32.mrf.mxu0
    %v2242 = vadd.f32 %v2201, %v2241
    %2243 = vdwg.mxu0
    %v2244 = vadd.f32 %v2233, %v2148
    %v2245 = vadd.f32 %v2236, %v2149
    %v2246 = vadd.f32 %v2239, %v2150
    %v2247 = vadd.f32 %v2242, %v2151
    %v2248 = vsel %vm668, %v2244, 0.0
    %2249 = vadd.xlane.f32.xlu0 %v2248
    %v2250 = vpop.xlane.xlu0 %2249
    %v2251 = vsel %vm668, %v2245, 0.0
    %2252 = vadd.xlane.f32.xlu0 %v2251
    %v2253 = vpop.xlane.xlu0 %2252
    %v2254 = vsel %vm668, %v2246, 0.0
    %2255 = vadd.xlane.f32.xlu0 %v2254
    %v2256 = vpop.xlane.xlu0 %2255
    %v2257 = vsel %vm668, %v2247, 0.0
    %2258 = vadd.xlane.f32.xlu0 %v2257
    %v2259 = vpop.xlane.xlu0 %2258
    %v2260 = vmul.f32 %v2250, %v1035
    %v2261 = vmul.f32 %v2253, %v1035
    %v2262 = vmul.f32 %v2256, %v1035
    %v2263 = vmul.f32 %v2259, %v1035
    %v2264 = vsub.f32 %v2244, %v2260
    %v2265 = vsub.f32 %v2245, %v2261
    %v2266 = vsub.f32 %v2246, %v2262
    %v2267 = vsub.f32 %v2247, %v2263
    %v2268 = vmul.f32 %v2264, %v2264
    %v2269 = vmul.f32 %v2265, %v2265
    %v2270 = vmul.f32 %v2266, %v2266
    %v2271 = vmul.f32 %v2267, %v2267
    %v2272 = vsel %vm668, %v2268, 0.0
    %2273 = vadd.xlane.f32.xlu0 %v2272
    %v2274 = vpop.xlane.xlu0 %2273
    %v2275 = vsel %vm668, %v2269, 0.0
    %2276 = vadd.xlane.f32.xlu0 %v2275
    %v2277 = vpop.xlane.xlu0 %2276
    %v2278 = vsel %vm668, %v2270, 0.0
    %2279 = vadd.xlane.f32.xlu0 %v2278
    %v2280 = vpop.xlane.xlu0 %2279
    %v2281 = vsel %vm668, %v2271, 0.0
    %2282 = vadd.xlane.f32.xlu0 %v2281
    %v2283 = vpop.xlane.xlu0 %2282
    %v2284 = vmul.f32 %v2274, %v1035
    %v2285 = vmul.f32 %v2277, %v1035
    %v2286 = vmul.f32 %v2280, %v1035
    %v2287 = vmul.f32 %v2283, %v1035
    %v2288 = vadd.f32 %v2284, 1e-05
    %v2289 = vadd.f32 %v2285, 1e-05
    %v2290 = vadd.f32 %v2286, 1e-05
    %v2291 = vadd.f32 %v2287, 1e-05
    %v2292 = vrsqrt.pop %v2288
    %v2293 = vmul.f32 %v2292, %v2288
    %v2294 = vmul.f32 %v2293, %v2292
    %v2295 = vmul.f32 0.5, %v2294
    %v2296 = vsub.f32 1.5, %v2295
    %v2297 = vmul.f32 %v2292, %v2296
    %vm2298 = vweird.f32 %v2288
    %vm2299 = vweird.f32 %v2292
    %vm2300 = vmor %vm2298, %vm2299
    %v2301 = vsel %vm2300, %v2292, %v2297
    %v2302 = vrsqrt.pop %v2289
    %v2303 = vmul.f32 %v2302, %v2289
    %v2304 = vmul.f32 %v2303, %v2302
    %v2305 = vmul.f32 0.5, %v2304
    %v2306 = vsub.f32 1.5, %v2305
    %v2307 = vmul.f32 %v2302, %v2306
    %vm2308 = vweird.f32 %v2289
    %vm2309 = vweird.f32 %v2302
    %vm2310 = vmor %vm2308, %vm2309
    %v2311 = vsel %vm2310, %v2302, %v2307
    %v2312 = vrsqrt.pop %v2290
    %v2313 = vmul.f32 %v2312, %v2290
    %v2314 = vmul.f32 %v2313, %v2312
    %v2315 = vmul.f32 0.5, %v2314
    %v2316 = vsub.f32 1.5, %v2315
    %v2317 = vmul.f32 %v2312, %v2316
    %vm2318 = vweird.f32 %v2290
    %vm2319 = vweird.f32 %v2312
    %vm2320 = vmor %vm2318, %vm2319
    %v2321 = vsel %vm2320, %v2312, %v2317
    %v2322 = vrsqrt.pop %v2291
    %v2323 = vmul.f32 %v2322, %v2291
    %v2324 = vmul.f32 %v2323, %v2322
    %v2325 = vmul.f32 0.5, %v2324
    %v2326 = vsub.f32 1.5, %v2325
    %v2327 = vmul.f32 %v2322, %v2326
    %vm2328 = vweird.f32 %v2291
    %vm2329 = vweird.f32 %v2322
    %vm2330 = vmor %vm2328, %vm2329
    %v2331 = vsel %vm2330, %v2322, %v2327
    %v2332 = vmul.f32 %v2264, %v2301
    %v2333 = vmul.f32 %v2265, %v2311
    %v2334 = vmul.f32 %v2266, %v2321
    %v2335 = vmul.f32 %v2267, %v2331
    %v2337 = vperm.slane %v1515, 0
    %v2339 = vmul.f32 %v2332, %v2337
    %v2340 = vmul.f32 %v2333, %v2337
    %v2341 = vmul.f32 %v2334, %v2337
    %v2342 = vmul.f32 %v2335, %v2337
    %v2344 = vperm.slane %v1516, 0
    %v2346 = vadd.f32 %v2339, %v2344
    %v2347 = vadd.f32 %v2340, %v2344
    %v2348 = vadd.f32 %v2341, %v2344
    %v2349 = vadd.f32 %v2342, %v2344
    %v2351 = vperm.slane %v1521, 0
    %v2354 = vsel %vm668, %v2346, 0
    %v2357 = vsel %vm668, %v2347, 0
    %v2360 = vsel %vm668, %v2348, 0
    %v2363 = vsel %vm668, %v2349, 0
    %2365 = vmatpush.msra.mxu0 0.0
    %2366 = vmatpush.msra.mxu0 0.0
    %2367 = vmatpush.msra.mxu0 0.0
    %2368 = vmatpush.msra.mxu0 0.0
    %2369 = vmatpush.msra.mxu0 0.0
    %2370 = vmatpush.msra.mxu0 0.0
    %2371 = vmatpush.msra.mxu0 0.0
    %2372 = vmatpush.msra.mxu0 0.0
    %2373 = vmatpush.msra.mxu0 0.0
    %2374 = vmatpush.msra.mxu0 0.0
    %2375 = vmatpush.msra.mxu0 0.0
    %2376 = vmatpush.msra.mxu0 0.0
    %2377 = vmatpush.msra.mxu0 %v1520
    %2378 = vmatpush.msra.mxu0 %v1519
    %2379 = vmatpush.msra.mxu0 %v1518
    %2380 = vmatpush.msra.mxu0 %v1517
    %2381 = vmatmul.f32.gmra.mxu0 %v2354
    %v2382 = vpop.f32.mrf.mxu0
    %v2383 = vadd.f32 %v2351, %v2382
    %2384 = vmatmul.f32.gmra.mxu0 %v2357
    %v2385 = vpop.f32.mrf.mxu0
    %v2386 = vadd.f32 %v2351, %v2385
    %2387 = vmatmul.f32.gmra.mxu0 %v2360
    %v2388 = vpop.f32.mrf.mxu0
    %v2389 = vadd.f32 %v2351, %v2388
    %2390 = vmatmul.f32.gmra.mxu0 %v2363
    %v2391 = vpop.f32.mrf.mxu0
    %v2392 = vadd.f32 %v2351, %v2391
    %2393 = vdwg.mxu0
    %v2394 = vsel %vm517, %v2383, 0.0
    %2395 = vadd.xlane.f32.xlu0 %v2394
    %v2396 = vpop.xlane.xlu0 %2395
    %v2397 = vsel %vm517, %v2386, 0.0
    %2398 = vadd.xlane.f32.xlu0 %v2397
    %v2399 = vpop.xlane.xlu0 %2398
    %v2400 = vsel %vm517, %v2389, 0.0
    %2401 = vadd.xlane.f32.xlu0 %v2400
    %v2402 = vpop.xlane.xlu0 %2401
    %v2403 = vsel %vm517, %v2392, 0.0
    %2404 = vadd.xlane.f32.xlu0 %v2403
    %v2405 = vpop.xlane.xlu0 %2404
    %v2406 = vmul.f32 %v2396, %v1386
    %v2407 = vmul.f32 %v2399, %v1386
    %v2408 = vmul.f32 %v2402, %v1386
    %v2409 = vmul.f32 %v2405, %v1386
    %v2410 = vsub.f32 %v2383, %v2406
    %v2411 = vsub.f32 %v2386, %v2407
    %v2412 = vsub.f32 %v2389, %v2408
    %v2413 = vsub.f32 %v2392, %v2409
    %v2414 = vmul.f32 %v2410, %v2410
    %v2415 = vmul.f32 %v2411, %v2411
    %v2416 = vmul.f32 %v2412, %v2412
    %v2417 = vmul.f32 %v2413, %v2413
    %v2418 = vsel %vm517, %v2414, 0.0
    %2419 = vadd.xlane.f32.xlu0 %v2418
    %v2420 = vpop.xlane.xlu0 %2419
    %v2421 = vsel %vm517, %v2415, 0.0
    %2422 = vadd.xlane.f32.xlu0 %v2421
    %v2423 = vpop.xlane.xlu0 %2422
    %v2424 = vsel %vm517, %v2416, 0.0
    %2425 = vadd.xlane.f32.xlu0 %v2424
    %v2426 = vpop.xlane.xlu0 %2425
    %v2427 = vsel %vm517, %v2417, 0.0
    %2428 = vadd.xlane.f32.xlu0 %v2427
    %v2429 = vpop.xlane.xlu0 %2428
    %v2430 = vmul.f32 %v2420, %v1386
    %v2431 = vmul.f32 %v2423, %v1386
    %v2432 = vmul.f32 %v2426, %v1386
    %v2433 = vmul.f32 %v2429, %v1386
    %v2434 = vadd.f32 %v2430, 1e-05
    %v2435 = vadd.f32 %v2431, 1e-05
    %v2436 = vadd.f32 %v2432, 1e-05
    %v2437 = vadd.f32 %v2433, 1e-05
    %v2438 = vrsqrt.pop %v2434
    %v2439 = vmul.f32 %v2438, %v2434
    %v2440 = vmul.f32 %v2439, %v2438
    %v2441 = vmul.f32 0.5, %v2440
    %v2442 = vsub.f32 1.5, %v2441
    %v2443 = vmul.f32 %v2438, %v2442
    %vm2444 = vweird.f32 %v2434
    %vm2445 = vweird.f32 %v2438
    %vm2446 = vmor %vm2444, %vm2445
    %v2447 = vsel %vm2446, %v2438, %v2443
    %v2448 = vrsqrt.pop %v2435
    %v2449 = vmul.f32 %v2448, %v2435
    %v2450 = vmul.f32 %v2449, %v2448
    %v2451 = vmul.f32 0.5, %v2450
    %v2452 = vsub.f32 1.5, %v2451
    %v2453 = vmul.f32 %v2448, %v2452
    %vm2454 = vweird.f32 %v2435
    %vm2455 = vweird.f32 %v2448
    %vm2456 = vmor %vm2454, %vm2455
    %v2457 = vsel %vm2456, %v2448, %v2453
    %v2458 = vrsqrt.pop %v2436
    %v2459 = vmul.f32 %v2458, %v2436
    %v2460 = vmul.f32 %v2459, %v2458
    %v2461 = vmul.f32 0.5, %v2460
    %v2462 = vsub.f32 1.5, %v2461
    %v2463 = vmul.f32 %v2458, %v2462
    %vm2464 = vweird.f32 %v2436
    %vm2465 = vweird.f32 %v2458
    %vm2466 = vmor %vm2464, %vm2465
    %v2467 = vsel %vm2466, %v2458, %v2463
    %v2468 = vrsqrt.pop %v2437
    %v2469 = vmul.f32 %v2468, %v2437
    %v2470 = vmul.f32 %v2469, %v2468
    %v2471 = vmul.f32 0.5, %v2470
    %v2472 = vsub.f32 1.5, %v2471
    %v2473 = vmul.f32 %v2468, %v2472
    %vm2474 = vweird.f32 %v2437
    %vm2475 = vweird.f32 %v2468
    %vm2476 = vmor %vm2474, %vm2475
    %v2477 = vsel %vm2476, %v2468, %v2473
    %v2478 = vmul.f32 %v2410, %v2447
    %v2479 = vmul.f32 %v2411, %v2457
    %v2480 = vmul.f32 %v2412, %v2467
    %v2481 = vmul.f32 %v2413, %v2477
    %v2483 = vperm.slane %v1522, 0
    %v2485 = vmul.f32 %v2478, %v2483
    %v2486 = vmul.f32 %v2479, %v2483
    %v2487 = vmul.f32 %v2480, %v2483
    %v2488 = vmul.f32 %v2481, %v2483
    %v2490 = vperm.slane %v1523, 0
    %v2492 = vadd.f32 %v2485, %v2490
    %v2493 = vadd.f32 %v2486, %v2490
    %v2494 = vadd.f32 %v2487, %v2490
    %v2495 = vadd.f32 %v2488, %v2490
    %v2496 = vmax.f32 %v2492, 0.0
    %v2497 = vmax.f32 %v2493, 0.0
    %v2498 = vmax.f32 %v2494, 0.0
    %v2499 = vmax.f32 %v2495, 0.0
    %v2500 = vld [vmem:[%s83] sm:$0xff]
    %v2501 = vld [vmem:[%s83 + $0x8] sm:$0xff]
    %v2502 = vld [vmem:[%s85] sm:$0xff]
    %v2503 = vld [vmem:[%s87] sm:$0x1]
    %v2504 = vld [vmem:[%s89] sm:$0xff]
    %v2505 = vld [vmem:[%s89 + $0x8] sm:$0xff]
    %v2506 = vld [vmem:[%s89 + $0x10] sm:$0xff]
    %v2507 = vld [vmem:[%s89 + $0x18] sm:$0xff]
    %v2508 = vld [vmem:[%s89 + $0x20] sm:$0xff]
    %v2509 = vld [vmem:[%s89 + $0x28] sm:$0xff]
    %v2510 = vld [vmem:[%s89 + $0x30] sm:$0xff]
    %v2511 = vld [vmem:[%s89 + $0x38] sm:$0xff]
    %v2512 = vld [vmem:[%s89 + $0x40] sm:$0xff]
    %v2513 = vld [vmem:[%s89 + $0x48] sm:$0xff]
    %v2514 = vld [vmem:[%s89 + $0x50] sm:$0xff]
    %v2515 = vld [vmem:[%s89 + $0x58] sm:$0xff]
    %v2516 = vld [vmem:[%s91] sm:$0x1]
    %v2517 = vld [vmem:[%s93] sm:$0xff]
    %v2518 = vld [vmem:[%s93 + $0x8] sm:$0xff]
    %v2519 = vld [vmem:[%s93 + $0x10] sm:$0xff]
    %v2520 = vld [vmem:[%s93 + $0x18] sm:$0xff]
    %v2521 = vld [vmem:[%s95] sm:$0x1]
    %v2522 = vld [vmem:[%s97] sm:$0x1]
    %v2523 = vld [vmem:[%s99] sm:$0x1]
    %v2524 = vld [vmem:[%s101] sm:$0xff]
    %v2525 = vld [vmem:[%s101 + $0x8] sm:$0xff]
    %v2526 = vld [vmem:[%s101 + $0x10] sm:$0xff]
    %v2527 = vld [vmem:[%s101 + $0x18] sm:$0xff]
    %v2528 = vld [vmem:[%s103] sm:$0x1]
    %v2529 = vld [vmem:[%s105] sm:$0xff]
    %v2530 = vld [vmem:[%s105 + $0x8] sm:$0xff]
    %v2531 = vld [vmem:[%s105 + $0x10] sm:$0xff]
    %v2532 = vld [vmem:[%s105 + $0x18] sm:$0xff]
    %v2533 = vld [vmem:[#allocation2] sm:$0x1]
    %v2534 = vld [vmem:[#allocation5] sm:$0x1]
    %v2535 = vld [vmem:[#allocation7] sm:$0x1]
    %v2536 = vld [vmem:[%s113] sm:$0xff]
    %v2537 = vld [vmem:[%s113 + $0x8] sm:$0xff]
    %v2538 = vld [vmem:[%s113 + $0x10] sm:$0xff]
    %v2539 = vld [vmem:[%s113 + $0x18] sm:$0xff]
    %v2540 = vld [vmem:[#allocation8] sm:$0x1]
    %v2541 = vld [vmem:[#allocation10] sm:$0x1]
    %v2542 = vld [vmem:[#allocation11] sm:$0x1]
    %2543 = vmatpush.msra.mxu0 0.0
    %2544 = vmatpush.msra.mxu0 0.0
    %2545 = vmatpush.msra.mxu0 0.0
    %2546 = vmatpush.msra.mxu0 0.0
    %2547 = vmatpush.msra.mxu0 0.0
    %2548 = vmatpush.msra.mxu0 0.0
    %2549 = vmatpush.msra.mxu0 0.0
    %2550 = vmatpush.msra.mxu0 0.0
    %2551 = vmatpush.msra.mxu0 0.0
    %2552 = vmatpush.msra.mxu0 0.0
    %2553 = vmatpush.msra.mxu0 0.0
    %2554 = vmatpush.msra.mxu0 0.0
    %2555 = vmatpush.msra.mxu0 0.0
    %2556 = vmatpush.msra.mxu0 0.0
    %2557 = vmatpush.msra.mxu0 0.0
    %2558 = vmatpush.msra.mxu0 %v2502
    %2559 = vmatmul.f32.gmra.mxu0 %v477
    %v2560 = vpop.f32.mrf.mxu0
    %v2561 = vadd.f32 0.0, %v2560
    %2562 = vmatmul.f32.gmra.mxu0 %v480
    %v2563 = vpop.f32.mrf.mxu0
    %v2564 = vadd.f32 0.0, %v2563
    %2565 = vmatmul.f32.gmra.mxu0 %v483
    %v2566 = vpop.f32.mrf.mxu0
    %v2567 = vadd.f32 0.0, %v2566
    %2568 = vmatmul.f32.gmra.mxu0 %v486
    %v2569 = vpop.f32.mrf.mxu0
    %v2570 = vadd.f32 0.0, %v2569
    %2571 = vdwg.mxu0
    %v2573 = vsel %vm517, %v2496, 0
    %v2576 = vsel %vm517, %v2497, 0
    %v2579 = vsel %vm517, %v2498, 0
    %v2582 = vsel %vm517, %v2499, 0
    %2584 = vmatpush.msra.mxu0 0.0
    %2585 = vmatpush.msra.mxu0 0.0
    %2586 = vmatpush.msra.mxu0 0.0
    %2587 = vmatpush.msra.mxu0 0.0
    %2588 = vmatpush.msra.mxu0 0.0
    %2589 = vmatpush.msra.mxu0 0.0
    %2590 = vmatpush.msra.mxu0 0.0
    %2591 = vmatpush.msra.mxu0 0.0
    %2592 = vmatpush.msra.mxu0 0.0
    %2593 = vmatpush.msra.mxu0 0.0
    %2594 = vmatpush.msra.mxu0 0.0
    %2595 = vmatpush.msra.mxu0 0.0
    %2596 = vmatpush.msra.mxu0 0.0
    %2597 = vmatpush.msra.mxu0 0.0
    %2598 = vmatpush.msra.mxu0 %v2501
    %2599 = vmatpush.msra.mxu0 %v2500
    %2600 = vmatmul.f32.gmra.mxu0 %v2573
    %v2601 = vpop.f32.mrf.mxu0
    %v2602 = vadd.f32 %v2561, %v2601
    %2603 = vmatmul.f32.gmra.mxu0 %v2576
    %v2604 = vpop.f32.mrf.mxu0
    %v2605 = vadd.f32 %v2564, %v2604
    %2606 = vmatmul.f32.gmra.mxu0 %v2579
    %v2607 = vpop.f32.mrf.mxu0
    %v2608 = vadd.f32 %v2567, %v2607
    %2609 = vmatmul.f32.gmra.mxu0 %v2582
    %v2610 = vpop.f32.mrf.mxu0
    %v2611 = vadd.f32 %v2570, %v2610
    %2612 = vdwg.mxu0
    %v2614 = vperm.slane %v2503, 0
    %v2616 = vadd.f32 %v2602, %v2614
    %v2617 = vadd.f32 %v2605, %v2614
    %v2618 = vadd.f32 %v2608, %v2614
    %v2619 = vadd.f32 %v2611, %v2614
    %v2621 = vperm.slane %v2516, 0
    %v2624 = vsel %vm569, %v2616, 0
    %v2627 = vsel %vm569, %v2617, 0
    %v2630 = vsel %vm569, %v2618, 0
    %v2633 = vsel %vm569, %v2619, 0
    %2635 = vmatpush.msra.mxu0 0.0
    %2636 = vmatpush.msra.mxu0 0.0
    %2637 = vmatpush.msra.mxu0 0.0
    %2638 = vmatpush.msra.mxu0 0.0
    %2639 = vmatpush.msra.mxu0 %v2515
    %2640 = vmatpush.msra.mxu0 %v2514
    %2641 = vmatpush.msra.mxu0 %v2513
    %2642 = vmatpush.msra.mxu0 %v2512
    %2643 = vmatpush.msra.mxu0 %v2511
    %2644 = vmatpush.msra.mxu0 %v2510
    %2645 = vmatpush.msra.mxu0 %v2509
    %2646 = vmatpush.msra.mxu0 %v2508
    %2647 = vmatpush.msra.mxu0 %v2507
    %2648 = vmatpush.msra.mxu0 %v2506
    %2649 = vmatpush.msra.mxu0 %v2505
    %2650 = vmatpush.msra.mxu0 %v2504
    %2651 = vmatmul.f32.gmra.mxu0 %v2624
    %v2652 = vpop.f32.mrf.mxu0
    %v2653 = vadd.f32 %v2621, %v2652
    %2654 = vmatmul.f32.gmra.mxu0 %v2627
    %v2655 = vpop.f32.mrf.mxu0
    %v2656 = vadd.f32 %v2621, %v2655
    %2657 = vmatmul.f32.gmra.mxu0 %v2630
    %v2658 = vpop.f32.mrf.mxu0
    %v2659 = vadd.f32 %v2621, %v2658
    %2660 = vmatmul.f32.gmra.mxu0 %v2633
    %v2661 = vpop.f32.mrf.mxu0
    %v2662 = vadd.f32 %v2621, %v2661
    %2663 = vdwg.mxu0
    %2668 = vrot.lane.b32.xlu0 %v2653, 96
    %v2669 = vpop.permute.xlu0 %2668
    %2670 = vrot.lane.b32.xlu0 %v2656, 96
    %v2671 = vpop.permute.xlu0 %2670
    %2672 = vrot.lane.b32.xlu0 %v2659, 96
    %v2673 = vpop.permute.xlu0 %2672
    %2674 = vrot.lane.b32.xlu0 %v2662, 96
    %v2675 = vpop.permute.xlu0 %2674
    %v2676 = vsel %vm517, %v2653, 0
    %v2678 = vsel %vm517, %v2656, 0
    %v2680 = vsel %vm517, %v2659, 0
    %v2682 = vsel %vm517, %v2662, 0
    %v2684 = vsel %vm517, %v2669, 0
    %v2686 = vsel %vm517, %v2671, 0
    %v2688 = vsel %vm517, %v2673, 0
    %v2690 = vsel %vm517, %v2675, 0
    %2692 = vmatpush.xpose.msra.mxu0 0.0
    %2693 = vmatpush.xpose.msra.mxu0 0.0
    %2694 = vmatpush.xpose.msra.mxu0 0.0
    %2695 = vmatpush.xpose.msra.mxu0 0.0
    %2696 = vmatpush.xpose.msra.mxu0 0.0
    %2697 = vmatpush.xpose.msra.mxu0 0.0
    %2698 = vmatpush.xpose.msra.mxu0 0.0
    %2699 = vmatpush.xpose.msra.mxu0 0.0
    %2700 = vmatpush.xpose.msra.mxu0 0.0
    %2701 = vmatpush.xpose.msra.mxu0 0.0
    %2702 = vmatpush.xpose.msra.mxu0 0.0
    %2703 = vmatpush.xpose.msra.mxu0 0.0
    %2704 = vmatpush.xpose.msra.mxu0 %v2690
    %2705 = vmatpush.xpose.msra.mxu0 %v2688
    %2706 = vmatpush.xpose.msra.mxu0 %v2686
    %2707 = vmatpush.xpose.msra.mxu0 %v2684
    %2708 = vmatmul.f32.gmra.mxu0 %v2676
    %v2709 = vpop.f32.mrf.mxu0
    %v2710 = vadd.f32 %v428, %v2709
    %2711 = vmatmul.f32.gmra.mxu0 %v2678
    %v2712 = vpop.f32.mrf.mxu0
    %v2713 = vadd.f32 %v429, %v2712
    %2714 = vmatmul.f32.gmra.mxu0 %v2680
    %v2715 = vpop.f32.mrf.mxu0
    %v2716 = vadd.f32 %v430, %v2715
    %2717 = vmatmul.f32.gmra.mxu0 %v2682
    %v2718 = vpop.f32.mrf.mxu0
    %v2719 = vadd.f32 %v431, %v2718
    %2720 = vdwg.mxu0
    %v2721 = vsel %vm668, %v2710, -inf
    %2722 = vmax.xlane.f32.xlu0 %v2721
    %v2723 = vpop.xlane.xlu0 %2722
    %v2724 = vsel %vm668, %v2713, -inf
    %2725 = vmax.xlane.f32.xlu0 %v2724
    %v2726 = vpop.xlane.xlu0 %2725
    %v2727 = vsel %vm668, %v2716, -inf
    %2728 = vmax.xlane.f32.xlu0 %v2727
    %v2729 = vpop.xlane.xlu0 %2728
    %v2730 = vsel %vm668, %v2719, -inf
    %2731 = vmax.xlane.f32.xlu0 %v2730
    %v2732 = vpop.xlane.xlu0 %2731
    %v2733 = vsub.f32 %v2710, %v2723
    %v2734 = vsub.f32 %v2713, %v2726
    %v2735 = vsub.f32 %v2716, %v2729
    %v2736 = vsub.f32 %v2719, %v2732
    %v2737 = vmul.f32 %v2733, 1.442695
    %v2738 = vpow.pop %v2737
    %v2739 = vmul.f32 %v2734, 1.442695
    %v2740 = vpow.pop %v2739
    %v2741 = vmul.f32 %v2735, 1.442695
    %v2742 = vpow.pop %v2741
    %v2743 = vmul.f32 %v2736, 1.442695
    %v2744 = vpow.pop %v2743
    %v2745 = vsel %vm668, %v2738, 0.0
    %2746 = vadd.xlane.f32.xlu0 %v2745
    %v2747 = vpop.xlane.xlu0 %2746
    %v2748 = vsel %vm668, %v2740, 0.0
    %2749 = vadd.xlane.f32.xlu0 %v2748
    %v2750 = vpop.xlane.xlu0 %2749
    %v2751 = vsel %vm668, %v2742, 0.0
    %2752 = vadd.xlane.f32.xlu0 %v2751
    %v2753 = vpop.xlane.xlu0 %2752
    %v2754 = vsel %vm668, %v2744, 0.0
    %2755 = vadd.xlane.f32.xlu0 %v2754
    %v2756 = vpop.xlane.xlu0 %2755
    %v2757 = vrcp.pop %v2747
    %v2758 = vrcp.pop %v2750
    %v2759 = vrcp.pop %v2753
    %v2760 = vrcp.pop %v2756
    %v2761 = vmul.f32 %v2738, %v2757
    %v2762 = vmul.f32 %v2740, %v2758
    %v2763 = vmul.f32 %v2742, %v2759
    %v2764 = vmul.f32 %v2744, %v2760
    %2765 = vrot.lane.b32.xlu0 %v2653, 64
    %v2766 = vpop.permute.xlu0 %2765
    %2767 = vrot.lane.b32.xlu0 %v2656, 64
    %v2768 = vpop.permute.xlu0 %2767
    %2769 = vrot.lane.b32.xlu0 %v2659, 64
    %v2770 = vpop.permute.xlu0 %2769
    %2771 = vrot.lane.b32.xlu0 %v2662, 64
    %v2772 = vpop.permute.xlu0 %2771
    %v2778 = vsel %vm668, %v2761, 0
    %v2781 = vsel %vm668, %v2762, 0
    %v2784 = vsel %vm668, %v2763, 0
    %v2787 = vsel %vm668, %v2764, 0
    %2789 = vmatpush.msra.mxu0 0.0
    %2790 = vmatpush.msra.mxu0 0.0
    %2791 = vmatpush.msra.mxu0 0.0
    %2792 = vmatpush.msra.mxu0 0.0
    %2793 = vmatpush.msra.mxu0 0.0
    %2794 = vmatpush.msra.mxu0 0.0
    %2795 = vmatpush.msra.mxu0 0.0
    %2796 = vmatpush.msra.mxu0 0.0
    %2797 = vmatpush.msra.mxu0 0.0
    %2798 = vmatpush.msra.mxu0 0.0
    %2799 = vmatpush.msra.mxu0 0.0
    %2800 = vmatpush.msra.mxu0 0.0
    %2801 = vmatpush.msra.mxu0 %v2772
    %2802 = vmatpush.msra.mxu0 %v2770
    %2803 = vmatpush.msra.mxu0 %v2768
    %2804 = vmatpush.msra.mxu0 %v2766
    %2805 = vmatmul.f32.gmra.mxu0 %v2778
    %v2806 = vpop.f32.mrf.mxu0
    %v2807 = vadd.f32 0.0, %v2806
    %2808 = vmatmul.f32.gmra.mxu0 %v2781
    %v2809 = vpop.f32.mrf.mxu0
    %v2810 = vadd.f32 0.0, %v2809
    %2811 = vmatmul.f32.gmra.mxu0 %v2784
    %v2812 = vpop.f32.mrf.mxu0
    %v2813 = vadd.f32 0.0, %v2812
    %2814 = vmatmul.f32.gmra.mxu0 %v2787
    %v2815 = vpop.f32.mrf.mxu0
    %v2816 = vadd.f32 0.0, %v2815
    %2817 = vdwg.mxu0
    %2818 = vrot.lane.b32.xlu0 %v2653, 112
    %v2819 = vpop.permute.xlu0 %2818
    %2820 = vrot.lane.b32.xlu0 %v2656, 112
    %v2821 = vpop.permute.xlu0 %2820
    %2822 = vrot.lane.b32.xlu0 %v2659, 112
    %v2823 = vpop.permute.xlu0 %2822
    %2824 = vrot.lane.b32.xlu0 %v2662, 112
    %v2825 = vpop.permute.xlu0 %2824
    %2826 = vrot.lane.b32.xlu0 %v2653, 80
    %v2827 = vpop.permute.xlu0 %2826
    %2828 = vrot.lane.b32.xlu0 %v2656, 80
    %v2829 = vpop.permute.xlu0 %2828
    %2830 = vrot.lane.b32.xlu0 %v2659, 80
    %v2831 = vpop.permute.xlu0 %2830
    %2832 = vrot.lane.b32.xlu0 %v2662, 80
    %v2833 = vpop.permute.xlu0 %2832
    %v2834 = vsel %vm517, %v2819, 0
    %v2836 = vsel %vm517, %v2821, 0
    %v2838 = vsel %vm517, %v2823, 0
    %v2840 = vsel %vm517, %v2825, 0
    %v2842 = vsel %vm517, %v2827, 0
    %v2844 = vsel %vm517, %v2829, 0
    %v2846 = vsel %vm517, %v2831, 0
    %v2848 = vsel %vm517, %v2833, 0
    %2850 = vmatpush.xpose.msra.mxu0 0.0
    %2851 = vmatpush.xpose.msra.mxu0 0.0
    %2852 = vmatpush.xpose.msra.mxu0 0.0
    %2853 = vmatpush.xpose.msra.mxu0 0.0
    %2854 = vmatpush.xpose.msra.mxu0 0.0
    %2855 = vmatpush.xpose.msra.mxu0 0.0
    %2856 = vmatpush.xpose.msra.mxu0 0.0
    %2857 = vmatpush.xpose.msra.mxu0 0.0
    %2858 = vmatpush.xpose.msra.mxu0 0.0
    %2859 = vmatpush.xpose.msra.mxu0 0.0
    %2860 = vmatpush.xpose.msra.mxu0 0.0
    %2861 = vmatpush.xpose.msra.mxu0 0.0
    %2862 = vmatpush.xpose.msra.mxu0 %v2848
    %2863 = vmatpush.xpose.msra.mxu0 %v2846
    %2864 = vmatpush.xpose.msra.mxu0 %v2844
    %2865 = vmatpush.xpose.msra.mxu0 %v2842
    %2866 = vmatmul.f32.gmra.mxu0 %v2834
    %v2867 = vpop.f32.mrf.mxu0
    %v2868 = vadd.f32 %v428, %v2867
    %2869 = vmatmul.f32.gmra.mxu0 %v2836
    %v2870 = vpop.f32.mrf.mxu0
    %v2871 = vadd.f32 %v429, %v2870
    %2872 = vmatmul.f32.gmra.mxu0 %v2838
    %v2873 = vpop.f32.mrf.mxu0
    %v2874 = vadd.f32 %v430, %v2873
    %2875 = vmatmul.f32.gmra.mxu0 %v2840
    %v2876 = vpop.f32.mrf.mxu0
    %v2877 = vadd.f32 %v431, %v2876
    %2878 = vdwg.mxu0
    %v2879 = vsel %vm668, %v2868, -inf
    %2880 = vmax.xlane.f32.xlu0 %v2879
    %v2881 = vpop.xlane.xlu0 %2880
    %v2882 = vsel %vm668, %v2871, -inf
    %2883 = vmax.xlane.f32.xlu0 %v2882
    %v2884 = vpop.xlane.xlu0 %2883
    %v2885 = vsel %vm668, %v2874, -inf
    %2886 = vmax.xlane.f32.xlu0 %v2885
    %v2887 = vpop.xlane.xlu0 %2886
    %v2888 = vsel %vm668, %v2877, -inf
    %2889 = vmax.xlane.f32.xlu0 %v2888
    %v2890 = vpop.xlane.xlu0 %2889
    %v2891 = vsub.f32 %v2868, %v2881
    %v2892 = vsub.f32 %v2871, %v2884
    %v2893 = vsub.f32 %v2874, %v2887
    %v2894 = vsub.f32 %v2877, %v2890
    %v2895 = vmul.f32 %v2891, 1.442695
    %v2896 = vpow.pop %v2895
    %v2897 = vmul.f32 %v2892, 1.442695
    %v2898 = vpow.pop %v2897
    %v2899 = vmul.f32 %v2893, 1.442695
    %v2900 = vpow.pop %v2899
    %v2901 = vmul.f32 %v2894, 1.442695
    %v2902 = vpow.pop %v2901
    %v2903 = vsel %vm668, %v2896, 0.0
    %2904 = vadd.xlane.f32.xlu0 %v2903
    %v2905 = vpop.xlane.xlu0 %2904
    %v2906 = vsel %vm668, %v2898, 0.0
    %2907 = vadd.xlane.f32.xlu0 %v2906
    %v2908 = vpop.xlane.xlu0 %2907
    %v2909 = vsel %vm668, %v2900, 0.0
    %2910 = vadd.xlane.f32.xlu0 %v2909
    %v2911 = vpop.xlane.xlu0 %2910
    %v2912 = vsel %vm668, %v2902, 0.0
    %2913 = vadd.xlane.f32.xlu0 %v2912
    %v2914 = vpop.xlane.xlu0 %2913
    %v2915 = vrcp.pop %v2905
    %v2916 = vrcp.pop %v2908
    %v2917 = vrcp.pop %v2911
    %v2918 = vrcp.pop %v2914
    %v2919 = vmul.f32 %v2896, %v2915
    %v2920 = vmul.f32 %v2898, %v2916
    %v2921 = vmul.f32 %v2900, %v2917
    %v2922 = vmul.f32 %v2902, %v2918
    %2923 = vrot.lane.b32.xlu0 %v2653, 48
    %v2924 = vpop.permute.xlu0 %2923
    %2925 = vrot.lane.b32.xlu0 %v2656, 48
    %v2926 = vpop.permute.xlu0 %2925
    %2927 = vrot.lane.b32.xlu0 %v2659, 48
    %v2928 = vpop.permute.xlu0 %2927
    %2929 = vrot.lane.b32.xlu0 %v2662, 48
    %v2930 = vpop.permute.xlu0 %2929
    %v2936 = vsel %vm668, %v2919, 0
    %v2939 = vsel %vm668, %v2920, 0
    %v2942 = vsel %vm668, %v2921, 0
    %v2945 = vsel %vm668, %v2922, 0
    %2947 = vmatpush.msra.mxu0 0.0
    %2948 = vmatpush.msra.mxu0 0.0
    %2949 = vmatpush.msra.mxu0 0.0
    %2950 = vmatpush.msra.mxu0 0.0
    %2951 = vmatpush.msra.mxu0 0.0
    %2952 = vmatpush.msra.mxu0 0.0
    %2953 = vmatpush.msra.mxu0 0.0
    %2954 = vmatpush.msra.mxu0 0.0
    %2955 = vmatpush.msra.mxu0 0.0
    %2956 = vmatpush.msra.mxu0 0.0
    %2957 = vmatpush.msra.mxu0 0.0
    %2958 = vmatpush.msra.mxu0 0.0
    %2959 = vmatpush.msra.mxu0 %v2930
    %2960 = vmatpush.msra.mxu0 %v2928
    %2961 = vmatpush.msra.mxu0 %v2926
    %2962 = vmatpush.msra.mxu0 %v2924
    %2963 = vmatmul.f32.gmra.mxu0 %v2936
    %v2964 = vpop.f32.mrf.mxu0
    %v2965 = vadd.f32 0.0, %v2964
    %2966 = vmatmul.f32.gmra.mxu0 %v2939
    %v2967 = vpop.f32.mrf.mxu0
    %v2968 = vadd.f32 0.0, %v2967
    %2969 = vmatmul.f32.gmra.mxu0 %v2942
    %v2970 = vpop.f32.mrf.mxu0
    %v2971 = vadd.f32 0.0, %v2970
    %2972 = vmatmul.f32.gmra.mxu0 %v2945
    %v2973 = vpop.f32.mrf.mxu0
    %v2974 = vadd.f32 0.0, %v2973
    %2975 = vdwg.mxu0
    %v2977 = vsel %vm517, %v2965, 0
    %v2980 = vsel %vm517, %v2968, 0
    %v2983 = vsel %vm517, %v2971, 0
    %v2986 = vsel %vm517, %v2974, 0
    %2988 = vmatpush.msra.mxu0 0.0
    %2989 = vmatpush.msra.mxu0 0.0
    %2990 = vmatpush.msra.mxu0 0.0
    %2991 = vmatpush.msra.mxu0 0.0
    %2992 = vmatpush.msra.mxu0 0.0
    %2993 = vmatpush.msra.mxu0 0.0
    %2994 = vmatpush.msra.mxu0 0.0
    %2995 = vmatpush.msra.mxu0 0.0
    %2996 = vmatpush.msra.mxu0 0.0
    %2997 = vmatpush.msra.mxu0 0.0
    %2998 = vmatpush.msra.mxu0 0.0
    %2999 = vmatpush.msra.mxu0 0.0
    %3000 = vmatpush.msra.mxu0 0.0
    %3001 = vmatpush.msra.mxu0 0.0
    %3002 = vmatpush.msra.mxu0 %v2520
    %3003 = vmatpush.msra.mxu0 %v2519
    %3004 = vmatmul.f32.gmra.mxu0 %v2977
    %v3005 = vpop.f32.mrf.mxu0
    %v3006 = vadd.f32 0.0, %v3005
    %3007 = vmatmul.f32.gmra.mxu0 %v2980
    %v3008 = vpop.f32.mrf.mxu0
    %v3009 = vadd.f32 0.0, %v3008
    %3010 = vmatmul.f32.gmra.mxu0 %v2983
    %v3011 = vpop.f32.mrf.mxu0
    %v3012 = vadd.f32 0.0, %v3011
    %3013 = vmatmul.f32.gmra.mxu0 %v2986
    %v3014 = vpop.f32.mrf.mxu0
    %v3015 = vadd.f32 0.0, %v3014
    %3016 = vdwg.mxu0
    %v3018 = vsel %vm517, %v2807, 0
    %v3021 = vsel %vm517, %v2810, 0
    %v3024 = vsel %vm517, %v2813, 0
    %v3027 = vsel %vm517, %v2816, 0
    %3029 = vmatpush.msra.mxu0 0.0
    %3030 = vmatpush.msra.mxu0 0.0
    %3031 = vmatpush.msra.mxu0 0.0
    %3032 = vmatpush.msra.mxu0 0.0
    %3033 = vmatpush.msra.mxu0 0.0
    %3034 = vmatpush.msra.mxu0 0.0
    %3035 = vmatpush.msra.mxu0 0.0
    %3036 = vmatpush.msra.mxu0 0.0
    %3037 = vmatpush.msra.mxu0 0.0
    %3038 = vmatpush.msra.mxu0 0.0
    %3039 = vmatpush.msra.mxu0 0.0
    %3040 = vmatpush.msra.mxu0 0.0
    %3041 = vmatpush.msra.mxu0 0.0
    %3042 = vmatpush.msra.mxu0 0.0
    %3043 = vmatpush.msra.mxu0 %v2518
    %3044 = vmatpush.msra.mxu0 %v2517
    %3045 = vmatmul.f32.gmra.mxu0 %v3018
    %v3046 = vpop.f32.mrf.mxu0
    %v3047 = vadd.f32 %v3006, %v3046
    %3048 = vmatmul.f32.gmra.mxu0 %v3021
    %v3049 = vpop.f32.mrf.mxu0
    %v3050 = vadd.f32 %v3009, %v3049
    %3051 = vmatmul.f32.gmra.mxu0 %v3024
    %v3052 = vpop.f32.mrf.mxu0
    %v3053 = vadd.f32 %v3012, %v3052
    %3054 = vmatmul.f32.gmra.mxu0 %v3027
    %v3055 = vpop.f32.mrf.mxu0
    %v3056 = vadd.f32 %v3015, %v3055
    %3057 = vdwg.mxu0
    %v3059 = vperm.slane %v2521, 0
    %v3061 = vadd.f32 %v3047, %v3059
    %v3062 = vadd.f32 %v3050, %v3059
    %v3063 = vadd.f32 %v3053, %v3059
    %v3064 = vadd.f32 %v3056, %v3059
    %v3065 = vadd.f32 %v3061, %v2616
    %v3066 = vadd.f32 %v3062, %v2617
    %v3067 = vadd.f32 %v3063, %v2618
    %v3068 = vadd.f32 %v3064, %v2619
    %v3069 = vsel %vm668, %v3065, 0.0
    %3070 = vadd.xlane.f32.xlu0 %v3069
    %v3071 = vpop.xlane.xlu0 %3070
    %v3072 = vsel %vm668, %v3066, 0.0
    %3073 = vadd.xlane.f32.xlu0 %v3072
    %v3074 = vpop.xlane.xlu0 %3073
    %v3075 = vsel %vm668, %v3067, 0.0
    %3076 = vadd.xlane.f32.xlu0 %v3075
    %v3077 = vpop.xlane.xlu0 %3076
    %v3078 = vsel %vm668, %v3068, 0.0
    %3079 = vadd.xlane.f32.xlu0 %v3078
    %v3080 = vpop.xlane.xlu0 %3079
    %v3081 = vmul.f32 %v3071, %v1035
    %v3082 = vmul.f32 %v3074, %v1035
    %v3083 = vmul.f32 %v3077, %v1035
    %v3084 = vmul.f32 %v3080, %v1035
    %v3085 = vsub.f32 %v3065, %v3081
    %v3086 = vsub.f32 %v3066, %v3082
    %v3087 = vsub.f32 %v3067, %v3083
    %v3088 = vsub.f32 %v3068, %v3084
    %v3089 = vmul.f32 %v3085, %v3085
    %v3090 = vmul.f32 %v3086, %v3086
    %v3091 = vmul.f32 %v3087, %v3087
    %v3092 = vmul.f32 %v3088, %v3088
    %v3093 = vsel %vm668, %v3089, 0.0
    %3094 = vadd.xlane.f32.xlu0 %v3093
    %v3095 = vpop.xlane.xlu0 %3094
    %v3096 = vsel %vm668, %v3090, 0.0
    %3097 = vadd.xlane.f32.xlu0 %v3096
    %v3098 = vpop.xlane.xlu0 %3097
    %v3099 = vsel %vm668, %v3091, 0.0
    %3100 = vadd.xlane.f32.xlu0 %v3099
    %v3101 = vpop.xlane.xlu0 %3100
    %v3102 = vsel %vm668, %v3092, 0.0
    %3103 = vadd.xlane.f32.xlu0 %v3102
    %v3104 = vpop.xlane.xlu0 %3103
    %v3105 = vmul.f32 %v3095, %v1035
    %v3106 = vmul.f32 %v3098, %v1035
    %v3107 = vmul.f32 %v3101, %v1035
    %v3108 = vmul.f32 %v3104, %v1035
    %v3109 = vadd.f32 %v3105, 1e-05
    %v3110 = vadd.f32 %v3106, 1e-05
    %v3111 = vadd.f32 %v3107, 1e-05
    %v3112 = vadd.f32 %v3108, 1e-05
    %v3113 = vrsqrt.pop %v3109
    %v3114 = vmul.f32 %v3113, %v3109
    %v3115 = vmul.f32 %v3114, %v3113
    %v3116 = vmul.f32 0.5, %v3115
    %v3117 = vsub.f32 1.5, %v3116
    %v3118 = vmul.f32 %v3113, %v3117
    %vm3119 = vweird.f32 %v3109
    %vm3120 = vweird.f32 %v3113
    %vm3121 = vmor %vm3119, %vm3120
    %v3122 = vsel %vm3121, %v3113, %v3118
    %v3123 = vrsqrt.pop %v3110
    %v3124 = vmul.f32 %v3123, %v3110
    %v3125 = vmul.f32 %v3124, %v3123
    %v3126 = vmul.f32 0.5, %v3125
    %v3127 = vsub.f32 1.5, %v3126
    %v3128 = vmul.f32 %v3123, %v3127
    %vm3129 = vweird.f32 %v3110
    %vm3130 = vweird.f32 %v3123
    %vm3131 = vmor %vm3129, %vm3130
    %v3132 = vsel %vm3131, %v3123, %v3128
    %v3133 = vrsqrt.pop %v3111
    %v3134 = vmul.f32 %v3133, %v3111
    %v3135 = vmul.f32 %v3134, %v3133
    %v3136 = vmul.f32 0.5, %v3135
    %v3137 = vsub.f32 1.5, %v3136
    %v3138 = vmul.f32 %v3133, %v3137
    %vm3139 = vweird.f32 %v3111
    %vm3140 = vweird.f32 %v3133
    %vm3141 = vmor %vm3139, %vm3140
    %v3142 = vsel %vm3141, %v3133, %v3138
    %v3143 = vrsqrt.pop %v3112
    %v3144 = vmul.f32 %v3143, %v3112
    %v3145 = vmul.f32 %v3144, %v3143
    %v3146 = vmul.f32 0.5, %v3145
    %v3147 = vsub.f32 1.5, %v3146
    %v3148 = vmul.f32 %v3143, %v3147
    %vm3149 = vweird.f32 %v3112
    %vm3150 = vweird.f32 %v3143
    %vm3151 = vmor %vm3149, %vm3150
    %v3152 = vsel %vm3151, %v3143, %v3148
    %v3153 = vmul.f32 %v3085, %v3122
    %v3154 = vmul.f32 %v3086, %v3132
    %v3155 = vmul.f32 %v3087, %v3142
    %v3156 = vmul.f32 %v3088, %v3152
    %v3158 = vperm.slane %v2522, 0
    %v3160 = vmul.f32 %v3153, %v3158
    %v3161 = vmul.f32 %v3154, %v3158
    %v3162 = vmul.f32 %v3155, %v3158
    %v3163 = vmul.f32 %v3156, %v3158
    %v3165 = vperm.slane %v2523, 0
    %v3167 = vadd.f32 %v3160, %v3165
    %v3168 = vadd.f32 %v3161, %v3165
    %v3169 = vadd.f32 %v3162, %v3165
    %v3170 = vadd.f32 %v3163, %v3165
    %v3172 = vperm.slane %v2528, 0
    %v3175 = vsel %vm668, %v3167, 0
    %v3178 = vsel %vm668, %v3168, 0
    %v3181 = vsel %vm668, %v3169, 0
    %v3184 = vsel %vm668, %v3170, 0
    %3186 = vmatpush.msra.mxu0 0.0
    %3187 = vmatpush.msra.mxu0 0.0
    %3188 = vmatpush.msra.mxu0 0.0
    %3189 = vmatpush.msra.mxu0 0.0
    %3190 = vmatpush.msra.mxu0 0.0
    %3191 = vmatpush.msra.mxu0 0.0
    %3192 = vmatpush.msra.mxu0 0.0
    %3193 = vmatpush.msra.mxu0 0.0
    %3194 = vmatpush.msra.mxu0 0.0
    %3195 = vmatpush.msra.mxu0 0.0
    %3196 = vmatpush.msra.mxu0 0.0
    %3197 = vmatpush.msra.mxu0 0.0
    %3198 = vmatpush.msra.mxu0 %v2527
    %3199 = vmatpush.msra.mxu0 %v2526
    %3200 = vmatpush.msra.mxu0 %v2525
    %3201 = vmatpush.msra.mxu0 %v2524
    %3202 = vmatmul.f32.gmra.mxu0 %v3175
    %v3203 = vpop.f32.mrf.mxu0
    %v3204 = vadd.f32 %v3172, %v3203
    %3205 = vmatmul.f32.gmra.mxu0 %v3178
    %v3206 = vpop.f32.mrf.mxu0
    %v3207 = vadd.f32 %v3172, %v3206
    %3208 = vmatmul.f32.gmra.mxu0 %v3181
    %v3209 = vpop.f32.mrf.mxu0
    %v3210 = vadd.f32 %v3172, %v3209
    %3211 = vmatmul.f32.gmra.mxu0 %v3184
    %v3212 = vpop.f32.mrf.mxu0
    %v3213 = vadd.f32 %v3172, %v3212
    %3214 = vdwg.mxu0
    %v3215 = vmax.f32 %v3204, 0.0
    %v3216 = vmax.f32 %v3207, 0.0
    %v3217 = vmax.f32 %v3210, 0.0
    %v3218 = vmax.f32 %v3213, 0.0
    %v3220 = vperm.slane %v2533, 0
    %v3223 = vsel %vm668, %v3215, 0
    %v3226 = vsel %vm668, %v3216, 0
    %v3229 = vsel %vm668, %v3217, 0
    %v3232 = vsel %vm668, %v3218, 0
    %3234 = vmatpush.msra.mxu0 0.0
    %3235 = vmatpush.msra.mxu0 0.0
    %3236 = vmatpush.msra.mxu0 0.0
    %3237 = vmatpush.msra.mxu0 0.0
    %3238 = vmatpush.msra.mxu0 0.0
    %3239 = vmatpush.msra.mxu0 0.0
    %3240 = vmatpush.msra.mxu0 0.0
    %3241 = vmatpush.msra.mxu0 0.0
    %3242 = vmatpush.msra.mxu0 0.0
    %3243 = vmatpush.msra.mxu0 0.0
    %3244 = vmatpush.msra.mxu0 0.0
    %3245 = vmatpush.msra.mxu0 0.0
    %3246 = vmatpush.msra.mxu0 %v2532
    %3247 = vmatpush.msra.mxu0 %v2531
    %3248 = vmatpush.msra.mxu0 %v2530
    %3249 = vmatpush.msra.mxu0 %v2529
    %3250 = vmatmul.f32.gmra.mxu0 %v3223
    %v3251 = vpop.f32.mrf.mxu0
    %v3252 = vadd.f32 %v3220, %v3251
    %3253 = vmatmul.f32.gmra.mxu0 %v3226
    %v3254 = vpop.f32.mrf.mxu0
    %v3255 = vadd.f32 %v3220, %v3254
    %3256 = vmatmul.f32.gmra.mxu0 %v3229
    %v3257 = vpop.f32.mrf.mxu0
    %v3258 = vadd.f32 %v3220, %v3257
    %3259 = vmatmul.f32.gmra.mxu0 %v3232
    %v3260 = vpop.f32.mrf.mxu0
    %v3261 = vadd.f32 %v3220, %v3260
    %3262 = vdwg.mxu0
    %v3263 = vadd.f32 %v3252, %v3167
    %v3264 = vadd.f32 %v3255, %v3168
    %v3265 = vadd.f32 %v3258, %v3169
    %v3266 = vadd.f32 %v3261, %v3170
    %v3267 = vsel %vm668, %v3263, 0.0
    %3268 = vadd.xlane.f32.xlu0 %v3267
    %v3269 = vpop.xlane.xlu0 %3268
    %v3270 = vsel %vm668, %v3264, 0.0
    %3271 = vadd.xlane.f32.xlu0 %v3270
    %v3272 = vpop.xlane.xlu0 %3271
    %v3273 = vsel %vm668, %v3265, 0.0
    %3274 = vadd.xlane.f32.xlu0 %v3273
    %v3275 = vpop.xlane.xlu0 %3274
    %v3276 = vsel %vm668, %v3266, 0.0
    %3277 = vadd.xlane.f32.xlu0 %v3276
    %v3278 = vpop.xlane.xlu0 %3277
    %v3279 = vmul.f32 %v3269, %v1035
    %v3280 = vmul.f32 %v3272, %v1035
    %v3281 = vmul.f32 %v3275, %v1035
    %v3282 = vmul.f32 %v3278, %v1035
    %v3283 = vsub.f32 %v3263, %v3279
    %v3284 = vsub.f32 %v3264, %v3280
    %v3285 = vsub.f32 %v3265, %v3281
    %v3286 = vsub.f32 %v3266, %v3282
    %v3287 = vmul.f32 %v3283, %v3283
    %v3288 = vmul.f32 %v3284, %v3284
    %v3289 = vmul.f32 %v3285, %v3285
    %v3290 = vmul.f32 %v3286, %v3286
    %v3291 = vsel %vm668, %v3287, 0.0
    %3292 = vadd.xlane.f32.xlu0 %v3291
    %v3293 = vpop.xlane.xlu0 %3292
    %v3294 = vsel %vm668, %v3288, 0.0
    %3295 = vadd.xlane.f32.xlu0 %v3294
    %v3296 = vpop.xlane.xlu0 %3295
    %v3297 = vsel %vm668, %v3289, 0.0
    %3298 = vadd.xlane.f32.xlu0 %v3297
    %v3299 = vpop.xlane.xlu0 %3298
    %v3300 = vsel %vm668, %v3290, 0.0
    %3301 = vadd.xlane.f32.xlu0 %v3300
    %v3302 = vpop.xlane.xlu0 %3301
    %v3303 = vmul.f32 %v3293, %v1035
    %v3304 = vmul.f32 %v3296, %v1035
    %v3305 = vmul.f32 %v3299, %v1035
    %v3306 = vmul.f32 %v3302, %v1035
    %v3307 = vadd.f32 %v3303, 1e-05
    %v3308 = vadd.f32 %v3304, 1e-05
    %v3309 = vadd.f32 %v3305, 1e-05
    %v3310 = vadd.f32 %v3306, 1e-05
    %v3311 = vrsqrt.pop %v3307
    %v3312 = vmul.f32 %v3311, %v3307
    %v3313 = vmul.f32 %v3312, %v3311
    %v3314 = vmul.f32 0.5, %v3313
    %v3315 = vsub.f32 1.5, %v3314
    %v3316 = vmul.f32 %v3311, %v3315
    %vm3317 = vweird.f32 %v3307
    %vm3318 = vweird.f32 %v3311
    %vm3319 = vmor %vm3317, %vm3318
    %v3320 = vsel %vm3319, %v3311, %v3316
    %v3321 = vrsqrt.pop %v3308
    %v3322 = vmul.f32 %v3321, %v3308
    %v3323 = vmul.f32 %v3322, %v3321
    %v3324 = vmul.f32 0.5, %v3323
    %v3325 = vsub.f32 1.5, %v3324
    %v3326 = vmul.f32 %v3321, %v3325
    %vm3327 = vweird.f32 %v3308
    %vm3328 = vweird.f32 %v3321
    %vm3329 = vmor %vm3327, %vm3328
    %v3330 = vsel %vm3329, %v3321, %v3326
    %v3331 = vrsqrt.pop %v3309
    %v3332 = vmul.f32 %v3331, %v3309
    %v3333 = vmul.f32 %v3332, %v3331
    %v3334 = vmul.f32 0.5, %v3333
    %v3335 = vsub.f32 1.5, %v3334
    %v3336 = vmul.f32 %v3331, %v3335
    %vm3337 = vweird.f32 %v3309
    %vm3338 = vweird.f32 %v3331
    %vm3339 = vmor %vm3337, %vm3338
    %v3340 = vsel %vm3339, %v3331, %v3336
    %v3341 = vrsqrt.pop %v3310
    %v3342 = vmul.f32 %v3341, %v3310
    %v3343 = vmul.f32 %v3342, %v3341
    %v3344 = vmul.f32 0.5, %v3343
    %v3345 = vsub.f32 1.5, %v3344
    %v3346 = vmul.f32 %v3341, %v3345
    %vm3347 = vweird.f32 %v3310
    %vm3348 = vweird.f32 %v3341
    %vm3349 = vmor %vm3347, %vm3348
    %v3350 = vsel %vm3349, %v3341, %v3346
    %v3351 = vmul.f32 %v3283, %v3320
    %v3352 = vmul.f32 %v3284, %v3330
    %v3353 = vmul.f32 %v3285, %v3340
    %v3354 = vmul.f32 %v3286, %v3350
    %v3356 = vperm.slane %v2534, 0
    %v3358 = vmul.f32 %v3351, %v3356
    %v3359 = vmul.f32 %v3352, %v3356
    %v3360 = vmul.f32 %v3353, %v3356
    %v3361 = vmul.f32 %v3354, %v3356
    %v3363 = vperm.slane %v2535, 0
    %v3365 = vadd.f32 %v3358, %v3363
    %v3366 = vadd.f32 %v3359, %v3363
    %v3367 = vadd.f32 %v3360, %v3363
    %v3368 = vadd.f32 %v3361, %v3363
    %v3370 = vperm.slane %v2540, 0
    %v3373 = vsel %vm668, %v3365, 0
    %v3376 = vsel %vm668, %v3366, 0
    %v3379 = vsel %vm668, %v3367, 0
    %v3382 = vsel %vm668, %v3368, 0
    %3384 = vmatpush.msra.mxu0 0.0
    %3385 = vmatpush.msra.mxu0 0.0
    %3386 = vmatpush.msra.mxu0 0.0
    %3387 = vmatpush.msra.mxu0 0.0
    %3388 = vmatpush.msra.mxu0 0.0
    %3389 = vmatpush.msra.mxu0 0.0
    %3390 = vmatpush.msra.mxu0 0.0
    %3391 = vmatpush.msra.mxu0 0.0
    %3392 = vmatpush.msra.mxu0 0.0
    %3393 = vmatpush.msra.mxu0 0.0
    %3394 = vmatpush.msra.mxu0 0.0
    %3395 = vmatpush.msra.mxu0 0.0
    %3396 = vmatpush.msra.mxu0 %v2539
    %3397 = vmatpush.msra.mxu0 %v2538
    %3398 = vmatpush.msra.mxu0 %v2537
    %3399 = vmatpush.msra.mxu0 %v2536
    %3400 = vmatmul.f32.gmra.mxu0 %v3373
    %v3401 = vpop.f32.mrf.mxu0
    %v3402 = vadd.f32 %v3370, %v3401
    %3403 = vmatmul.f32.gmra.mxu0 %v3376
    %v3404 = vpop.f32.mrf.mxu0
    %v3405 = vadd.f32 %v3370, %v3404
    %3406 = vmatmul.f32.gmra.mxu0 %v3379
    %v3407 = vpop.f32.mrf.mxu0
    %v3408 = vadd.f32 %v3370, %v3407
    %3409 = vmatmul.f32.gmra.mxu0 %v3382
    %v3410 = vpop.f32.mrf.mxu0
    %v3411 = vadd.f32 %v3370, %v3410
    %3412 = vdwg.mxu0
    %v3413 = vsel %vm517, %v3402, 0.0
    %3414 = vadd.xlane.f32.xlu0 %v3413
    %v3415 = vpop.xlane.xlu0 %3414
    %v3416 = vsel %vm517, %v3405, 0.0
    %3417 = vadd.xlane.f32.xlu0 %v3416
    %v3418 = vpop.xlane.xlu0 %3417
    %v3419 = vsel %vm517, %v3408, 0.0
    %3420 = vadd.xlane.f32.xlu0 %v3419
    %v3421 = vpop.xlane.xlu0 %3420
    %v3422 = vsel %vm517, %v3411, 0.0
    %3423 = vadd.xlane.f32.xlu0 %v3422
    %v3424 = vpop.xlane.xlu0 %3423
    %v3425 = vmul.f32 %v3415, %v1386
    %v3426 = vmul.f32 %v3418, %v1386
    %v3427 = vmul.f32 %v3421, %v1386
    %v3428 = vmul.f32 %v3424, %v1386
    %v3429 = vsub.f32 %v3402, %v3425
    %v3430 = vsub.f32 %v3405, %v3426
    %v3431 = vsub.f32 %v3408, %v3427
    %v3432 = vsub.f32 %v3411, %v3428
    %v3433 = vmul.f32 %v3429, %v3429
    %v3434 = vmul.f32 %v3430, %v3430
    %v3435 = vmul.f32 %v3431, %v3431
    %v3436 = vmul.f32 %v3432, %v3432
    %v3437 = vsel %vm517, %v3433, 0.0
    %3438 = vadd.xlane.f32.xlu0 %v3437
    %v3439 = vpop.xlane.xlu0 %3438
    %v3440 = vsel %vm517, %v3434, 0.0
    %3441 = vadd.xlane.f32.xlu0 %v3440
    %v3442 = vpop.xlane.xlu0 %3441
    %v3443 = vsel %vm517, %v3435, 0.0
    %3444 = vadd.xlane.f32.xlu0 %v3443
    %v3445 = vpop.xlane.xlu0 %3444
    %v3446 = vsel %vm517, %v3436, 0.0
    %3447 = vadd.xlane.f32.xlu0 %v3446
    %v3448 = vpop.xlane.xlu0 %3447
    %v3449 = vmul.f32 %v3439, %v1386
    %v3450 = vmul.f32 %v3442, %v1386
    %v3451 = vmul.f32 %v3445, %v1386
    %v3452 = vmul.f32 %v3448, %v1386
    %v3453 = vadd.f32 %v3449, 1e-05
    %v3454 = vadd.f32 %v3450, 1e-05
    %v3455 = vadd.f32 %v3451, 1e-05
    %v3456 = vadd.f32 %v3452, 1e-05
    %v3457 = vrsqrt.pop %v3453
    %v3458 = vmul.f32 %v3457, %v3453
    %v3459 = vmul.f32 %v3458, %v3457
    %v3460 = vmul.f32 0.5, %v3459
    %v3461 = vsub.f32 1.5, %v3460
    %v3462 = vmul.f32 %v3457, %v3461
    %vm3463 = vweird.f32 %v3453
    %vm3464 = vweird.f32 %v3457
    %vm3465 = vmor %vm3463, %vm3464
    %v3466 = vsel %vm3465, %v3457, %v3462
    %v3467 = vrsqrt.pop %v3454
    %v3468 = vmul.f32 %v3467, %v3454
    %v3469 = vmul.f32 %v3468, %v3467
    %v3470 = vmul.f32 0.5, %v3469
    %v3471 = vsub.f32 1.5, %v3470
    %v3472 = vmul.f32 %v3467, %v3471
    %vm3473 = vweird.f32 %v3454
    %vm3474 = vweird.f32 %v3467
    %vm3475 = vmor %vm3473, %vm3474
    %v3476 = vsel %vm3475, %v3467, %v3472
    %v3477 = vrsqrt.pop %v3455
    %v3478 = vmul.f32 %v3477, %v3455
    %v3479 = vmul.f32 %v3478, %v3477
    %v3480 = vmul.f32 0.5, %v3479
    %v3481 = vsub.f32 1.5, %v3480
    %v3482 = vmul.f32 %v3477, %v3481
    %vm3483 = vweird.f32 %v3455
    %vm3484 = vweird.f32 %v3477
    %vm3485 = vmor %vm3483, %vm3484
    %v3486 = vsel %vm3485, %v3477, %v3482
    %v3487 = vrsqrt.pop %v3456
    %v3488 = vmul.f32 %v3487, %v3456
    %v3489 = vmul.f32 %v3488, %v3487
    %v3490 = vmul.f32 0.5, %v3489
    %v3491 = vsub.f32 1.5, %v3490
    %v3492 = vmul.f32 %v3487, %v3491
    %vm3493 = vweird.f32 %v3456
    %vm3494 = vweird.f32 %v3487
    %vm3495 = vmor %vm3493, %vm3494
    %v3496 = vsel %vm3495, %v3487, %v3492
    %v3497 = vmul.f32 %v3429, %v3466
    %v3498 = vmul.f32 %v3430, %v3476
    %v3499 = vmul.f32 %v3431, %v3486
    %v3500 = vmul.f32 %v3432, %v3496
    %v3502 = vperm.slane %v2541, 0
    %v3504 = vmul.f32 %v3497, %v3502
    %v3505 = vmul.f32 %v3498, %v3502
    %v3506 = vmul.f32 %v3499, %v3502
    %v3507 = vmul.f32 %v3500, %v3502
    %v3509 = vperm.slane %v2542, 0
    %v3511 = vadd.f32 %v3504, %v3509
    %v3512 = vadd.f32 %v3505, %v3509
    %v3513 = vadd.f32 %v3506, %v3509
    %v3514 = vadd.f32 %v3507, %v3509
    %v3515 = vmax.f32 %v3511, 0.0
    %v3516 = vmax.f32 %v3512, 0.0
    %v3517 = vmax.f32 %v3513, 0.0
    %v3518 = vmax.f32 %v3514, 0.0
    %v3519 = vld [vmem:[%s121] sm:$0xff]
    %v3520 = vld [vmem:[%s121 + $0x8] sm:$0xff]
    %v3521 = vld [vmem:[%s121 + $0x10] sm:$0xff]
    %v3522 = vld [vmem:[%s121 + $0x18] sm:$0xff]
    %v3523 = vld [vmem:[%s121 + $0x20] sm:$0xff]
    %v3524 = vld [vmem:[%s121 + $0x28] sm:$0xff]
    %v3525 = vld [vmem:[%s121 + $0x30] sm:$0xff]
    %v3526 = vld [vmem:[%s121 + $0x38] sm:$0xff]
    %v3527 = vld [vmem:[%s121 + $0x40] sm:$0xff]
    %v3528 = vld [vmem:[%s121 + $0x48] sm:$0xff]
    %v3529 = vld [vmem:[%s121 + $0x50] sm:$0xff]
    %v3530 = vld [vmem:[%s121 + $0x58] sm:$0xff]
    %v3531 = vld [vmem:[%s121 + $0x60] sm:$0xff]
    %v3532 = vld [vmem:[%s121 + $0x68] sm:$0xff]
    %v3533 = vld [vmem:[%s121 + $0x70] sm:$0xff]
    %v3534 = vld [vmem:[%s121 + $0x78] sm:$0xff]
    %v3535 = vld [vmem:[#allocation13] sm:$0x1]
    %v3536 = vld [vmem:[#allocation14] sm:$0x1]
    %v3537 = vld [vmem:[#allocation16] sm:$0x1]
    %v3538 = vld [vmem:[#allocation17] sm:$0x1]
    %v3539 = vld [vmem:[#allocation19] sm:$0x1]
    %v3541 = vrot.slane %v3515, 4
    %v3542 = vsel %vm517, %v3541, 0
    %3544 = vmatpush.msra.mxu0 0.0
    %3545 = vmatpush.msra.mxu0 0.0
    %3546 = vmatpush.msra.mxu0 0.0
    %3547 = vmatpush.msra.mxu0 0.0
    %3548 = vmatpush.msra.mxu0 0.0
    %3549 = vmatpush.msra.mxu0 0.0
    %3550 = vmatpush.msra.mxu0 0.0
    %3551 = vmatpush.msra.mxu0 0.0
    %3552 = vmatpush.msra.mxu0 0.0
    %3553 = vmatpush.msra.mxu0 0.0
    %3554 = vmatpush.msra.mxu0 0.0
    %3555 = vmatpush.msra.mxu0 0.0
    %3556 = vmatpush.msra.mxu0 0.0
    %3557 = vmatpush.msra.mxu0 0.0
    %3558 = vmatpush.msra.mxu0 %v3522
    %3559 = vmatpush.msra.mxu0 %v3521
    %3560 = vmatmul.f32.gmra.mxu0 %v3542
    %v3561 = vpop.f32.mrf.mxu0
    %v3562 = vadd.f32 0.0, %v3561
    %3563 = vdwg.mxu0
    %v3564 = vsel %vm517, %v3515, 0
    %3566 = vmatpush.msra.mxu0 0.0
    %3567 = vmatpush.msra.mxu0 0.0
    %3568 = vmatpush.msra.mxu0 0.0
    %3569 = vmatpush.msra.mxu0 0.0
    %3570 = vmatpush.msra.mxu0 0.0
    %3571 = vmatpush.msra.mxu0 0.0
    %3572 = vmatpush.msra.mxu0 0.0
    %3573 = vmatpush.msra.mxu0 0.0
    %3574 = vmatpush.msra.mxu0 0.0
    %3575 = vmatpush.msra.mxu0 0.0
    %3576 = vmatpush.msra.mxu0 0.0
    %3577 = vmatpush.msra.mxu0 0.0
    %3578 = vmatpush.msra.mxu0 0.0
    %3579 = vmatpush.msra.mxu0 0.0
    %3580 = vmatpush.msra.mxu0 %v3520
    %3581 = vmatpush.msra.mxu0 %v3519
    %3582 = vmatmul.f32.gmra.mxu0 %v3564
    %v3583 = vpop.f32.mrf.mxu0
    %v3584 = vadd.f32 %v3562, %v3583
    %3585 = vdwg.mxu0
    %v3587 = vsel %vm517, %v3516, 0
    %3589 = vmatpush.msra.mxu0 0.0
    %3590 = vmatpush.msra.mxu0 0.0
    %3591 = vmatpush.msra.mxu0 0.0
    %3592 = vmatpush.msra.mxu0 0.0
    %3593 = vmatpush.msra.mxu0 0.0
    %3594 = vmatpush.msra.mxu0 0.0
    %3595 = vmatpush.msra.mxu0 0.0
    %3596 = vmatpush.msra.mxu0 0.0
    %3597 = vmatpush.msra.mxu0 0.0
    %3598 = vmatpush.msra.mxu0 0.0
    %3599 = vmatpush.msra.mxu0 0.0
    %3600 = vmatpush.msra.mxu0 0.0
    %3601 = vmatpush.msra.mxu0 0.0
    %3602 = vmatpush.msra.mxu0 0.0
    %3603 = vmatpush.msra.mxu0 %v3524
    %3604 = vmatpush.msra.mxu0 %v3523
    %3605 = vmatmul.f32.gmra.mxu0 %v3587
    %v3606 = vpop.f32.mrf.mxu0
    %v3607 = vadd.f32 0.0, %v3606
    %3608 = vdwg.mxu0
    %v3609 = vadd.f32 %v3584, %v3607
    %v3610 = vrot.slane %v3516, 4
    %v3611 = vsel %vm517, %v3610, 0
    %3613 = vmatpush.msra.mxu0 0.0
    %3614 = vmatpush.msra.mxu0 0.0
    %3615 = vmatpush.msra.mxu0 0.0
    %3616 = vmatpush.msra.mxu0 0.0
    %3617 = vmatpush.msra.mxu0 0.0
    %3618 = vmatpush.msra.mxu0 0.0
    %3619 = vmatpush.msra.mxu0 0.0
    %3620 = vmatpush.msra.mxu0 0.0
    %3621 = vmatpush.msra.mxu0 0.0
    %3622 = vmatpush.msra.mxu0 0.0
    %3623 = vmatpush.msra.mxu0 0.0
    %3624 = vmatpush.msra.mxu0 0.0
    %3625 = vmatpush.msra.mxu0 0.0
    %3626 = vmatpush.msra.mxu0 0.0
    %3627 = vmatpush.msra.mxu0 %v3526
    %3628 = vmatpush.msra.mxu0 %v3525
    %3629 = vmatmul.f32.gmra.mxu0 %v3611
    %v3630 = vpop.f32.mrf.mxu0
    %v3631 = vadd.f32 0.0, %v3630
    %3632 = vdwg.mxu0
    %v3633 = vadd.f32 %v3609, %v3631
    %v3635 = vsel %vm517, %v3517, 0
    %3637 = vmatpush.msra.mxu0 0.0
    %3638 = vmatpush.msra.mxu0 0.0
    %3639 = vmatpush.msra.mxu0 0.0
    %3640 = vmatpush.msra.mxu0 0.0
    %3641 = vmatpush.msra.mxu0 0.0
    %3642 = vmatpush.msra.mxu0 0.0
    %3643 = vmatpush.msra.mxu0 0.0
    %3644 = vmatpush.msra.mxu0 0.0
    %3645 = vmatpush.msra.mxu0 0.0
    %3646 = vmatpush.msra.mxu0 0.0
    %3647 = vmatpush.msra.mxu0 0.0
    %3648 = vmatpush.msra.mxu0 0.0
    %3649 = vmatpush.msra.mxu0 0.0
    %3650 = vmatpush.msra.mxu0 0.0
    %3651 = vmatpush.msra.mxu0 %v3528
    %3652 = vmatpush.msra.mxu0 %v3527
    %3653 = vmatmul.f32.gmra.mxu0 %v3635
    %v3654 = vpop.f32.mrf.mxu0
    %v3655 = vadd.f32 0.0, %v3654
    %3656 = vdwg.mxu0
    %v3657 = vadd.f32 %v3633, %v3655
    %v3658 = vrot.slane %v3517, 4
    %v3659 = vsel %vm517, %v3658, 0
    %3661 = vmatpush.msra.mxu0 0.0
    %3662 = vmatpush.msra.mxu0 0.0
    %3663 = vmatpush.msra.mxu0 0.0
    %3664 = vmatpush.msra.mxu0 0.0
    %3665 = vmatpush.msra.mxu0 0.0
    %3666 = vmatpush.msra.mxu0 0.0
    %3667 = vmatpush.msra.mxu0 0.0
    %3668 = vmatpush.msra.mxu0 0.0
    %3669 = vmatpush.msra.mxu0 0.0
    %3670 = vmatpush.msra.mxu0 0.0
    %3671 = vmatpush.msra.mxu0 0.0
    %3672 = vmatpush.msra.mxu0 0.0
    %3673 = vmatpush.msra.mxu0 0.0
    %3674 = vmatpush.msra.mxu0 0.0
    %3675 = vmatpush.msra.mxu0 %v3530
    %3676 = vmatpush.msra.mxu0 %v3529
    %3677 = vmatmul.f32.gmra.mxu0 %v3659
    %v3678 = vpop.f32.mrf.mxu0
    %v3679 = vadd.f32 0.0, %v3678
    %3680 = vdwg.mxu0
    %v3681 = vadd.f32 %v3657, %v3679
    %v3683 = vsel %vm517, %v3518, 0
    %3685 = vmatpush.msra.mxu0 0.0
    %3686 = vmatpush.msra.mxu0 0.0
    %3687 = vmatpush.msra.mxu0 0.0
    %3688 = vmatpush.msra.mxu0 0.0
    %3689 = vmatpush.msra.mxu0 0.0
    %3690 = vmatpush.msra.mxu0 0.0
    %3691 = vmatpush.msra.mxu0 0.0
    %3692 = vmatpush.msra.mxu0 0.0
    %3693 = vmatpush.msra.mxu0 0.0
    %3694 = vmatpush.msra.mxu0 0.0
    %3695 = vmatpush.msra.mxu0 0.0
    %3696 = vmatpush.msra.mxu0 0.0
    %3697 = vmatpush.msra.mxu0 0.0
    %3698 = vmatpush.msra.mxu0 0.0
    %3699 = vmatpush.msra.mxu0 %v3532
    %3700 = vmatpush.msra.mxu0 %v3531
    %3701 = vmatmul.f32.gmra.mxu0 %v3683
    %v3702 = vpop.f32.mrf.mxu0
    %v3703 = vadd.f32 0.0, %v3702
    %3704 = vdwg.mxu0
    %v3705 = vadd.f32 %v3681, %v3703
    %v3706 = vrot.slane %v3518, 4
    %v3707 = vsel %vm517, %v3706, 0
    %3709 = vmatpush.msra.mxu0 0.0
    %3710 = vmatpush.msra.mxu0 0.0
    %3711 = vmatpush.msra.mxu0 0.0
    %3712 = vmatpush.msra.mxu0 0.0
    %3713 = vmatpush.msra.mxu0 0.0
    %3714 = vmatpush.msra.mxu0 0.0
    %3715 = vmatpush.msra.mxu0 0.0
    %3716 = vmatpush.msra.mxu0 0.0
    %3717 = vmatpush.msra.mxu0 0.0
    %3718 = vmatpush.msra.mxu0 0.0
    %3719 = vmatpush.msra.mxu0 0.0
    %3720 = vmatpush.msra.mxu0 0.0
    %3721 = vmatpush.msra.mxu0 0.0
    %3722 = vmatpush.msra.mxu0 0.0
    %3723 = vmatpush.msra.mxu0 %v3534
    %3724 = vmatpush.msra.mxu0 %v3533
    %3725 = vmatmul.f32.gmra.mxu0 %v3707
    %v3726 = vpop.f32.mrf.mxu0
    %v3727 = vadd.f32 0.0, %v3726
    %3728 = vdwg.mxu0
    %v3729 = vadd.f32 %v3705, %v3727
    %v3731 = vperm.slane %v3535, 0
    %v3733 = vadd.f32 %v3729, %v3731
    %v3735 = vperm.slane %v3538, 0
    %v3737 = vsub.f32 %v3733, %v3735
    %v3738 = vadd.f32 %v3539, 1e-05
    %v3739 = vrsqrt.pop %v3738
    %v3740 = vmul.f32 %v3739, %v3738
    %v3741 = vmul.f32 %v3740, %v3739
    %v3742 = vmul.f32 0.5, %v3741
    %v3743 = vsub.f32 1.5, %v3742
    %v3744 = vmul.f32 %v3739, %v3743
    %vm3745 = vweird.f32 %v3738
    %vm3746 = vweird.f32 %v3739
    %vm3747 = vmor %vm3745, %vm3746
    %v3748 = vsel %vm3747, %v3739, %v3744
    %v3750 = vperm.slane %v3748, 0
    %v3752 = vmul.f32 %v3737, %v3750
    %v3754 = vperm.slane %v3536, 0
    %v3756 = vmul.f32 %v3752, %v3754
    %v3758 = vperm.slane %v3537, 0
    %v3760 = vadd.f32 %v3756, %v3758
    %v3761 = vmax.f32 %v3760, 0.0
    %vm3762 = vcmask 519168
    %3763 = vst.msk [vmem:[#allocation20] sm:$0xf] %vm3762, %v3761
    // Predicated region
    $region310: #{self_attn_block_forward.1} parent=1 // pred_check
      _
    $region311: #{self_attn_block_forward.1} parent=1 // pred_check_branch
      %3765 = sbr.rel (0) target = $region313
    $region312: #{self_attn_block_forward.1} parent=1 // pred_region
      %3767 = vsyncadd [#allocation4], 0
      %s3769 = sshll.u32 [#allocation20], 4
      %s3770 = int_to_ptr.vmem [resolvable:$true] %s3769
      %s3771 = sshll.u32 %s133, 4
      %s3772 = int_to_ptr.hbm [resolvable:$true] %s3771
      %3774 = dma.vmem_to_hbm [thread:$0]  %s3770, 64, %s3772, [#allocation4]
    $region313: #{self_attn_block_forward.1} parent=1 // pred_fallthru
      _
    // Predicated region
    $region314: #{self_attn_block_forward.1} parent=1 // pred_check
      _
    $region315: #{self_attn_block_forward.1} parent=1 // pred_check_branch
      %3776 = sbr.rel (0) target = $region317
    $region316: #{self_attn_block_forward.1} parent=1 // pred_region
      %3778 = dma.done [#allocation4], 64
    $region317: #{self_attn_block_forward.1} parent=1 // pred_fallthru
      _
    %3779 = vsyncpa [#allocation3], 1
    %3780 = vsyncpa [#allocation6], 1
    %3781 = vsyncpa [#allocation9], 1
    %3782 = vsyncpa [#allocation12], 1
    %3783 = vsyncpa [#allocation15], 1
    %3784 = vsyncpa [#allocation18], 1
    %3785 = vsyncpa [#allocation4], 1

</llo_original>
